<compile_context>
chip_gen: v6e
topology: v6e:2x2x1
jax: 0.10.0
libtpu: 0.0.40
codegen_flags: <defaults>
</compile_context>

<pallas_src>
import functools
import math

import jax
import jax.numpy as jnp
from jax.experimental import pallas as pl
from jax.experimental.pallas import tpu as pltpu

EPS = 1e-6


def _layer_norm(x, a, b, d):
    # x: (M, D) f32; a, b: (1, D) f32. Unbiased std (correction=1) to match torch .std().
    mean = jnp.mean(x, axis=-1, keepdims=True)
    c = x - mean
    var = jnp.sum(c * c, axis=-1, keepdims=True) * (1.0 / (d - 1))
    inv = 1.0 / (jnp.sqrt(var) + EPS)          # one reciprocal per row
    return a * (c * inv) + b


def decoder_kernel(x_ref, bias_ref,
                   ln1_a_ref, ln1_b_ref,
                   wq_ref, bq_ref, wk_ref, bk_ref, wv_ref, bv_ref,
                   wo_ref, bo_ref,
                   ln2_a_ref, ln2_b_ref,
                   w1_ref, b1_ref, w2_ref, b2_ref,
                   fn_a_ref, fn_b_ref,
                   o_ref,
                   x_state,
                   *, n_heads, mask_per_batch):
    l = pl.program_id(1)
    n_layers = pl.num_programs(1)

    Bblk, S, D = x_ref.shape
    M = Bblk * S
    H = n_heads
    dk = D // H
    scale = 1.0 / math.sqrt(dk)

    # Load x from HBM once per batch-block; it stays resident in VMEM across layers.
    @pl.when(l == 0)
    def _():
        x_state[...] = x_ref[...].reshape(M, D)

    x = x_state[...]                                   # (M, D) f32

    # Additive attention bias (precomputed in the wrapper; broadcasting handles bm == 1).
    bias = bias_ref[...]                               # (Bblk or 1, S, S) f32

    # ---- sublayer 0: x + self_attn(LayerNorm(x)) ----
    xn = _layer_norm(x, ln1_a_ref[0], ln1_b_ref[0], D).astype(jnp.bfloat16)
    q = (jnp.dot(xn, wq_ref[0], preferred_element_type=jnp.float32) + bq_ref[0]) * scale
    k = jnp.dot(xn, wk_ref[0], preferred_element_type=jnp.float32) + bk_ref[0]
    v = jnp.dot(xn, wv_ref[0], preferred_element_type=jnp.float32) + bv_ref[0]

    # Leading-dim split only (no lane-axis reshapes); heads are taken as static lane
    # slices directly in registers.
    q3 = q.astype(jnp.bfloat16).reshape(Bblk, S, D)
    k3 = k.astype(jnp.bfloat16).reshape(Bblk, S, D)
    v3 = v.astype(jnp.bfloat16).reshape(Bblk, S, D)
    wo = wo_ref[0]                                     # (D, D) bf16

    attn = jnp.zeros((M, D), jnp.float32)
    # TODO(synk): switch to lax.fori_loop(..., unroll=True) if H grows beyond a handful.
    for h in range(H):
        lo, hi = h * dk, (h + 1) * dk
        qh = q3[:, :, lo:hi]                           # (Bblk, S, dk) bf16
        kh = k3[:, :, lo:hi]
        vh = v3[:, :, lo:hi]
        s = jnp.einsum('bqd,bkd->bqk', qh, kh,
                       preferred_element_type=jnp.float32) + bias   # (Bblk, S, S)
        m = jnp.max(s, axis=-1, keepdims=True)
        e = jnp.exp(s - m)
        p = e * pl.reciprocal(jnp.sum(e, axis=-1, keepdims=True), approx=True)
        ctx = jnp.einsum('bqk,bkd->bqd', p.astype(jnp.bfloat16), vh,
                         preferred_element_type=jnp.float32)         # (Bblk, S, dk)
        # Output projection accumulated per head against a row-slice of wo
        # (no merged-head scratch, no masked lane stores).
        attn = attn + jnp.dot(ctx.reshape(M, dk).astype(jnp.bfloat16),
                              wo[lo:hi, :], preferred_element_type=jnp.float32)

    attn = attn + bo_ref[0]
    x = x + attn                                       # dropout == identity

    # ---- sublayer 1: x + FFN(LayerNorm(x)) ----
    xn2 = _layer_norm(x, ln2_a_ref[0], ln2_b_ref[0], D).astype(jnp.bfloat16)
    h1 = jnp.dot(xn2, w1_ref[0], preferred_element_type=jnp.float32) + b1_ref[0]
    h1 = jnp.maximum(h1, 0.0).astype(jnp.bfloat16)
    ff = jnp.dot(h1, w2_ref[0], preferred_element_type=jnp.float32) + b2_ref[0]
    x_new = x + ff
    x_state[...] = x_new

    # Fused final LayerNorm on the last layer step.
    @pl.when(l == n_layers - 1)
    def _():
        o_ref[...] = _layer_norm(x_new, fn_a_ref[...], fn_b_ref[...], D).reshape(Bblk, S, D)


def _pick_batch_block(B, S):
    # Target >= ~256 rows per matmul so the MXU M dimension is filled on v6e/v7x,
    # bounded by B and required to divide B evenly.
    target = max(1, 256 // max(S, 1))
    bblk = min(B, max(1, target))
    while B % bblk:
        bblk -= 1
    return bblk


def _vmem_limit_bytes(bblk, S, D, F, bm):
    M = bblk * S
    w_bf16 = 4 * D * D + 2 * D * F                     # per-layer bf16 matmul weights (elems)
    vec_f32 = 8 * D + F                                # biases + LN params (elems)
    blocks = 2 * (w_bf16 * 2 + vec_f32 * 4)            # double-buffered weight stream
    blocks += 2 * (M * D * 4)                          # x input block
    blocks += 2 * ((bblk if bm > 1 else 1) * S * S * 4)  # bias block
    blocks += 2 * (M * D * 4)                          # output block
    scratch = M * D * 4                                # resident hidden state
    temps = (M * F + 8 * M * D + 3 * bblk * S * S) * 4
    est = blocks + scratch + temps + (2 << 20)
    # 48 MiB cap keeps headroom on v7x's 64 MiB per-TC VMEM; v5e/v6e have 128 MiB physical.
    return int(min(max(est, 16 << 20), 48 << 20))


def _stack_mat(layer_params, name, dtype):
    return jnp.stack([jnp.asarray(p[name], jnp.float32) for p in layer_params]).astype(dtype)


def _stack_vec(layer_params, name):
    v = jnp.stack([jnp.asarray(p[name], jnp.float32).reshape(-1) for p in layer_params])
    return v[:, None, :]                               # (L, 1, dim) f32


def decoder_forward(x, src_mask, layer_params, norm_a, norm_b, n_heads, batch_block=None):
    """Mirrors: for layer in self.layers: x = layer(x, src_mask); return self.norm(x).

    x: (B, S, D) f32.  src_mask: (S, S), (1, S, S) or (B, S, S); 1.0 = attend, 0.0 = masked.
    """
    B, S, D = x.shape
    L = len(layer_params)
    F = int(jnp.asarray(layer_params[0]["w1"]).shape[-1])
    H = n_heads
    assert D % H == 0

    x = x.astype(jnp.float32)
    if src_mask.ndim == 2:
        src_mask = src_mask[None]
    src_mask = jnp.asarray(src_mask, jnp.float32)
    bm = src_mask.shape[0]
    assert bm in (1, B)

    bblk = _pick_batch_block(B, S) if batch_block is None else batch_block
    assert B % bblk == 0
    nb = B // bblk

    # Precompute the additive attention bias once in the wrapper (hoists the in-kernel
    # compare+select; 0.0 = attend, -1e9 = masked).
    bias = jnp.where(src_mask == 0.0, jnp.float32(-1e9), jnp.float32(0.0))

    # Stack per-layer params along a leading layer axis; matmul weights stream as bf16.
    wq = _stack_mat(layer_params, "wq", jnp.bfloat16)
    wk = _stack_mat(layer_params, "wk", jnp.bfloat16)
    wv = _stack_mat(layer_params, "wv", jnp.bfloat16)
    wo = _stack_mat(layer_params, "wo", jnp.bfloat16)
    w1 = _stack_mat(layer_params, "w1", jnp.bfloat16)
    w2 = _stack_mat(layer_params, "w2", jnp.bfloat16)
    bq = _stack_vec(layer_params, "bq")
    bk = _stack_vec(layer_params, "bk")
    bv = _stack_vec(layer_params, "bv")
    bo = _stack_vec(layer_params, "bo")
    b1 = _stack_vec(layer_params, "b1")
    b2 = _stack_vec(layer_params, "b2")
    ln1_a = _stack_vec(layer_params, "ln1_a")
    ln1_b = _stack_vec(layer_params, "ln1_b")
    ln2_a = _stack_vec(layer_params, "ln2_a")
    ln2_b = _stack_vec(layer_params, "ln2_b")
    fn_a = jnp.asarray(norm_a, jnp.float32).reshape(1, D)
    fn_b = jnp.asarray(norm_b, jnp.float32).reshape(1, D)

    def layer_spec(*shape):
        z = (0,) * len(shape)
        return pl.BlockSpec((1,) + tuple(shape), lambda b, l, _z=z: (l,) + _z)

    if bm == 1:
        bias_spec = pl.BlockSpec((1, S, S), lambda b, l: (0, 0, 0))     # shared, DMA'd once
    else:
        bias_spec = pl.BlockSpec((bblk, S, S), lambda b, l: (b, 0, 0))

    in_specs = [
        pl.BlockSpec((bblk, S, D), lambda b, l: (b, 0, 0)),   # x (batch-block)
        bias_spec,                                            # additive attention bias
        layer_spec(1, D), layer_spec(1, D),                   # ln1 a, b
        layer_spec(D, D), layer_spec(1, D),                   # wq, bq
        layer_spec(D, D), layer_spec(1, D),                   # wk, bk
        layer_spec(D, D), layer_spec(1, D),                   # wv, bv
        layer_spec(D, D), layer_spec(1, D),                   # wo, bo
        layer_spec(1, D), layer_spec(1, D),                   # ln2 a, b
        layer_spec(D, F), layer_spec(1, F),                   # w1, b1
        layer_spec(F, D), layer_spec(1, D),                   # w2, b2
        pl.BlockSpec((1, D), lambda b, l: (0, 0)),            # final-norm a
        pl.BlockSpec((1, D), lambda b, l: (0, 0)),            # final-norm b
    ]

    scratch_shapes = [
        pltpu.VMEM((bblk * S, D), jnp.float32),   # hidden state, resident across layers
    ]

    kernel = functools.partial(decoder_kernel, n_heads=H, mask_per_batch=(bm != 1))
    return pl.pallas_call(
        kernel,
        out_shape=jax.ShapeDtypeStruct((B, S, D), jnp.float32),
        grid=(nb, L),
        in_specs=in_specs,
        out_specs=pl.BlockSpec((bblk, S, D), lambda b, l: (b, 0, 0)),
        scratch_shapes=scratch_shapes,
        input_output_aliases={0: 0},
        compiler_params=pltpu.CompilerParams(
            dimension_semantics=("parallel", "arbitrary"),
            vmem_limit_bytes=_vmem_limit_bytes(bblk, S, D, F, bm),
        ),
    )(x, bias,
      ln1_a, ln1_b, wq, bq, wk, bk, wv, bv, wo, bo,
      ln2_a, ln2_b, w1, b1, w2, b2, fn_a, fn_b)


def init_params(key, n_layers, d_model, d_ff):
    def lin(k, fan_in, fan_out):
        kw, kb = jax.random.split(k)
        w = jax.random.normal(kw, (fan_in, fan_out), jnp.float32) * 0.02
        b = jax.random.normal(kb, (fan_out,), jnp.float32) * 0.02
        return w, b

    layers = []
    for li in range(n_layers):
        k = jax.random.fold_in(key, li)
        ks = jax.random.split(k, 6)
        wq, bq = lin(ks[0], d_model, d_model)
        wk, bk = lin(ks[1], d_model, d_model)
        wv, bv = lin(ks[2], d_model, d_model)
        wo, bo = lin(ks[3], d_model, d_model)
        w1, b1 = lin(ks[4], d_model, d_ff)
        w2, b2 = lin(ks[5], d_ff, d_model)
        layers.append(dict(
            ln1_a=jnp.ones((d_model,), jnp.float32),
            ln1_b=jnp.zeros((d_model,), jnp.float32),
            wq=wq, bq=bq, wk=wk, bk=bk, wv=wv, bv=bv, wo=wo, bo=bo,
            ln2_a=jnp.ones((d_model,), jnp.float32),
            ln2_b=jnp.zeros((d_model,), jnp.float32),
            w1=w1, b1=b1, w2=w2, b2=b2))
    norm_a = jnp.ones((d_model,), jnp.float32)
    norm_b = jnp.zeros((d_model,), jnp.float32)
    return layers, norm_a, norm_b


if __name__ == "__main__":
    B, S, D, H, F, N = 2, 16, 128, 4, 256, 2   # small but lane-dense (D multiple of 128)

    key = jax.random.PRNGKey(0)
    kx, kp = jax.random.split(key)
    x = jax.random.normal(kx, (B, S, D), jnp.float32)
    # causal (subsequent) mask, batch-invariant: passed once as (1, S, S); 1.0 = attend.
    src_mask = jnp.tril(jnp.ones((S, S), jnp.float32))[None]

    layer_params, norm_a, norm_b = init_params(kp, N, D, F)

    out = decoder_forward(x, src_mask, layer_params, norm_a, norm_b, n_heads=H)
    out = jax.block_until_ready(out)
    assert out.shape == (B, S, D)
    assert bool(jnp.isfinite(out).all())
    print("KERNEL_OK")
</pallas_src>

<mosaic_0001>
module attributes {stable_mosaic.version = 11 : i64} {
  func.func @decoder_kernel(%arg0: i32, %arg1: i32, %arg2: memref<2x16x128xf32, #tpu.memory_space<vmem>>, %arg3: memref<1x16x16xf32, #tpu.memory_space<vmem>>, %arg4: memref<1x1x128xf32, #tpu.memory_space<vmem>>, %arg5: memref<1x1x128xf32, #tpu.memory_space<vmem>>, %arg6: memref<1x128x128xbf16, #tpu.memory_space<vmem>>, %arg7: memref<1x1x128xf32, #tpu.memory_space<vmem>>, %arg8: memref<1x128x128xbf16, #tpu.memory_space<vmem>>, %arg9: memref<1x1x128xf32, #tpu.memory_space<vmem>>, %arg10: memref<1x128x128xbf16, #tpu.memory_space<vmem>>, %arg11: memref<1x1x128xf32, #tpu.memory_space<vmem>>, %arg12: memref<1x128x128xbf16, #tpu.memory_space<vmem>>, %arg13: memref<1x1x128xf32, #tpu.memory_space<vmem>>, %arg14: memref<1x1x128xf32, #tpu.memory_space<vmem>>, %arg15: memref<1x1x128xf32, #tpu.memory_space<vmem>>, %arg16: memref<1x128x256xbf16, #tpu.memory_space<vmem>>, %arg17: memref<1x1x256xf32, #tpu.memory_space<vmem>>, %arg18: memref<1x256x128xbf16, #tpu.memory_space<vmem>>, %arg19: memref<1x1x128xf32, #tpu.memory_space<vmem>>, %arg20: memref<1x128xf32, #tpu.memory_space<vmem>>, %arg21: memref<1x128xf32, #tpu.memory_space<vmem>>, %arg22: memref<2x16x128xf32, #tpu.memory_space<vmem>>, %arg23: memref<32x128xf32, #tpu.memory_space<vmem>>) attributes {dimension_semantics = [#tpu.dimension_semantics<parallel>, #tpu.dimension_semantics<arbitrary>], iteration_bounds = array<i64: 1, 2>, scalar_prefetch = 0 : i64, scratch_operands = 1 : i64, tpu.core_type = #tpu.core_type<tc>, window_params = [{transform_indices = @transform_0, window_bounds = array<i64: 2, 16, 128>}, {pipeline_mode = #tpu.pipeline_mode<synchronous>, transform_indices = @transform_1, window_bounds = array<i64: 1, 16, 16>}, {transform_indices = @transform_2, window_bounds = array<i64: 1, 1, 128>}, {transform_indices = @transform_3, window_bounds = array<i64: 1, 1, 128>}, {transform_indices = @transform_4, window_bounds = array<i64: 1, 128, 128>}, {transform_indices = @transform_5, window_bounds = array<i64: 1, 1, 128>}, {transform_indices = @transform_6, window_bounds = array<i64: 1, 128, 128>}, {transform_indices = @transform_7, window_bounds = array<i64: 1, 1, 128>}, {transform_indices = @transform_8, window_bounds = array<i64: 1, 128, 128>}, {transform_indices = @transform_9, window_bounds = array<i64: 1, 1, 128>}, {transform_indices = @transform_10, window_bounds = array<i64: 1, 128, 128>}, {transform_indices = @transform_11, window_bounds = array<i64: 1, 1, 128>}, {transform_indices = @transform_12, window_bounds = array<i64: 1, 1, 128>}, {transform_indices = @transform_13, window_bounds = array<i64: 1, 1, 128>}, {transform_indices = @transform_14, window_bounds = array<i64: 1, 128, 256>}, {transform_indices = @transform_15, window_bounds = array<i64: 1, 1, 256>}, {transform_indices = @transform_16, window_bounds = array<i64: 1, 256, 128>}, {transform_indices = @transform_17, window_bounds = array<i64: 1, 1, 128>}, {pipeline_mode = #tpu.pipeline_mode<synchronous>, transform_indices = @transform_18, window_bounds = array<i64: 1, 128>}, {pipeline_mode = #tpu.pipeline_mode<synchronous>, transform_indices = @transform_19, window_bounds = array<i64: 1, 128>}, {transform_indices = @transform_20, window_bounds = array<i64: 2, 16, 128>}]} {
    %c0_i32 = arith.constant 0 : i32
    %0 = arith.cmpi eq, %arg1, %c0_i32 : i32
    %1 = arith.extui %0 : i1 to i32
    %c0_i32_0 = arith.constant 0 : i32
    %2 = arith.cmpi ne, %1, %c0_i32_0 : i32
    scf.if %2 {
      %c0_95 = arith.constant 0 : index
      %c0_96 = arith.constant 0 : index
      %c0_97 = arith.constant 0 : index
      %210 = vector.load %arg2[%c0_95, %c0_96, %c0_97] : memref<2x16x128xf32, #tpu.memory_space<vmem>>, vector<2x16x128xf32>
      %211 = vector.shape_cast %210 : vector<2x16x128xf32> to vector<32x128xf32>
      %c0_98 = arith.constant 0 : index
      %c0_99 = arith.constant 0 : index
      %212 = vector.load %arg23[%c0_98, %c0_99] : memref<32x128xf32, #tpu.memory_space<vmem>>, vector<32x128xf32>
      tpu.vector_store %arg23[%c0_98, %c0_99], %211 {strides = array<i32>} : memref<32x128xf32, #tpu.memory_space<vmem>>, vector<32x128xf32>,
    } else {
    }
    %c0 = arith.constant 0 : index
    %c0_1 = arith.constant 0 : index
    %3 = vector.load %arg23[%c0, %c0_1] : memref<32x128xf32, #tpu.memory_space<vmem>>, vector<32x128xf32>
    %c0_2 = arith.constant 0 : index
    %c0_3 = arith.constant 0 : index
    %c0_4 = arith.constant 0 : index
    %4 = vector.load %arg3[%c0_2, %c0_3, %c0_4] : memref<1x16x16xf32, #tpu.memory_space<vmem>>, vector<1x16x16xf32>
    %c0_5 = arith.constant 0 : index
    %c0_6 = arith.constant 0 : index
    %c0_7 = arith.constant 0 : index
    %5 = vector.load %arg4[%c0_5, %c0_6, %c0_7] : memref<1x1x128xf32, #tpu.memory_space<vmem>>, vector<1x1x128xf32>
    %6 = vector.shape_cast %5 : vector<1x1x128xf32> to vector<1x128xf32>
    %c0_8 = arith.constant 0 : index
    %c0_9 = arith.constant 0 : index
    %c0_10 = arith.constant 0 : index
    %7 = vector.load %arg5[%c0_8, %c0_9, %c0_10] : memref<1x1x128xf32, #tpu.memory_space<vmem>>, vector<1x1x128xf32>
    %8 = vector.shape_cast %7 : vector<1x1x128xf32> to vector<1x128xf32>
    %cst = arith.constant dense<0.000000e+00> : vector<32xf32>
    %9 = vector.multi_reduction <add>, %3, %cst [1] : vector<32x128xf32> to vector<32xf32>
    %10 = vector.shape_cast %9 : vector<32xf32> to vector<32x1xf32>
    %cst_11 = arith.constant 1.280000e+02 : f32
    %11 = vector.broadcast %cst_11 : f32 to vector<32x1xf32>
    %12 = arith.divf %10, %11 : vector<32x1xf32>
    %13 = vector.broadcast %12 : vector<32x1xf32> to vector<32x128xf32>
    %14 = arith.subf %3, %13 : vector<32x128xf32>
    %15 = arith.mulf %14, %14 : vector<32x128xf32>
    %cst_12 = arith.constant dense<0.000000e+00> : vector<32xf32>
    %16 = vector.multi_reduction <add>, %15, %cst_12 [1] : vector<32x128xf32> to vector<32xf32>
    %17 = vector.shape_cast %16 : vector<32xf32> to vector<32x1xf32>
    %cst_13 = arith.constant 0.00787401571 : f32
    %18 = vector.broadcast %cst_13 : f32 to vector<32x1xf32>
    %19 = arith.mulf %17, %18 : vector<32x1xf32>
    %20 = math.sqrt %19 : vector<32x1xf32>
    %cst_14 = arith.constant 9.99999997E-7 : f32
    %21 = vector.broadcast %cst_14 : f32 to vector<32x1xf32>
    %22 = arith.addf %20, %21 : vector<32x1xf32>
    %cst_15 = arith.constant 1.000000e+00 : f32
    %23 = vector.broadcast %cst_15 : f32 to vector<32x1xf32>
    %24 = arith.divf %23, %22 : vector<32x1xf32>
    %25 = vector.broadcast %24 : vector<32x1xf32> to vector<32x128xf32>
    %26 = arith.mulf %14, %25 : vector<32x128xf32>
    %27 = vector.broadcast %6 : vector<1x128xf32> to vector<32x128xf32>
    %28 = arith.mulf %27, %26 : vector<32x128xf32>
    %29 = vector.broadcast %8 : vector<1x128xf32> to vector<32x128xf32>
    %30 = arith.addf %28, %29 : vector<32x128xf32>
    %31 = arith.truncf %30 : vector<32x128xf32> to vector<32x128xbf16>
    %c0_16 = arith.constant 0 : index
    %c0_17 = arith.constant 0 : index
    %c0_18 = arith.constant 0 : index
    %32 = vector.load %arg6[%c0_16, %c0_17, %c0_18] : memref<1x128x128xbf16, #tpu.memory_space<vmem>>, vector<1x128x128xbf16>
    %33 = vector.shape_cast %32 : vector<1x128x128xbf16> to vector<128x128xbf16>
    %cst_19 = arith.constant dense<0.000000e+00> : vector<32x128xf32>
    %34 = tpu.matmul %31, %33, %cst_19 {dimension_numbers = #tpu.dot_dimension_numbers<[1], [0], [0], [1], [0, 0, 1, 1], [], []>} : vector<32x128xbf16>, vector<128x128xbf16>, vector<32x128xf32> -> vector<32x128xf32>
    %c0_20 = arith.constant 0 : index
    %c0_21 = arith.constant 0 : index
    %c0_22 = arith.constant 0 : index
    %35 = vector.load %arg7[%c0_20, %c0_21, %c0_22] : memref<1x1x128xf32, #tpu.memory_space<vmem>>, vector<1x1x128xf32>
    %36 = vector.shape_cast %35 : vector<1x1x128xf32> to vector<1x128xf32>
    %37 = vector.broadcast %36 : vector<1x128xf32> to vector<32x128xf32>
    %38 = arith.addf %34, %37 : vector<32x128xf32>
    %cst_23 = arith.constant 0.176776692 : f32
    %39 = vector.broadcast %cst_23 : f32 to vector<32x128xf32>
    %40 = arith.mulf %38, %39 : vector<32x128xf32>
    %c0_24 = arith.constant 0 : index
    %c0_25 = arith.constant 0 : index
    %c0_26 = arith.constant 0 : index
    %41 = vector.load %arg8[%c0_24, %c0_25, %c0_26] : memref<1x128x128xbf16, #tpu.memory_space<vmem>>, vector<1x128x128xbf16>
    %42 = vector.shape_cast %41 : vector<1x128x128xbf16> to vector<128x128xbf16>
    %cst_27 = arith.constant dense<0.000000e+00> : vector<32x128xf32>
    %43 = tpu.matmul %31, %42, %cst_27 {dimension_numbers = #tpu.dot_dimension_numbers<[1], [0], [0], [1], [0, 0, 1, 1], [], []>} : vector<32x128xbf16>, vector<128x128xbf16>, vector<32x128xf32> -> vector<32x128xf32>
    %c0_28 = arith.constant 0 : index
    %c0_29 = arith.constant 0 : index
    %c0_30 = arith.constant 0 : index
    %44 = vector.load %arg9[%c0_28, %c0_29, %c0_30] : memref<1x1x128xf32, #tpu.memory_space<vmem>>, vector<1x1x128xf32>
    %45 = vector.shape_cast %44 : vector<1x1x128xf32> to vector<1x128xf32>
    %46 = vector.broadcast %45 : vector<1x128xf32> to vector<32x128xf32>
    %47 = arith.addf %43, %46 : vector<32x128xf32>
    %c0_31 = arith.constant 0 : index
    %c0_32 = arith.constant 0 : index
    %c0_33 = arith.constant 0 : index
    %48 = vector.load %arg10[%c0_31, %c0_32, %c0_33] : memref<1x128x128xbf16, #tpu.memory_space<vmem>>, vector<1x128x128xbf16>
    %49 = vector.shape_cast %48 : vector<1x128x128xbf16> to vector<128x128xbf16>
    %cst_34 = arith.constant dense<0.000000e+00> : vector<32x128xf32>
    %50 = tpu.matmul %31, %49, %cst_34 {dimension_numbers = #tpu.dot_dimension_numbers<[1], [0], [0], [1], [0, 0, 1, 1], [], []>} : vector<32x128xbf16>, vector<128x128xbf16>, vector<32x128xf32> -> vector<32x128xf32>
    %c0_35 = arith.constant 0 : index
    %c0_36 = arith.constant 0 : index
    %c0_37 = arith.constant 0 : index
    %51 = vector.load %arg11[%c0_35, %c0_36, %c0_37] : memref<1x1x128xf32, #tpu.memory_space<vmem>>, vector<1x1x128xf32>
    %52 = vector.shape_cast %51 : vector<1x1x128xf32> to vector<1x128xf32>
    %53 = vector.broadcast %52 : vector<1x128xf32> to vector<32x128xf32>
    %54 = arith.addf %50, %53 : vector<32x128xf32>
    %55 = arith.truncf %40 : vector<32x128xf32> to vector<32x128xbf16>
    %56 = vector.shape_cast %55 : vector<32x128xbf16> to vector<2x16x128xbf16>
    %57 = arith.truncf %47 : vector<32x128xf32> to vector<32x128xbf16>
    %58 = vector.shape_cast %57 : vector<32x128xbf16> to vector<2x16x128xbf16>
    %59 = arith.truncf %54 : vector<32x128xf32> to vector<32x128xbf16>
    %60 = vector.shape_cast %59 : vector<32x128xbf16> to vector<2x16x128xbf16>
    %c0_38 = arith.constant 0 : index
    %c0_39 = arith.constant 0 : index
    %c0_40 = arith.constant 0 : index
    %61 = vector.load %arg12[%c0_38, %c0_39, %c0_40] : memref<1x128x128xbf16, #tpu.memory_space<vmem>>, vector<1x128x128xbf16>
    %62 = vector.shape_cast %61 : vector<1x128x128xbf16> to vector<128x128xbf16>
    %cst_41 = arith.constant 0.000000e+00 : f32
    %63 = vector.broadcast %cst_41 : f32 to vector<32x128xf32>
    %64 = vector.extract_strided_slice %56 {offsets = [0, 0, 0], sizes = [2, 16, 32], strides = [1, 1, 1]} : vector<2x16x128xbf16> to vector<2x16x32xbf16>
    %65 = vector.extract_strided_slice %58 {offsets = [0, 0, 0], sizes = [2, 16, 32], strides = [1, 1, 1]} : vector<2x16x128xbf16> to vector<2x16x32xbf16>
    %66 = vector.extract_strided_slice %60 {offsets = [0, 0, 0], sizes = [2, 16, 32], strides = [1, 1, 1]} : vector<2x16x128xbf16> to vector<2x16x32xbf16>
    "tpu.trace_start"() <{level = 10 : i32, message = "bqd,bkd->bqk"}> : () -> ()
    %cst_42 = arith.constant dense<0.000000e+00> : vector<2x16x16xf32>
    %67 = tpu.matmul %64, %65, %cst_42 {dimension_numbers = #tpu.dot_dimension_numbers<[2], [2], [1], [1], [0, 0, 0, 1, 1, 1], [0], [0]>} : vector<2x16x32xbf16>, vector<2x16x32xbf16>, vector<2x16x16xf32> -> vector<2x16x16xf32>
    "tpu.trace_stop"() : () -> ()
    %68 = vector.broadcast %4 : vector<1x16x16xf32> to vector<2x16x16xf32>
    %69 = arith.addf %67, %68 : vector<2x16x16xf32>
    %cst_43 = arith.constant dense<0xFF800000> : vector<2x16xf32>
    %70 = vector.multi_reduction <maximumf>, %69, %cst_43 [2] : vector<2x16x16xf32> to vector<2x16xf32>
    %71 = vector.shape_cast %70 : vector<2x16xf32> to vector<2x16x1xf32>
    %72 = vector.broadcast %71 : vector<2x16x1xf32> to vector<2x16x16xf32>
    %73 = arith.subf %69, %72 : vector<2x16x16xf32>
    %74 = math.exp %73 : vector<2x16x16xf32>
    %cst_44 = arith.constant dense<0.000000e+00> : vector<2x16xf32>
    %75 = vector.multi_reduction <add>, %74, %cst_44 [2] : vector<2x16x16xf32> to vector<2x16xf32>
    %76 = vector.shape_cast %75 : vector<2x16xf32> to vector<2x16x1xf32>
    %77 = tpu.reciprocal %76 {approx = true} : vector<2x16x1xf32> -> vector<2x16x1xf32>
    %78 = vector.broadcast %77 : vector<2x16x1xf32> to vector<2x16x16xf32>
    %79 = arith.mulf %74, %78 : vector<2x16x16xf32>
    %80 = arith.truncf %79 : vector<2x16x16xf32> to vector<2x16x16xbf16>
    "tpu.trace_start"() <{level = 10 : i32, message = "bqk,bkd->bqd"}> : () -> ()
    %cst_45 = arith.constant dense<0.000000e+00> : vector<2x16x32xf32>
    %81 = tpu.matmul %80, %66, %cst_45 {dimension_numbers = #tpu.dot_dimension_numbers<[2], [1], [1], [2], [0, 0, 0, 1, 1, 2], [0], [0]>} : vector<2x16x16xbf16>, vector<2x16x32xbf16>, vector<2x16x32xf32> -> vector<2x16x32xf32>
    "tpu.trace_stop"() : () -> ()
    %82 = vector.shape_cast %81 : vector<2x16x32xf32> to vector<32x32xf32>
    %83 = arith.truncf %82 : vector<32x32xf32> to vector<32x32xbf16>
    %84 = vector.extract_strided_slice %62 {offsets = [0, 0], sizes = [32, 128], strides = [1, 1]} : vector<128x128xbf16> to vector<32x128xbf16>
    %cst_46 = arith.constant dense<0.000000e+00> : vector<32x128xf32>
    %85 = tpu.matmul %83, %84, %cst_46 {dimension_numbers = #tpu.dot_dimension_numbers<[1], [0], [0], [1], [0, 0, 1, 1], [], []>} : vector<32x32xbf16>, vector<32x128xbf16>, vector<32x128xf32> -> vector<32x128xf32>
    %86 = arith.addf %63, %85 : vector<32x128xf32>
    %87 = vector.extract_strided_slice %56 {offsets = [0, 0, 32], sizes = [2, 16, 32], strides = [1, 1, 1]} : vector<2x16x128xbf16> to vector<2x16x32xbf16>
    %88 = vector.extract_strided_slice %58 {offsets = [0, 0, 32], sizes = [2, 16, 32], strides = [1, 1, 1]} : vector<2x16x128xbf16> to vector<2x16x32xbf16>
    %89 = vector.extract_strided_slice %60 {offsets = [0, 0, 32], sizes = [2, 16, 32], strides = [1, 1, 1]} : vector<2x16x128xbf16> to vector<2x16x32xbf16>
    "tpu.trace_start"() <{level = 10 : i32, message = "bqd,bkd->bqk"}> : () -> ()
    %cst_47 = arith.constant dense<0.000000e+00> : vector<2x16x16xf32>
    %90 = tpu.matmul %87, %88, %cst_47 {dimension_numbers = #tpu.dot_dimension_numbers<[2], [2], [1], [1], [0, 0, 0, 1, 1, 1], [0], [0]>} : vector<2x16x32xbf16>, vector<2x16x32xbf16>, vector<2x16x16xf32> -> vector<2x16x16xf32>
    "tpu.trace_stop"() : () -> ()
    %91 = vector.broadcast %4 : vector<1x16x16xf32> to vector<2x16x16xf32>
    %92 = arith.addf %90, %91 : vector<2x16x16xf32>
    %cst_48 = arith.constant dense<0xFF800000> : vector<2x16xf32>
    %93 = vector.multi_reduction <maximumf>, %92, %cst_48 [2] : vector<2x16x16xf32> to vector<2x16xf32>
    %94 = vector.shape_cast %93 : vector<2x16xf32> to vector<2x16x1xf32>
    %95 = vector.broadcast %94 : vector<2x16x1xf32> to vector<2x16x16xf32>
    %96 = arith.subf %92, %95 : vector<2x16x16xf32>
    %97 = math.exp %96 : vector<2x16x16xf32>
    %cst_49 = arith.constant dense<0.000000e+00> : vector<2x16xf32>
    %98 = vector.multi_reduction <add>, %97, %cst_49 [2] : vector<2x16x16xf32> to vector<2x16xf32>
    %99 = vector.shape_cast %98 : vector<2x16xf32> to vector<2x16x1xf32>
    %100 = tpu.reciprocal %99 {approx = true} : vector<2x16x1xf32> -> vector<2x16x1xf32>
    %101 = vector.broadcast %100 : vector<2x16x1xf32> to vector<2x16x16xf32>
    %102 = arith.mulf %97, %101 : vector<2x16x16xf32>
    %103 = arith.truncf %102 : vector<2x16x16xf32> to vector<2x16x16xbf16>
    "tpu.trace_start"() <{level = 10 : i32, message = "bqk,bkd->bqd"}> : () -> ()
    %cst_50 = arith.constant dense<0.000000e+00> : vector<2x16x32xf32>
    %104 = tpu.matmul %103, %89, %cst_50 {dimension_numbers = #tpu.dot_dimension_numbers<[2], [1], [1], [2], [0, 0, 0, 1, 1, 2], [0], [0]>} : vector<2x16x16xbf16>, vector<2x16x32xbf16>, vector<2x16x32xf32> -> vector<2x16x32xf32>
    "tpu.trace_stop"() : () -> ()
    %105 = vector.shape_cast %104 : vector<2x16x32xf32> to vector<32x32xf32>
    %106 = arith.truncf %105 : vector<32x32xf32> to vector<32x32xbf16>
    %107 = vector.extract_strided_slice %62 {offsets = [32, 0], sizes = [32, 128], strides = [1, 1]} : vector<128x128xbf16> to vector<32x128xbf16>
    %cst_51 = arith.constant dense<0.000000e+00> : vector<32x128xf32>
    %108 = tpu.matmul %106, %107, %cst_51 {dimension_numbers = #tpu.dot_dimension_numbers<[1], [0], [0], [1], [0, 0, 1, 1], [], []>} : vector<32x32xbf16>, vector<32x128xbf16>, vector<32x128xf32> -> vector<32x128xf32>
    %109 = arith.addf %86, %108 : vector<32x128xf32>
    %110 = vector.extract_strided_slice %56 {offsets = [0, 0, 64], sizes = [2, 16, 32], strides = [1, 1, 1]} : vector<2x16x128xbf16> to vector<2x16x32xbf16>
    %111 = vector.extract_strided_slice %58 {offsets = [0, 0, 64], sizes = [2, 16, 32], strides = [1, 1, 1]} : vector<2x16x128xbf16> to vector<2x16x32xbf16>
    %112 = vector.extract_strided_slice %60 {offsets = [0, 0, 64], sizes = [2, 16, 32], strides = [1, 1, 1]} : vector<2x16x128xbf16> to vector<2x16x32xbf16>
    "tpu.trace_start"() <{level = 10 : i32, message = "bqd,bkd->bqk"}> : () -> ()
    %cst_52 = arith.constant dense<0.000000e+00> : vector<2x16x16xf32>
    %113 = tpu.matmul %110, %111, %cst_52 {dimension_numbers = #tpu.dot_dimension_numbers<[2], [2], [1], [1], [0, 0, 0, 1, 1, 1], [0], [0]>} : vector<2x16x32xbf16>, vector<2x16x32xbf16>, vector<2x16x16xf32> -> vector<2x16x16xf32>
    "tpu.trace_stop"() : () -> ()
    %114 = vector.broadcast %4 : vector<1x16x16xf32> to vector<2x16x16xf32>
    %115 = arith.addf %113, %114 : vector<2x16x16xf32>
    %cst_53 = arith.constant dense<0xFF800000> : vector<2x16xf32>
    %116 = vector.multi_reduction <maximumf>, %115, %cst_53 [2] : vector<2x16x16xf32> to vector<2x16xf32>
    %117 = vector.shape_cast %116 : vector<2x16xf32> to vector<2x16x1xf32>
    %118 = vector.broadcast %117 : vector<2x16x1xf32> to vector<2x16x16xf32>
    %119 = arith.subf %115, %118 : vector<2x16x16xf32>
    %120 = math.exp %119 : vector<2x16x16xf32>
    %cst_54 = arith.constant dense<0.000000e+00> : vector<2x16xf32>
    %121 = vector.multi_reduction <add>, %120, %cst_54 [2] : vector<2x16x16xf32> to vector<2x16xf32>
    %122 = vector.shape_cast %121 : vector<2x16xf32> to vector<2x16x1xf32>
    %123 = tpu.reciprocal %122 {approx = true} : vector<2x16x1xf32> -> vector<2x16x1xf32>
    %124 = vector.broadcast %123 : vector<2x16x1xf32> to vector<2x16x16xf32>
    %125 = arith.mulf %120, %124 : vector<2x16x16xf32>
    %126 = arith.truncf %125 : vector<2x16x16xf32> to vector<2x16x16xbf16>
    "tpu.trace_start"() <{level = 10 : i32, message = "bqk,bkd->bqd"}> : () -> ()
    %cst_55 = arith.constant dense<0.000000e+00> : vector<2x16x32xf32>
    %127 = tpu.matmul %126, %112, %cst_55 {dimension_numbers = #tpu.dot_dimension_numbers<[2], [1], [1], [2], [0, 0, 0, 1, 1, 2], [0], [0]>} : vector<2x16x16xbf16>, vector<2x16x32xbf16>, vector<2x16x32xf32> -> vector<2x16x32xf32>
    "tpu.trace_stop"() : () -> ()
    %128 = vector.shape_cast %127 : vector<2x16x32xf32> to vector<32x32xf32>
    %129 = arith.truncf %128 : vector<32x32xf32> to vector<32x32xbf16>
    %130 = vector.extract_strided_slice %62 {offsets = [64, 0], sizes = [32, 128], strides = [1, 1]} : vector<128x128xbf16> to vector<32x128xbf16>
    %cst_56 = arith.constant dense<0.000000e+00> : vector<32x128xf32>
    %131 = tpu.matmul %129, %130, %cst_56 {dimension_numbers = #tpu.dot_dimension_numbers<[1], [0], [0], [1], [0, 0, 1, 1], [], []>} : vector<32x32xbf16>, vector<32x128xbf16>, vector<32x128xf32> -> vector<32x128xf32>
    %132 = arith.addf %109, %131 : vector<32x128xf32>
    %133 = vector.extract_strided_slice %56 {offsets = [0, 0, 96], sizes = [2, 16, 32], strides = [1, 1, 1]} : vector<2x16x128xbf16> to vector<2x16x32xbf16>
    %134 = vector.extract_strided_slice %58 {offsets = [0, 0, 96], sizes = [2, 16, 32], strides = [1, 1, 1]} : vector<2x16x128xbf16> to vector<2x16x32xbf16>
    %135 = vector.extract_strided_slice %60 {offsets = [0, 0, 96], sizes = [2, 16, 32], strides = [1, 1, 1]} : vector<2x16x128xbf16> to vector<2x16x32xbf16>
    "tpu.trace_start"() <{level = 10 : i32, message = "bqd,bkd->bqk"}> : () -> ()
    %cst_57 = arith.constant dense<0.000000e+00> : vector<2x16x16xf32>
    %136 = tpu.matmul %133, %134, %cst_57 {dimension_numbers = #tpu.dot_dimension_numbers<[2], [2], [1], [1], [0, 0, 0, 1, 1, 1], [0], [0]>} : vector<2x16x32xbf16>, vector<2x16x32xbf16>, vector<2x16x16xf32> -> vector<2x16x16xf32>
    "tpu.trace_stop"() : () -> ()
    %137 = vector.broadcast %4 : vector<1x16x16xf32> to vector<2x16x16xf32>
    %138 = arith.addf %136, %137 : vector<2x16x16xf32>
    %cst_58 = arith.constant dense<0xFF800000> : vector<2x16xf32>
    %139 = vector.multi_reduction <maximumf>, %138, %cst_58 [2] : vector<2x16x16xf32> to vector<2x16xf32>
    %140 = vector.shape_cast %139 : vector<2x16xf32> to vector<2x16x1xf32>
    %141 = vector.broadcast %140 : vector<2x16x1xf32> to vector<2x16x16xf32>
    %142 = arith.subf %138, %141 : vector<2x16x16xf32>
    %143 = math.exp %142 : vector<2x16x16xf32>
    %cst_59 = arith.constant dense<0.000000e+00> : vector<2x16xf32>
    %144 = vector.multi_reduction <add>, %143, %cst_59 [2] : vector<2x16x16xf32> to vector<2x16xf32>
    %145 = vector.shape_cast %144 : vector<2x16xf32> to vector<2x16x1xf32>
    %146 = tpu.reciprocal %145 {approx = true} : vector<2x16x1xf32> -> vector<2x16x1xf32>
    %147 = vector.broadcast %146 : vector<2x16x1xf32> to vector<2x16x16xf32>
    %148 = arith.mulf %143, %147 : vector<2x16x16xf32>
    %149 = arith.truncf %148 : vector<2x16x16xf32> to vector<2x16x16xbf16>
    "tpu.trace_start"() <{level = 10 : i32, message = "bqk,bkd->bqd"}> : () -> ()
    %cst_60 = arith.constant dense<0.000000e+00> : vector<2x16x32xf32>
    %150 = tpu.matmul %149, %135, %cst_60 {dimension_numbers = #tpu.dot_dimension_numbers<[2], [1], [1], [2], [0, 0, 0, 1, 1, 2], [0], [0]>} : vector<2x16x16xbf16>, vector<2x16x32xbf16>, vector<2x16x32xf32> -> vector<2x16x32xf32>
    "tpu.trace_stop"() : () -> ()
    %151 = vector.shape_cast %150 : vector<2x16x32xf32> to vector<32x32xf32>
    %152 = arith.truncf %151 : vector<32x32xf32> to vector<32x32xbf16>
    %153 = vector.extract_strided_slice %62 {offsets = [96, 0], sizes = [32, 128], strides = [1, 1]} : vector<128x128xbf16> to vector<32x128xbf16>
    %cst_61 = arith.constant dense<0.000000e+00> : vector<32x128xf32>
    %154 = tpu.matmul %152, %153, %cst_61 {dimension_numbers = #tpu.dot_dimension_numbers<[1], [0], [0], [1], [0, 0, 1, 1], [], []>} : vector<32x32xbf16>, vector<32x128xbf16>, vector<32x128xf32> -> vector<32x128xf32>
    %155 = arith.addf %132, %154 : vector<32x128xf32>
    %c0_62 = arith.constant 0 : index
    %c0_63 = arith.constant 0 : index
    %c0_64 = arith.constant 0 : index
    %156 = vector.load %arg13[%c0_62, %c0_63, %c0_64] : memref<1x1x128xf32, #tpu.memory_space<vmem>>, vector<1x1x128xf32>
    %157 = vector.shape_cast %156 : vector<1x1x128xf32> to vector<1x128xf32>
    %158 = vector.broadcast %157 : vector<1x128xf32> to vector<32x128xf32>
    %159 = arith.addf %155, %158 : vector<32x128xf32>
    %160 = arith.addf %3, %159 : vector<32x128xf32>
    %c0_65 = arith.constant 0 : index
    %c0_66 = arith.constant 0 : index
    %c0_67 = arith.constant 0 : index
    %161 = vector.load %arg14[%c0_65, %c0_66, %c0_67] : memref<1x1x128xf32, #tpu.memory_space<vmem>>, vector<1x1x128xf32>
    %162 = vector.shape_cast %161 : vector<1x1x128xf32> to vector<1x128xf32>
    %c0_68 = arith.constant 0 : index
    %c0_69 = arith.constant 0 : index
    %c0_70 = arith.constant 0 : index
    %163 = vector.load %arg15[%c0_68, %c0_69, %c0_70] : memref<1x1x128xf32, #tpu.memory_space<vmem>>, vector<1x1x128xf32>
    %164 = vector.shape_cast %163 : vector<1x1x128xf32> to vector<1x128xf32>
    %cst_71 = arith.constant dense<0.000000e+00> : vector<32xf32>
    %165 = vector.multi_reduction <add>, %160, %cst_71 [1] : vector<32x128xf32> to vector<32xf32>
    %166 = vector.shape_cast %165 : vector<32xf32> to vector<32x1xf32>
    %cst_72 = arith.constant 1.280000e+02 : f32
    %167 = vector.broadcast %cst_72 : f32 to vector<32x1xf32>
    %168 = arith.divf %166, %167 : vector<32x1xf32>
    %169 = vector.broadcast %168 : vector<32x1xf32> to vector<32x128xf32>
    %170 = arith.subf %160, %169 : vector<32x128xf32>
    %171 = arith.mulf %170, %170 : vector<32x128xf32>
    %cst_73 = arith.constant dense<0.000000e+00> : vector<32xf32>
    %172 = vector.multi_reduction <add>, %171, %cst_73 [1] : vector<32x128xf32> to vector<32xf32>
    %173 = vector.shape_cast %172 : vector<32xf32> to vector<32x1xf32>
    %cst_74 = arith.constant 0.00787401571 : f32
    %174 = vector.broadcast %cst_74 : f32 to vector<32x1xf32>
    %175 = arith.mulf %173, %174 : vector<32x1xf32>
    %176 = math.sqrt %175 : vector<32x1xf32>
    %cst_75 = arith.constant 9.99999997E-7 : f32
    %177 = vector.broadcast %cst_75 : f32 to vector<32x1xf32>
    %178 = arith.addf %176, %177 : vector<32x1xf32>
    %cst_76 = arith.constant 1.000000e+00 : f32
    %179 = vector.broadcast %cst_76 : f32 to vector<32x1xf32>
    %180 = arith.divf %179, %178 : vector<32x1xf32>
    %181 = vector.broadcast %180 : vector<32x1xf32> to vector<32x128xf32>
    %182 = arith.mulf %170, %181 : vector<32x128xf32>
    %183 = vector.broadcast %162 : vector<1x128xf32> to vector<32x128xf32>
    %184 = arith.mulf %183, %182 : vector<32x128xf32>
    %185 = vector.broadcast %164 : vector<1x128xf32> to vector<32x128xf32>
    %186 = arith.addf %184, %185 : vector<32x128xf32>
    %187 = arith.truncf %186 : vector<32x128xf32> to vector<32x128xbf16>
    %c0_77 = arith.constant 0 : index
    %c0_78 = arith.constant 0 : index
    %c0_79 = arith.constant 0 : index
    %188 = vector.load %arg16[%c0_77, %c0_78, %c0_79] : memref<1x128x256xbf16, #tpu.memory_space<vmem>>, vector<1x128x256xbf16>
    %189 = vector.shape_cast %188 : vector<1x128x256xbf16> to vector<128x256xbf16>
    %cst_80 = arith.constant dense<0.000000e+00> : vector<32x256xf32>
    %190 = tpu.matmul %187, %189, %cst_80 {dimension_numbers = #tpu.dot_dimension_numbers<[1], [0], [0], [1], [0, 0, 1, 1], [], []>} : vector<32x128xbf16>, vector<128x256xbf16>, vector<32x256xf32> -> vector<32x256xf32>
    %c0_81 = arith.constant 0 : index
    %c0_82 = arith.constant 0 : index
    %c0_83 = arith.constant 0 : index
    %191 = vector.load %arg17[%c0_81, %c0_82, %c0_83] : memref<1x1x256xf32, #tpu.memory_space<vmem>>, vector<1x1x256xf32>
    %192 = vector.shape_cast %191 : vector<1x1x256xf32> to vector<1x256xf32>
    %193 = vector.broadcast %192 : vector<1x256xf32> to vector<32x256xf32>
    %194 = arith.addf %190, %193 : vector<32x256xf32>
    %cst_84 = arith.constant 0.000000e+00 : f32
    %195 = vector.broadcast %cst_84 : f32 to vector<32x256xf32>
    %196 = arith.maximumf %194, %195 : vector<32x256xf32>
    %197 = arith.truncf %196 : vector<32x256xf32> to vector<32x256xbf16>
    %c0_85 = arith.constant 0 : index
    %c0_86 = arith.constant 0 : index
    %c0_87 = arith.constant 0 : index
    %198 = vector.load %arg18[%c0_85, %c0_86, %c0_87] : memref<1x256x128xbf16, #tpu.memory_space<vmem>>, vector<1x256x128xbf16>
    %199 = vector.shape_cast %198 : vector<1x256x128xbf16> to vector<256x128xbf16>
    %cst_88 = arith.constant dense<0.000000e+00> : vector<32x128xf32>
    %200 = tpu.matmul %197, %199, %cst_88 {dimension_numbers = #tpu.dot_dimension_numbers<[1], [0], [0], [1], [0, 0, 1, 1], [], []>} : vector<32x256xbf16>, vector<256x128xbf16>, vector<32x128xf32> -> vector<32x128xf32>
    %c0_89 = arith.constant 0 : index
    %c0_90 = arith.constant 0 : index
    %c0_91 = arith.constant 0 : index
    %201 = vector.load %arg19[%c0_89, %c0_90, %c0_91] : memref<1x1x128xf32, #tpu.memory_space<vmem>>, vector<1x1x128xf32>
    %202 = vector.shape_cast %201 : vector<1x1x128xf32> to vector<1x128xf32>
    %203 = vector.broadcast %202 : vector<1x128xf32> to vector<32x128xf32>
    %204 = arith.addf %200, %203 : vector<32x128xf32>
    %205 = arith.addf %160, %204 : vector<32x128xf32>
    %c0_92 = arith.constant 0 : index
    %c0_93 = arith.constant 0 : index
    %206 = vector.load %arg23[%c0_92, %c0_93] : memref<32x128xf32, #tpu.memory_space<vmem>>, vector<32x128xf32>
    tpu.vector_store %arg23[%c0_92, %c0_93], %205 {strides = array<i32>} : memref<32x128xf32, #tpu.memory_space<vmem>>, vector<32x128xf32>,
    %c1_i32 = arith.constant 1 : i32
    %207 = arith.cmpi eq, %arg1, %c1_i32 : i32
    %208 = arith.extui %207 : i1 to i32
    %c0_i32_94 = arith.constant 0 : i32
    %209 = arith.cmpi ne, %208, %c0_i32_94 : i32
    scf.if %209 {
      %c0_95 = arith.constant 0 : index
      %c0_96 = arith.constant 0 : index
      %210 = vector.load %arg20[%c0_95, %c0_96] : memref<1x128xf32, #tpu.memory_space<vmem>>, vector<1x128xf32>
      %c0_97 = arith.constant 0 : index
      %c0_98 = arith.constant 0 : index
      %211 = vector.load %arg21[%c0_97, %c0_98] : memref<1x128xf32, #tpu.memory_space<vmem>>, vector<1x128xf32>
      %cst_99 = arith.constant dense<0.000000e+00> : vector<32xf32>
      %212 = vector.multi_reduction <add>, %205, %cst_99 [1] : vector<32x128xf32> to vector<32xf32>
      %213 = vector.shape_cast %212 : vector<32xf32> to vector<32x1xf32>
      %cst_100 = arith.constant 1.280000e+02 : f32
      %214 = vector.broadcast %cst_100 : f32 to vector<32x1xf32>
      %215 = arith.divf %213, %214 : vector<32x1xf32>
      %216 = vector.broadcast %215 : vector<32x1xf32> to vector<32x128xf32>
      %217 = arith.subf %205, %216 : vector<32x128xf32>
      %218 = arith.mulf %217, %217 : vector<32x128xf32>
      %cst_101 = arith.constant dense<0.000000e+00> : vector<32xf32>
      %219 = vector.multi_reduction <add>, %218, %cst_101 [1] : vector<32x128xf32> to vector<32xf32>
      %220 = vector.shape_cast %219 : vector<32xf32> to vector<32x1xf32>
      %cst_102 = arith.constant 0.00787401571 : f32
      %221 = vector.broadcast %cst_102 : f32 to vector<32x1xf32>
      %222 = arith.mulf %220, %221 : vector<32x1xf32>
      %223 = math.sqrt %222 : vector<32x1xf32>
      %cst_103 = arith.constant 9.99999997E-7 : f32
      %224 = vector.broadcast %cst_103 : f32 to vector<32x1xf32>
      %225 = arith.addf %223, %224 : vector<32x1xf32>
      %cst_104 = arith.constant 1.000000e+00 : f32
      %226 = vector.broadcast %cst_104 : f32 to vector<32x1xf32>
      %227 = arith.divf %226, %225 : vector<32x1xf32>
      %228 = vector.broadcast %227 : vector<32x1xf32> to vector<32x128xf32>
      %229 = arith.mulf %217, %228 : vector<32x128xf32>
      %230 = vector.broadcast %210 : vector<1x128xf32> to vector<32x128xf32>
      %231 = arith.mulf %230, %229 : vector<32x128xf32>
      %232 = vector.broadcast %211 : vector<1x128xf32> to vector<32x128xf32>
      %233 = arith.addf %231, %232 : vector<32x128xf32>
      %234 = vector.shape_cast %233 : vector<32x128xf32> to vector<2x16x128xf32>
      %c0_105 = arith.constant 0 : index
      %c0_106 = arith.constant 0 : index
      %c0_107 = arith.constant 0 : index
      %235 = vector.load %arg22[%c0_105, %c0_106, %c0_107] : memref<2x16x128xf32, #tpu.memory_space<vmem>>, vector<2x16x128xf32>
      tpu.vector_store %arg22[%c0_105, %c0_106, %c0_107], %234 {strides = array<i32>} : memref<2x16x128xf32, #tpu.memory_space<vmem>>, vector<2x16x128xf32>,
    } else {
    }
    return
  }
  func.func @transform_0(%arg0: i32, %arg1: i32) -> (i32, i32, i32) {
    %c0_i32 = arith.constant 0 : i32
    %c0_i32_0 = arith.constant 0 : i32
    %c0_i32_1 = arith.constant 0 : i32
    return %arg0, %c0_i32, %c0_i32_0 : i32, i32, i32
  }
  func.func @transform_1(%arg0: i32, %arg1: i32) -> (i32, i32, i32) {
    %c0_i32 = arith.constant 0 : i32
    %c0_i32_0 = arith.constant 0 : i32
    %c0_i32_1 = arith.constant 0 : i32
    %c0_i32_2 = arith.constant 0 : i32
    return %c0_i32, %c0_i32_0, %c0_i32_1 : i32, i32, i32
  }
  func.func @transform_2(%arg0: i32, %arg1: i32) -> (i32, i32, i32) {
    %c0_i32 = arith.constant 0 : i32
    %c0_i32_0 = arith.constant 0 : i32
    %c0_i32_1 = arith.constant 0 : i32
    return %arg1, %c0_i32, %c0_i32_0 : i32, i32, i32
  }
  func.func @transform_3(%arg0: i32, %arg1: i32) -> (i32, i32, i32) {
    %c0_i32 = arith.constant 0 : i32
    %c0_i32_0 = arith.constant 0 : i32
    %c0_i32_1 = arith.constant 0 : i32
    return %arg1, %c0_i32, %c0_i32_0 : i32, i32, i32
  }
  func.func @transform_4(%arg0: i32, %arg1: i32) -> (i32, i32, i32) {
    %c0_i32 = arith.constant 0 : i32
    %c0_i32_0 = arith.constant 0 : i32
    %c0_i32_1 = arith.constant 0 : i32
    return %arg1, %c0_i32, %c0_i32_0 : i32, i32, i32
  }
  func.func @transform_5(%arg0: i32, %arg1: i32) -> (i32, i32, i32) {
    %c0_i32 = arith.constant 0 : i32
    %c0_i32_0 = arith.constant 0 : i32
    %c0_i32_1 = arith.constant 0 : i32
    return %arg1, %c0_i32, %c0_i32_0 : i32, i32, i32
  }
  func.func @transform_6(%arg0: i32, %arg1: i32) -> (i32, i32, i32) {
    %c0_i32 = arith.constant 0 : i32
    %c0_i32_0 = arith.constant 0 : i32
    %c0_i32_1 = arith.constant 0 : i32
    return %arg1, %c0_i32, %c0_i32_0 : i32, i32, i32
  }
  func.func @transform_7(%arg0: i32, %arg1: i32) -> (i32, i32, i32) {
    %c0_i32 = arith.constant 0 : i32
    %c0_i32_0 = arith.constant 0 : i32
    %c0_i32_1 = arith.constant 0 : i32
    return %arg1, %c0_i32, %c0_i32_0 : i32, i32, i32
  }
  func.func @transform_8(%arg0: i32, %arg1: i32) -> (i32, i32, i32) {
    %c0_i32 = arith.constant 0 : i32
    %c0_i32_0 = arith.constant 0 : i32
    %c0_i32_1 = arith.constant 0 : i32
    return %arg1, %c0_i32, %c0_i32_0 : i32, i32, i32
  }
  func.func @transform_9(%arg0: i32, %arg1: i32) -> (i32, i32, i32) {
    %c0_i32 = arith.constant 0 : i32
    %c0_i32_0 = arith.constant 0 : i32
    %c0_i32_1 = arith.constant 0 : i32
    return %arg1, %c0_i32, %c0_i32_0 : i32, i32, i32
  }
  func.func @transform_10(%arg0: i32, %arg1: i32) -> (i32, i32, i32) {
    %c0_i32 = arith.constant 0 : i32
    %c0_i32_0 = arith.constant 0 : i32
    %c0_i32_1 = arith.constant 0 : i32
    return %arg1, %c0_i32, %c0_i32_0 : i32, i32, i32
  }
  func.func @transform_11(%arg0: i32, %arg1: i32) -> (i32, i32, i32) {
    %c0_i32 = arith.constant 0 : i32
    %c0_i32_0 = arith.constant 0 : i32
    %c0_i32_1 = arith.constant 0 : i32
    return %arg1, %c0_i32, %c0_i32_0 : i32, i32, i32
  }
  func.func @transform_12(%arg0: i32, %arg1: i32) -> (i32, i32, i32) {
    %c0_i32 = arith.constant 0 : i32
    %c0_i32_0 = arith.constant 0 : i32
    %c0_i32_1 = arith.constant 0 : i32
    return %arg1, %c0_i32, %c0_i32_0 : i32, i32, i32
  }
  func.func @transform_13(%arg0: i32, %arg1: i32) -> (i32, i32, i32) {
    %c0_i32 = arith.constant 0 : i32
    %c0_i32_0 = arith.constant 0 : i32
    %c0_i32_1 = arith.constant 0 : i32
    return %arg1, %c0_i32, %c0_i32_0 : i32, i32, i32
  }
  func.func @transform_14(%arg0: i32, %arg1: i32) -> (i32, i32, i32) {
    %c0_i32 = arith.constant 0 : i32
    %c0_i32_0 = arith.constant 0 : i32
    %c0_i32_1 = arith.constant 0 : i32
    return %arg1, %c0_i32, %c0_i32_0 : i32, i32, i32
  }
  func.func @transform_15(%arg0: i32, %arg1: i32) -> (i32, i32, i32) {
    %c0_i32 = arith.constant 0 : i32
    %c0_i32_0 = arith.constant 0 : i32
    %c0_i32_1 = arith.constant 0 : i32
    return %arg1, %c0_i32, %c0_i32_0 : i32, i32, i32
  }
  func.func @transform_16(%arg0: i32, %arg1: i32) -> (i32, i32, i32) {
    %c0_i32 = arith.constant 0 : i32
    %c0_i32_0 = arith.constant 0 : i32
    %c0_i32_1 = arith.constant 0 : i32
    return %arg1, %c0_i32, %c0_i32_0 : i32, i32, i32
  }
  func.func @transform_17(%arg0: i32, %arg1: i32) -> (i32, i32, i32) {
    %c0_i32 = arith.constant 0 : i32
    %c0_i32_0 = arith.constant 0 : i32
    %c0_i32_1 = arith.constant 0 : i32
    return %arg1, %c0_i32, %c0_i32_0 : i32, i32, i32
  }
  func.func @transform_18(%arg0: i32, %arg1: i32) -> (i32, i32) {
    %c0_i32 = arith.constant 0 : i32
    %c0_i32_0 = arith.constant 0 : i32
    %c0_i32_1 = arith.constant 0 : i32
    return %c0_i32, %c0_i32_0 : i32, i32
  }
  func.func @transform_19(%arg0: i32, %arg1: i32) -> (i32, i32) {
    %c0_i32 = arith.constant 0 : i32
    %c0_i32_0 = arith.constant 0 : i32
    %c0_i32_1 = arith.constant 0 : i32
    return %c0_i32, %c0_i32_0 : i32, i32
  }
  func.func @transform_20(%arg0: i32, %arg1: i32) -> (i32, i32, i32) {
    %c0_i32 = arith.constant 0 : i32
    %c0_i32_0 = arith.constant 0 : i32
    %c0_i32_1 = arith.constant 0 : i32
    return %arg0, %c0_i32, %c0_i32_0 : i32, i32, i32
  }
}

</mosaic_0001>

<llo_original>
// kernel: tpu_custom_call.1
$region0: #{tpu_custom_call.1}
  #allocation0 [shape = 'u32[]', space=smem, size = 0x4, offset = 0x4, fixed_abs, tag = 'smem constant byte address 0x4 - core index']
  #allocation1 [shape = 'u32[144,128]{1,0:T(1,128)}', space=vmem, size = 0x12000, scoped, tag = 'internal scratch']
  #allocation2 [shape = 'f32[32,128]{1,0:T(8,128)}', space=vmem, size = 0x4000, scoped, tag = 'scratch operand']
  %s0 = inlined_call_operand.hbm [shape: f32[2,16,128], index: 0, kind: input, shape index: {}, may-alias: {0,20}]
  %s1 = inlined_call_operand.vmem [shape: f32[1,16,16], index: 1, kind: input, shape index: {}]
  %s2 = inlined_call_operand.vmem [shape: f32[2,1,128], index: 2, kind: input, shape index: {}]
  %s3 = inlined_call_operand.vmem [shape: f32[2,1,128], index: 3, kind: input, shape index: {}]
  %s4 = inlined_call_operand.hbm [shape: bf16[2,128,128], index: 4, kind: input, shape index: {}]
  %s5 = inlined_call_operand.vmem [shape: f32[2,1,128], index: 5, kind: input, shape index: {}]
  %s6 = inlined_call_operand.hbm [shape: bf16[2,128,128], index: 6, kind: input, shape index: {}]
  %s7 = inlined_call_operand.vmem [shape: f32[2,1,128], index: 7, kind: input, shape index: {}]
  %s8 = inlined_call_operand.hbm [shape: bf16[2,128,128], index: 8, kind: input, shape index: {}]
  %s9 = inlined_call_operand.vmem [shape: f32[2,1,128], index: 9, kind: input, shape index: {}]
  %s10 = inlined_call_operand.hbm [shape: bf16[2,128,128], index: 10, kind: input, shape index: {}]
  %s11 = inlined_call_operand.vmem [shape: f32[2,1,128], index: 11, kind: input, shape index: {}]
  %s12 = inlined_call_operand.vmem [shape: f32[2,1,128], index: 12, kind: input, shape index: {}]
  %s13 = inlined_call_operand.vmem [shape: f32[2,1,128], index: 13, kind: input, shape index: {}]
  %s14 = inlined_call_operand.hbm [shape: bf16[2,128,256], index: 14, kind: input, shape index: {}]
  %s15 = inlined_call_operand.vmem [shape: f32[2,1,256], index: 15, kind: input, shape index: {}]
  %s16 = inlined_call_operand.hbm [shape: bf16[2,256,128], index: 16, kind: input, shape index: {}]
  %s17 = inlined_call_operand.vmem [shape: f32[2,1,128], index: 17, kind: input, shape index: {}]
  %s18 = inlined_call_operand.vmem [shape: f32[1,128], index: 18, kind: input, shape index: {}]
  %s19 = inlined_call_operand.vmem [shape: f32[1,128], index: 19, kind: input, shape index: {}]
  %s20 = inlined_call_operand.hbm [shape: f32[2,16,128], index: 20, kind: output, shape index: {}, may-alias: {0,20}]
  %s21 = sld [smem:[#allocation0]]
  $region149: #{tpu_custom_call.1} parent=0
    _
  %s23 = ssub.s32 1, %s21
  %s24 = scalar_select 0, %s23, %s21
  $region1: #{tpu_custom_call.1} parent=0
    #allocation3 [shape = 'u8[16384]{0}', space=vmem, size = 0x4000, scoped, tag = 'input window, operand 0, single buffered']
    #allocation4 [shape = 's32[2]{0}', space=sflag, size = 0x8, scoped, tag = 'scoped memory for tpu_custom_call.1']
    #allocation5 [shape = 's32[2]{0}', space=sflag, size = 0x8, scoped, tag = 'scoped memory for tpu_custom_call.1']
    #allocation6 [shape = 'u8[65536]{0}', space=vmem, size = 0x10000, scoped, tag = 'input window, operand 4']
    #allocation7 [shape = 's32[2]{0}', space=sflag, size = 0x8, scoped, tag = 'scoped memory for tpu_custom_call.1']
    #allocation8 [shape = 'u8[65536]{0}', space=vmem, size = 0x10000, scoped, tag = 'input window, operand 6']
    #allocation9 [shape = 'u8[65536]{0}', space=vmem, size = 0x10000, scoped, tag = 'input window, operand 8']
    #allocation10 [shape = 's32[2]{0}', space=sflag, size = 0x8, scoped, tag = 'scoped memory for tpu_custom_call.1']
    #allocation11 [shape = 'u8[65536]{0}', space=vmem, size = 0x10000, scoped, tag = 'input window, operand 10']
    #allocation12 [shape = 'u8[131072]{0}', space=vmem, size = 0x20000, scoped, tag = 'input window, operand 14']
    #allocation13 [shape = 's32[2]{0}', space=sflag, size = 0x8, scoped, tag = 'scoped memory for tpu_custom_call.1']
    #allocation14 [shape = 'u8[131072]{0}', space=vmem, size = 0x20000, scoped, tag = 'input window, operand 16']
    #allocation15 [shape = 'u8[16384]{0}', space=vmem, size = 0x4000, scoped, tag = 'output window, operand 0, single buffered']
    %25 = vsyncpa [#allocation4], 0
    %26 = vsyncpa [#allocation7], 0
    %s27 = scalar_lea.sflag [#allocation7], 1
    %28 = vsyncpa %s27, 0
    %29 = vsyncpa [#allocation10], 0
    %s30 = scalar_lea.sflag [#allocation10], 1
    %31 = vsyncpa %s30, 0
    %32 = vsyncpa [#allocation13], 0
    %s33 = scalar_lea.sflag [#allocation13], 1
    %34 = vsyncpa %s33, 0
    %35 = vsyncpa [#allocation5], 0
    loop: start=0, step=1, limit=4
    $region2: #{tpu_custom_call.1} parent=1 // loop_pre_header
      _
    $region3: #{tpu_custom_call.1} parent=1 // loop_header
      %s37 = sphi 0, %s41
      %p38 = scmp.ge.s32.totalorder %s37, 4
      %s44 = sphi 0, %s56
      %s45 = sphi 0, %s52
      %s46 = sphi 0, %s44
      %s47 = sphi 0, %s45
      %s48 = sphi 0, %s46
      %s49 = sphi 0, %s47
      %s59 = sphi 0, %s61
      %s62 = sphi 0, %s59
      %s63 = sphi 0, %s62
      %s79 = sphi 0, %s63
      %s83 = sphi 0, %s83
      %s85 = sphi 0, %s83
      %s86 = sphi 0, %s85
      %s100 = sphi 0, %s86
      %s106 = sphi 0, %s108
      %s109 = sphi 0, %s106
      %s110 = sphi 0, %s109
      %s126 = sphi 0, %s110
      %s132 = sphi 0, %s134
      %s135 = sphi 0, %s132
      %s136 = sphi 0, %s135
      %s152 = sphi 0, %s136
      %s158 = sphi 0, %s160
      %s161 = sphi 0, %s158
      %s162 = sphi 0, %s161
      %s178 = sphi 0, %s162
      %s184 = sphi 0, %s186
      %s187 = sphi 0, %s184
      %s188 = sphi 0, %s187
      %s204 = sphi 0, %s188
      %s210 = sphi 0, %s212
      %s213 = sphi 0, %s210
      %s214 = sphi 0, %s213
      %s230 = sphi 0, %s214
      %s236 = sphi 0, %s238
      %s239 = sphi 0, %s236
      %s240 = sphi 0, %s239
      %s256 = sphi 0, %s240
      %s262 = sphi 0, %s264
      %s265 = sphi 0, %s262
      %s266 = sphi 0, %s265
      %s282 = sphi 0, %s266
      %s288 = sphi 0, %s290
      %s291 = sphi 0, %s288
      %s292 = sphi 0, %s291
      %s308 = sphi 0, %s292
      %s314 = sphi 0, %s316
      %s317 = sphi 0, %s314
      %s318 = sphi 0, %s317
      %s334 = sphi 0, %s318
      %s340 = sphi 0, %s342
      %s343 = sphi 0, %s340
      %s344 = sphi 0, %s343
      %s360 = sphi 0, %s344
      %s366 = sphi 0, %s368
      %s369 = sphi 0, %s366
      %s370 = sphi 0, %s369
      %s386 = sphi 0, %s370
      %s392 = sphi 0, %s394
      %s395 = sphi 0, %s392
      %s396 = sphi 0, %s395
      %s412 = sphi 0, %s396
      %s418 = sphi 0, %s420
      %s421 = sphi 0, %s418
      %s422 = sphi 0, %s421
      %s438 = sphi 0, %s422
      %s444 = sphi 0, %s446
      %s447 = sphi 0, %s444
      %s448 = sphi 0, %s447
      %s464 = sphi 0, %s448
      %s470 = sphi 0, %s472
      %s473 = sphi 0, %s470
      %s474 = sphi 0, %s473
      %s490 = sphi 0, %s474
      %s496 = sphi 0, %s498
      %s499 = sphi 0, %s496
      %s500 = sphi 0, %s499
      %s516 = sphi 0, %s500
      %s520 = sphi 0, %s520
      %s522 = sphi 0, %s520
      %s523 = sphi 0, %s522
      %s537 = sphi 0, %s523
      %s541 = sphi 0, %s541
      %s543 = sphi 0, %s541
      %s544 = sphi 0, %s543
      %s558 = sphi 0, %s544
      %s564 = sphi 0, %s566
      %s567 = sphi 0, %s564
      %s568 = sphi 0, %s567
      %s584 = sphi 0, %s568
    $region4: #{tpu_custom_call.1} parent=1 // loop_header_branch
      %40 = sbr.rel (%p38) target = $region8
    $region5: #{tpu_custom_call.1} parent=1 // loop_body
      %s42 = ssub.s32 %s37, 1
      %s43 = ssub.s32 %s37, 2
      %s50 = sadd.s32 1, %s45
      %p51 = scmp.ge.s32.totalorder %s50, 2
      %s52 = scalar_select %p51, 0, %s50
      %s53 = sadd.s32 1, %s44
      %s54 = scalar_select %p51, %s53, %s44
      %p55 = scmp.ge.s32.totalorder %s54, 1
      %s56 = scalar_select %p55, 0, %s54
      %s57 = ssub.s32 %s44, %s56
      %p58 = scmp.eq.s32.totalorder %s57, 0
      %s60 = sadd.s32 %s59, 1
      %s61 = scalar_select %p58, %s59, %s60
      %p64 = pneg %p58
      %p65 = scmp.eq.s32.totalorder %s37, 1
      %p66 = por %p64, %p65
      %p67 = scmp.ne.s32.totalorder %s59, %s62
      %p68 = scmp.eq.s32.totalorder %s37, 0
      %p69 = por %p67, %p68
      %p70 = scmp.ne.s32.totalorder %s59, %s62
      %p71 = scmp.eq.s32.totalorder %s42, 1
      %p72 = por %p70, %p71
      %p73 = scmp.ne.s32.totalorder %s62, %s63
      %p74 = scmp.eq.s32.totalorder %s42, 0
      %p75 = por %p73, %p74
      %p76 = scmp.ne.s32.totalorder %s62, %s63
      %p77 = scmp.eq.s32.totalorder %s43, 1
      %p78 = por %p76, %p77
      %p80 = scmp.ne.s32.totalorder %s63, %s79
      %p81 = scmp.eq.s32.totalorder %s43, 0
      %p82 = por %p80, %p81
      %s84 = sadd.s32 %s83, 1
      %p87 = scmp.eq.s32.totalorder %s37, 1
      %p88 = scmp.ne.s32.totalorder %s83, %s85
      %p89 = scmp.eq.s32.totalorder %s37, 0
      %p90 = por %p88, %p89
      %p91 = scmp.ne.s32.totalorder %s83, %s85
      %p92 = scmp.eq.s32.totalorder %s42, 1
      %p93 = por %p91, %p92
      %p94 = scmp.ne.s32.totalorder %s85, %s86
      %p95 = scmp.eq.s32.totalorder %s42, 0
      %p96 = por %p94, %p95
      %p97 = scmp.ne.s32.totalorder %s85, %s86
      %p98 = scmp.eq.s32.totalorder %s43, 1
      %p99 = por %p97, %p98
      %p101 = scmp.ne.s32.totalorder %s86, %s100
      %p102 = scmp.eq.s32.totalorder %s43, 0
      %p103 = por %p101, %p102
      %s104 = ssub.s32 %s45, %s52
      %p105 = scmp.eq.s32.totalorder %s104, 0
      %s107 = sadd.s32 %s106, 1
      %s108 = scalar_select %p105, %s106, %s107
      %p111 = pneg %p105
      %p112 = scmp.eq.s32.totalorder %s37, 1
      %p113 = por %p111, %p112
      %p114 = scmp.ne.s32.totalorder %s106, %s109
      %p115 = scmp.eq.s32.totalorder %s37, 0
      %p116 = por %p114, %p115
      %p117 = scmp.ne.s32.totalorder %s106, %s109
      %p118 = scmp.eq.s32.totalorder %s42, 1
      %p119 = por %p117, %p118
      %p120 = scmp.ne.s32.totalorder %s109, %s110
      %p121 = scmp.eq.s32.totalorder %s42, 0
      %p122 = por %p120, %p121
      %p123 = scmp.ne.s32.totalorder %s109, %s110
      %p124 = scmp.eq.s32.totalorder %s43, 1
      %p125 = por %p123, %p124
      %p127 = scmp.ne.s32.totalorder %s110, %s126
      %p128 = scmp.eq.s32.totalorder %s43, 0
      %p129 = por %p127, %p128
      %s130 = ssub.s32 %s45, %s52
      %p131 = scmp.eq.s32.totalorder %s130, 0
      %s133 = sadd.s32 %s132, 1
      %s134 = scalar_select %p131, %s132, %s133
      %p137 = pneg %p131
      %p138 = scmp.eq.s32.totalorder %s37, 1
      %p139 = por %p137, %p138
      %p140 = scmp.ne.s32.totalorder %s132, %s135
      %p141 = scmp.eq.s32.totalorder %s37, 0
      %p142 = por %p140, %p141
      %p143 = scmp.ne.s32.totalorder %s132, %s135
      %p144 = scmp.eq.s32.totalorder %s42, 1
      %p145 = por %p143, %p144
      %p146 = scmp.ne.s32.totalorder %s135, %s136
      %p147 = scmp.eq.s32.totalorder %s42, 0
      %p148 = por %p146, %p147
      %p149 = scmp.ne.s32.totalorder %s135, %s136
      %p150 = scmp.eq.s32.totalorder %s43, 1
      %p151 = por %p149, %p150
      %p153 = scmp.ne.s32.totalorder %s136, %s152
      %p154 = scmp.eq.s32.totalorder %s43, 0
      %p155 = por %p153, %p154
      %s156 = ssub.s32 %s45, %s52
      %p157 = scmp.eq.s32.totalorder %s156, 0
      %s159 = sadd.s32 %s158, 1
      %s160 = scalar_select %p157, %s158, %s159
      %p163 = pneg %p157
      %p164 = scmp.eq.s32.totalorder %s37, 1
      %p165 = por %p163, %p164
      %p166 = scmp.ne.s32.totalorder %s158, %s161
      %p167 = scmp.eq.s32.totalorder %s37, 0
      %p168 = por %p166, %p167
      %p169 = scmp.ne.s32.totalorder %s158, %s161
      %p170 = scmp.eq.s32.totalorder %s42, 1
      %p171 = por %p169, %p170
      %p172 = scmp.ne.s32.totalorder %s161, %s162
      %p173 = scmp.eq.s32.totalorder %s42, 0
      %p174 = por %p172, %p173
      %p175 = scmp.ne.s32.totalorder %s161, %s162
      %p176 = scmp.eq.s32.totalorder %s43, 1
      %p177 = por %p175, %p176
      %p179 = scmp.ne.s32.totalorder %s162, %s178
      %p180 = scmp.eq.s32.totalorder %s43, 0
      %p181 = por %p179, %p180
      %s182 = ssub.s32 %s45, %s52
      %p183 = scmp.eq.s32.totalorder %s182, 0
      %s185 = sadd.s32 %s184, 1
      %s186 = scalar_select %p183, %s184, %s185
      %p189 = pneg %p183
      %p190 = scmp.eq.s32.totalorder %s37, 1
      %p191 = por %p189, %p190
      %p192 = scmp.ne.s32.totalorder %s184, %s187
      %p193 = scmp.eq.s32.totalorder %s37, 0
      %p194 = por %p192, %p193
      %p195 = scmp.ne.s32.totalorder %s184, %s187
      %p196 = scmp.eq.s32.totalorder %s42, 1
      %p197 = por %p195, %p196
      %p198 = scmp.ne.s32.totalorder %s187, %s188
      %p199 = scmp.eq.s32.totalorder %s42, 0
      %p200 = por %p198, %p199
      %p201 = scmp.ne.s32.totalorder %s187, %s188
      %p202 = scmp.eq.s32.totalorder %s43, 1
      %p203 = por %p201, %p202
      %p205 = scmp.ne.s32.totalorder %s188, %s204
      %p206 = scmp.eq.s32.totalorder %s43, 0
      %p207 = por %p205, %p206
      %s208 = ssub.s32 %s45, %s52
      %p209 = scmp.eq.s32.totalorder %s208, 0
      %s211 = sadd.s32 %s210, 1
      %s212 = scalar_select %p209, %s210, %s211
      %p215 = pneg %p209
      %p216 = scmp.eq.s32.totalorder %s37, 1
      %p217 = por %p215, %p216
      %p218 = scmp.ne.s32.totalorder %s210, %s213
      %p219 = scmp.eq.s32.totalorder %s37, 0
      %p220 = por %p218, %p219
      %p221 = scmp.ne.s32.totalorder %s210, %s213
      %p222 = scmp.eq.s32.totalorder %s42, 1
      %p223 = por %p221, %p222
      %p224 = scmp.ne.s32.totalorder %s213, %s214
      %p225 = scmp.eq.s32.totalorder %s42, 0
      %p226 = por %p224, %p225
      %p227 = scmp.ne.s32.totalorder %s213, %s214
      %p228 = scmp.eq.s32.totalorder %s43, 1
      %p229 = por %p227, %p228
      %p231 = scmp.ne.s32.totalorder %s214, %s230
      %p232 = scmp.eq.s32.totalorder %s43, 0
      %p233 = por %p231, %p232
      %s234 = ssub.s32 %s45, %s52
      %p235 = scmp.eq.s32.totalorder %s234, 0
      %s237 = sadd.s32 %s236, 1
      %s238 = scalar_select %p235, %s236, %s237
      %p241 = pneg %p235
      %p242 = scmp.eq.s32.totalorder %s37, 1
      %p243 = por %p241, %p242
      %p244 = scmp.ne.s32.totalorder %s236, %s239
      %p245 = scmp.eq.s32.totalorder %s37, 0
      %p246 = por %p244, %p245
      %p247 = scmp.ne.s32.totalorder %s236, %s239
      %p248 = scmp.eq.s32.totalorder %s42, 1
      %p249 = por %p247, %p248
      %p250 = scmp.ne.s32.totalorder %s239, %s240
      %p251 = scmp.eq.s32.totalorder %s42, 0
      %p252 = por %p250, %p251
      %p253 = scmp.ne.s32.totalorder %s239, %s240
      %p254 = scmp.eq.s32.totalorder %s43, 1
      %p255 = por %p253, %p254
      %p257 = scmp.ne.s32.totalorder %s240, %s256
      %p258 = scmp.eq.s32.totalorder %s43, 0
      %p259 = por %p257, %p258
      %s260 = ssub.s32 %s45, %s52
      %p261 = scmp.eq.s32.totalorder %s260, 0
      %s263 = sadd.s32 %s262, 1
      %s264 = scalar_select %p261, %s262, %s263
      %p267 = pneg %p261
      %p268 = scmp.eq.s32.totalorder %s37, 1
      %p269 = por %p267, %p268
      %p270 = scmp.ne.s32.totalorder %s262, %s265
      %p271 = scmp.eq.s32.totalorder %s37, 0
      %p272 = por %p270, %p271
      %p273 = scmp.ne.s32.totalorder %s262, %s265
      %p274 = scmp.eq.s32.totalorder %s42, 1
      %p275 = por %p273, %p274
      %p276 = scmp.ne.s32.totalorder %s265, %s266
      %p277 = scmp.eq.s32.totalorder %s42, 0
      %p278 = por %p276, %p277
      %p279 = scmp.ne.s32.totalorder %s265, %s266
      %p280 = scmp.eq.s32.totalorder %s43, 1
      %p281 = por %p279, %p280
      %p283 = scmp.ne.s32.totalorder %s266, %s282
      %p284 = scmp.eq.s32.totalorder %s43, 0
      %p285 = por %p283, %p284
      %s286 = ssub.s32 %s45, %s52
      %p287 = scmp.eq.s32.totalorder %s286, 0
      %s289 = sadd.s32 %s288, 1
      %s290 = scalar_select %p287, %s288, %s289
      %p293 = pneg %p287
      %p294 = scmp.eq.s32.totalorder %s37, 1
      %p295 = por %p293, %p294
      %p296 = scmp.ne.s32.totalorder %s288, %s291
      %p297 = scmp.eq.s32.totalorder %s37, 0
      %p298 = por %p296, %p297
      %p299 = scmp.ne.s32.totalorder %s288, %s291
      %p300 = scmp.eq.s32.totalorder %s42, 1
      %p301 = por %p299, %p300
      %p302 = scmp.ne.s32.totalorder %s291, %s292
      %p303 = scmp.eq.s32.totalorder %s42, 0
      %p304 = por %p302, %p303
      %p305 = scmp.ne.s32.totalorder %s291, %s292
      %p306 = scmp.eq.s32.totalorder %s43, 1
      %p307 = por %p305, %p306
      %p309 = scmp.ne.s32.totalorder %s292, %s308
      %p310 = scmp.eq.s32.totalorder %s43, 0
      %p311 = por %p309, %p310
      %s312 = ssub.s32 %s45, %s52
      %p313 = scmp.eq.s32.totalorder %s312, 0
      %s315 = sadd.s32 %s314, 1
      %s316 = scalar_select %p313, %s314, %s315
      %p319 = pneg %p313
      %p320 = scmp.eq.s32.totalorder %s37, 1
      %p321 = por %p319, %p320
      %p322 = scmp.ne.s32.totalorder %s314, %s317
      %p323 = scmp.eq.s32.totalorder %s37, 0
      %p324 = por %p322, %p323
      %p325 = scmp.ne.s32.totalorder %s314, %s317
      %p326 = scmp.eq.s32.totalorder %s42, 1
      %p327 = por %p325, %p326
      %p328 = scmp.ne.s32.totalorder %s317, %s318
      %p329 = scmp.eq.s32.totalorder %s42, 0
      %p330 = por %p328, %p329
      %p331 = scmp.ne.s32.totalorder %s317, %s318
      %p332 = scmp.eq.s32.totalorder %s43, 1
      %p333 = por %p331, %p332
      %p335 = scmp.ne.s32.totalorder %s318, %s334
      %p336 = scmp.eq.s32.totalorder %s43, 0
      %p337 = por %p335, %p336
      %s338 = ssub.s32 %s45, %s52
      %p339 = scmp.eq.s32.totalorder %s338, 0
      %s341 = sadd.s32 %s340, 1
      %s342 = scalar_select %p339, %s340, %s341
      %p345 = pneg %p339
      %p346 = scmp.eq.s32.totalorder %s37, 1
      %p347 = por %p345, %p346
      %p348 = scmp.ne.s32.totalorder %s340, %s343
      %p349 = scmp.eq.s32.totalorder %s37, 0
      %p350 = por %p348, %p349
      %p351 = scmp.ne.s32.totalorder %s340, %s343
      %p352 = scmp.eq.s32.totalorder %s42, 1
      %p353 = por %p351, %p352
      %p354 = scmp.ne.s32.totalorder %s343, %s344
      %p355 = scmp.eq.s32.totalorder %s42, 0
      %p356 = por %p354, %p355
      %p357 = scmp.ne.s32.totalorder %s343, %s344
      %p358 = scmp.eq.s32.totalorder %s43, 1
      %p359 = por %p357, %p358
      %p361 = scmp.ne.s32.totalorder %s344, %s360
      %p362 = scmp.eq.s32.totalorder %s43, 0
      %p363 = por %p361, %p362
      %s364 = ssub.s32 %s45, %s52
      %p365 = scmp.eq.s32.totalorder %s364, 0
      %s367 = sadd.s32 %s366, 1
      %s368 = scalar_select %p365, %s366, %s367
      %p371 = pneg %p365
      %p372 = scmp.eq.s32.totalorder %s37, 1
      %p373 = por %p371, %p372
      %p374 = scmp.ne.s32.totalorder %s366, %s369
      %p375 = scmp.eq.s32.totalorder %s37, 0
      %p376 = por %p374, %p375
      %p377 = scmp.ne.s32.totalorder %s366, %s369
      %p378 = scmp.eq.s32.totalorder %s42, 1
      %p379 = por %p377, %p378
      %p380 = scmp.ne.s32.totalorder %s369, %s370
      %p381 = scmp.eq.s32.totalorder %s42, 0
      %p382 = por %p380, %p381
      %p383 = scmp.ne.s32.totalorder %s369, %s370
      %p384 = scmp.eq.s32.totalorder %s43, 1
      %p385 = por %p383, %p384
      %p387 = scmp.ne.s32.totalorder %s370, %s386
      %p388 = scmp.eq.s32.totalorder %s43, 0
      %p389 = por %p387, %p388
      %s390 = ssub.s32 %s45, %s52
      %p391 = scmp.eq.s32.totalorder %s390, 0
      %s393 = sadd.s32 %s392, 1
      %s394 = scalar_select %p391, %s392, %s393
      %p397 = pneg %p391
      %p398 = scmp.eq.s32.totalorder %s37, 1
      %p399 = por %p397, %p398
      %p400 = scmp.ne.s32.totalorder %s392, %s395
      %p401 = scmp.eq.s32.totalorder %s37, 0
      %p402 = por %p400, %p401
      %p403 = scmp.ne.s32.totalorder %s392, %s395
      %p404 = scmp.eq.s32.totalorder %s42, 1
      %p405 = por %p403, %p404
      %p406 = scmp.ne.s32.totalorder %s395, %s396
      %p407 = scmp.eq.s32.totalorder %s42, 0
      %p408 = por %p406, %p407
      %p409 = scmp.ne.s32.totalorder %s395, %s396
      %p410 = scmp.eq.s32.totalorder %s43, 1
      %p411 = por %p409, %p410
      %p413 = scmp.ne.s32.totalorder %s396, %s412
      %p414 = scmp.eq.s32.totalorder %s43, 0
      %p415 = por %p413, %p414
      %s416 = ssub.s32 %s45, %s52
      %p417 = scmp.eq.s32.totalorder %s416, 0
      %s419 = sadd.s32 %s418, 1
      %s420 = scalar_select %p417, %s418, %s419
      %p423 = pneg %p417
      %p424 = scmp.eq.s32.totalorder %s37, 1
      %p425 = por %p423, %p424
      %p426 = scmp.ne.s32.totalorder %s418, %s421
      %p427 = scmp.eq.s32.totalorder %s37, 0
      %p428 = por %p426, %p427
      %p429 = scmp.ne.s32.totalorder %s418, %s421
      %p430 = scmp.eq.s32.totalorder %s42, 1
      %p431 = por %p429, %p430
      %p432 = scmp.ne.s32.totalorder %s421, %s422
      %p433 = scmp.eq.s32.totalorder %s42, 0
      %p434 = por %p432, %p433
      %p435 = scmp.ne.s32.totalorder %s421, %s422
      %p436 = scmp.eq.s32.totalorder %s43, 1
      %p437 = por %p435, %p436
      %p439 = scmp.ne.s32.totalorder %s422, %s438
      %p440 = scmp.eq.s32.totalorder %s43, 0
      %p441 = por %p439, %p440
      %s442 = ssub.s32 %s45, %s52
      %p443 = scmp.eq.s32.totalorder %s442, 0
      %s445 = sadd.s32 %s444, 1
      %s446 = scalar_select %p443, %s444, %s445
      %p449 = pneg %p443
      %p450 = scmp.eq.s32.totalorder %s37, 1
      %p451 = por %p449, %p450
      %p452 = scmp.ne.s32.totalorder %s444, %s447
      %p453 = scmp.eq.s32.totalorder %s37, 0
      %p454 = por %p452, %p453
      %p455 = scmp.ne.s32.totalorder %s444, %s447
      %p456 = scmp.eq.s32.totalorder %s42, 1
      %p457 = por %p455, %p456
      %p458 = scmp.ne.s32.totalorder %s447, %s448
      %p459 = scmp.eq.s32.totalorder %s42, 0
      %p460 = por %p458, %p459
      %p461 = scmp.ne.s32.totalorder %s447, %s448
      %p462 = scmp.eq.s32.totalorder %s43, 1
      %p463 = por %p461, %p462
      %p465 = scmp.ne.s32.totalorder %s448, %s464
      %p466 = scmp.eq.s32.totalorder %s43, 0
      %p467 = por %p465, %p466
      %s468 = ssub.s32 %s45, %s52
      %p469 = scmp.eq.s32.totalorder %s468, 0
      %s471 = sadd.s32 %s470, 1
      %s472 = scalar_select %p469, %s470, %s471
      %p475 = pneg %p469
      %p476 = scmp.eq.s32.totalorder %s37, 1
      %p477 = por %p475, %p476
      %p478 = scmp.ne.s32.totalorder %s470, %s473
      %p479 = scmp.eq.s32.totalorder %s37, 0
      %p480 = por %p478, %p479
      %p481 = scmp.ne.s32.totalorder %s470, %s473
      %p482 = scmp.eq.s32.totalorder %s42, 1
      %p483 = por %p481, %p482
      %p484 = scmp.ne.s32.totalorder %s473, %s474
      %p485 = scmp.eq.s32.totalorder %s42, 0
      %p486 = por %p484, %p485
      %p487 = scmp.ne.s32.totalorder %s473, %s474
      %p488 = scmp.eq.s32.totalorder %s43, 1
      %p489 = por %p487, %p488
      %p491 = scmp.ne.s32.totalorder %s474, %s490
      %p492 = scmp.eq.s32.totalorder %s43, 0
      %p493 = por %p491, %p492
      %s494 = ssub.s32 %s45, %s52
      %p495 = scmp.eq.s32.totalorder %s494, 0
      %s497 = sadd.s32 %s496, 1
      %s498 = scalar_select %p495, %s496, %s497
      %p501 = pneg %p495
      %p502 = scmp.eq.s32.totalorder %s37, 1
      %p503 = por %p501, %p502
      %p504 = scmp.ne.s32.totalorder %s496, %s499
      %p505 = scmp.eq.s32.totalorder %s37, 0
      %p506 = por %p504, %p505
      %p507 = scmp.ne.s32.totalorder %s496, %s499
      %p508 = scmp.eq.s32.totalorder %s42, 1
      %p509 = por %p507, %p508
      %p510 = scmp.ne.s32.totalorder %s499, %s500
      %p511 = scmp.eq.s32.totalorder %s42, 0
      %p512 = por %p510, %p511
      %p513 = scmp.ne.s32.totalorder %s499, %s500
      %p514 = scmp.eq.s32.totalorder %s43, 1
      %p515 = por %p513, %p514
      %p517 = scmp.ne.s32.totalorder %s500, %s516
      %p518 = scmp.eq.s32.totalorder %s43, 0
      %p519 = por %p517, %p518
      %s521 = sadd.s32 %s520, 1
      %p524 = scmp.eq.s32.totalorder %s37, 1
      %p525 = scmp.ne.s32.totalorder %s520, %s522
      %p526 = scmp.eq.s32.totalorder %s37, 0
      %p527 = por %p525, %p526
      %p528 = scmp.ne.s32.totalorder %s520, %s522
      %p529 = scmp.eq.s32.totalorder %s42, 1
      %p530 = por %p528, %p529
      %p531 = scmp.ne.s32.totalorder %s522, %s523
      %p532 = scmp.eq.s32.totalorder %s42, 0
      %p533 = por %p531, %p532
      %p534 = scmp.ne.s32.totalorder %s522, %s523
      %p535 = scmp.eq.s32.totalorder %s43, 1
      %p536 = por %p534, %p535
      %p538 = scmp.ne.s32.totalorder %s523, %s537
      %p539 = scmp.eq.s32.totalorder %s43, 0
      %p540 = por %p538, %p539
      %s542 = sadd.s32 %s541, 1
      %p545 = scmp.eq.s32.totalorder %s37, 1
      %p546 = scmp.ne.s32.totalorder %s541, %s543
      %p547 = scmp.eq.s32.totalorder %s37, 0
      %p548 = por %p546, %p547
      %p549 = scmp.ne.s32.totalorder %s541, %s543
      %p550 = scmp.eq.s32.totalorder %s42, 1
      %p551 = por %p549, %p550
      %p552 = scmp.ne.s32.totalorder %s543, %s544
      %p553 = scmp.eq.s32.totalorder %s42, 0
      %p554 = por %p552, %p553
      %p555 = scmp.ne.s32.totalorder %s543, %s544
      %p556 = scmp.eq.s32.totalorder %s43, 1
      %p557 = por %p555, %p556
      %p559 = scmp.ne.s32.totalorder %s544, %s558
      %p560 = scmp.eq.s32.totalorder %s43, 0
      %p561 = por %p559, %p560
      %s562 = ssub.s32 %s44, %s56
      %p563 = scmp.eq.s32.totalorder %s562, 0
      %s565 = sadd.s32 %s564, 1
      %s566 = scalar_select %p563, %s564, %s565
      %p569 = pneg %p563
      %p570 = scmp.eq.s32.totalorder %s37, 1
      %p571 = por %p569, %p570
      %p572 = scmp.ne.s32.totalorder %s564, %s567
      %p573 = scmp.eq.s32.totalorder %s37, 0
      %p574 = por %p572, %p573
      %p575 = scmp.ne.s32.totalorder %s564, %s567
      %p576 = scmp.eq.s32.totalorder %s42, 1
      %p577 = por %p575, %p576
      %p578 = scmp.ne.s32.totalorder %s567, %s568
      %p579 = scmp.eq.s32.totalorder %s42, 0
      %p580 = por %p578, %p579
      %p581 = scmp.ne.s32.totalorder %s567, %s568
      %p582 = scmp.eq.s32.totalorder %s43, 1
      %p583 = por %p581, %p582
      %p585 = scmp.ne.s32.totalorder %s568, %s584
      %p586 = scmp.eq.s32.totalorder %s43, 0
      %p587 = por %p585, %p586
      %p588 = scmp.le.s32.totalorder 1, %s37
      %p589 = scmp.lt.s32.totalorder %s37, 3
      %p590 = pnand %p588, %p589
      %p591 = pneg %p590
      // Predicated region
      $region9: #{tpu_custom_call.1} parent=5 // pred_check
        _
      $region10: #{tpu_custom_call.1} parent=5 // pred_check_branch
        %593 = sbr.rel (%p590) target = $region12
      $region11: #{tpu_custom_call.1} parent=5 // pred_region
        %s594 = ssub.s32 %s37, 1
        // Predicated region
        $region13: #{tpu_custom_call.1} parent=11 // pred_check
          %p595 = pneg %p75
        $region14: #{tpu_custom_call.1} parent=11 // pred_check_branch
          %597 = sbr.rel (%p595) target = $region16
        $region15: #{tpu_custom_call.1} parent=11 // pred_region
          %s598 = smul.u32 2, %s46
          %s600 = ssub.s32 512, 512
          %601 = vsyncadd [#allocation4], %s600
          %s602 = smul.addr %s598, 2
          %s603 = smul.addr %s602, 128
          %s604 = scalar_lea.hbm %s0, %s603
          %s605 = sshll.u32 [#allocation3], 4
          %s606 = int_to_ptr.vmem [resolvable:$true] %s605
          %611 = dma.hbm_to_vmem [thread:$0]  %s604, 512, %s606, [#allocation4], 128, 128, 8
        $region16: #{tpu_custom_call.1} parent=11 // pred_fallthru
          _
        // Predicated region
        $region17: #{tpu_custom_call.1} parent=11 // pred_check
          %p612 = pneg %p96
        $region18: #{tpu_custom_call.1} parent=11 // pred_check_branch
          %614 = sbr.rel (%p612) target = $region20
        $region19: #{tpu_custom_call.1} parent=11 // pred_region
          _
        $region20: #{tpu_custom_call.1} parent=11 // pred_fallthru
          _
        // Predicated region
        $region21: #{tpu_custom_call.1} parent=11 // pred_check
          %p615 = pneg %p533
        $region22: #{tpu_custom_call.1} parent=11 // pred_check_branch
          %617 = sbr.rel (%p615) target = $region24
        $region23: #{tpu_custom_call.1} parent=11 // pred_region
          _
        $region24: #{tpu_custom_call.1} parent=11 // pred_fallthru
          _
        // Predicated region
        $region25: #{tpu_custom_call.1} parent=11 // pred_check
          %p618 = pneg %p554
        $region26: #{tpu_custom_call.1} parent=11 // pred_check_branch
          %620 = sbr.rel (%p618) target = $region28
        $region27: #{tpu_custom_call.1} parent=11 // pred_region
          _
        $region28: #{tpu_custom_call.1} parent=11 // pred_fallthru
          _
      $region12: #{tpu_custom_call.1} parent=5 // pred_fallthru
        _
      %p621 = scmp.lt.s32.totalorder %s37, 2
      // Predicated region
      $region29: #{tpu_custom_call.1} parent=5 // pred_check
        %p622 = pneg %p621
      $region30: #{tpu_custom_call.1} parent=5 // pred_check_branch
        %624 = sbr.rel (%p622) target = $region32
      $region31: #{tpu_custom_call.1} parent=5 // pred_region
        // Predicated region
        $region33: #{tpu_custom_call.1} parent=31 // pred_check
          %p625 = pneg %p116
        $region34: #{tpu_custom_call.1} parent=31 // pred_check_branch
          %627 = sbr.rel (%p625) target = $region36
        $region35: #{tpu_custom_call.1} parent=31 // pred_region
          %p628 = scmp.lt.s32.totalorder %s45, 1
          %s629 = scalar_select %p628, %s45, 1
          %s630 = scalar_lea.vmem %s2, %s629
        $region36: #{tpu_custom_call.1} parent=31 // pred_fallthru
          _
        // Predicated region
        $region37: #{tpu_custom_call.1} parent=31 // pred_check
          %p631 = pneg %p142
        $region38: #{tpu_custom_call.1} parent=31 // pred_check_branch
          %633 = sbr.rel (%p631) target = $region40
        $region39: #{tpu_custom_call.1} parent=31 // pred_region
          %p634 = scmp.lt.s32.totalorder %s45, 1
          %s635 = scalar_select %p634, %s45, 1
          %s636 = scalar_lea.vmem %s3, %s635
        $region40: #{tpu_custom_call.1} parent=31 // pred_fallthru
          _
        // Predicated region
        $region41: #{tpu_custom_call.1} parent=31 // pred_check
          %p637 = pneg %p168
        $region42: #{tpu_custom_call.1} parent=31 // pred_check_branch
          %639 = sbr.rel (%p637) target = $region44
        $region43: #{tpu_custom_call.1} parent=31 // pred_region
          %s640 = sand.u32 %s37, 1
          %s641 = scalar_lea.sflag [#allocation7], %s640
          %s642 = sand.u32 %s158, 1
          %s643 = smul.addr %s642, 64
          %s644 = scalar_lea.vmem [#allocation6], %s643
          %s646 = ssub.s32 1024, 1024
          %647 = vsyncadd %s641, %s646
          %s648 = smul.addr %s45, 16
          %s649 = smul.addr %s648, 64
          %s650 = scalar_lea.hbm %s4, %s649
          %s651 = sshll.u32 %s644, 4
          %s652 = int_to_ptr.vmem [resolvable:$true] %s651
          %657 = dma.hbm_to_vmem [thread:$0]  %s650, 1024, %s652, %s641, 64, 64, 4
        $region44: #{tpu_custom_call.1} parent=31 // pred_fallthru
          _
        // Predicated region
        $region45: #{tpu_custom_call.1} parent=31 // pred_check
          %p658 = pneg %p194
        $region46: #{tpu_custom_call.1} parent=31 // pred_check_branch
          %660 = sbr.rel (%p658) target = $region48
        $region47: #{tpu_custom_call.1} parent=31 // pred_region
          %p661 = scmp.lt.s32.totalorder %s45, 1
          %s662 = scalar_select %p661, %s45, 1
          %s663 = scalar_lea.vmem %s5, %s662
        $region48: #{tpu_custom_call.1} parent=31 // pred_fallthru
          _
        // Predicated region
        $region49: #{tpu_custom_call.1} parent=31 // pred_check
          %p664 = pneg %p220
        $region50: #{tpu_custom_call.1} parent=31 // pred_check_branch
          %666 = sbr.rel (%p664) target = $region52
        $region51: #{tpu_custom_call.1} parent=31 // pred_region
          %s667 = sand.u32 %s37, 1
          %s668 = scalar_lea.sflag [#allocation7], %s667
          %s669 = sand.u32 %s210, 1
          %s670 = smul.addr %s669, 64
          %s671 = scalar_lea.vmem [#allocation8], %s670
          %s673 = ssub.s32 1024, 1024
          %674 = vsyncadd %s668, %s673
          %s675 = smul.addr %s45, 16
          %s676 = smul.addr %s675, 64
          %s677 = scalar_lea.hbm %s6, %s676
          %s678 = sshll.u32 %s671, 4
          %s679 = int_to_ptr.vmem [resolvable:$true] %s678
          %684 = dma.hbm_to_vmem [thread:$0]  %s677, 1024, %s679, %s668, 64, 64, 4
        $region52: #{tpu_custom_call.1} parent=31 // pred_fallthru
          _
        // Predicated region
        $region53: #{tpu_custom_call.1} parent=31 // pred_check
          %p685 = pneg %p246
        $region54: #{tpu_custom_call.1} parent=31 // pred_check_branch
          %687 = sbr.rel (%p685) target = $region56
        $region55: #{tpu_custom_call.1} parent=31 // pred_region
          %p688 = scmp.lt.s32.totalorder %s45, 1
          %s689 = scalar_select %p688, %s45, 1
          %s690 = scalar_lea.vmem %s7, %s689
        $region56: #{tpu_custom_call.1} parent=31 // pred_fallthru
          _
        // Predicated region
        $region57: #{tpu_custom_call.1} parent=31 // pred_check
          %p691 = pneg %p272
        $region58: #{tpu_custom_call.1} parent=31 // pred_check_branch
          %693 = sbr.rel (%p691) target = $region60
        $region59: #{tpu_custom_call.1} parent=31 // pred_region
          %s694 = sand.u32 %s37, 1
          %s695 = scalar_lea.sflag [#allocation10], %s694
          %s696 = sand.u32 %s262, 1
          %s697 = smul.addr %s696, 64
          %s698 = scalar_lea.vmem [#allocation9], %s697
          %s700 = ssub.s32 1024, 1024
          %701 = vsyncadd %s695, %s700
          %s702 = smul.addr %s45, 16
          %s703 = smul.addr %s702, 64
          %s704 = scalar_lea.hbm %s8, %s703
          %s705 = sshll.u32 %s698, 4
          %s706 = int_to_ptr.vmem [resolvable:$true] %s705
          %711 = dma.hbm_to_vmem [thread:$0]  %s704, 1024, %s706, %s695, 64, 64, 4
        $region60: #{tpu_custom_call.1} parent=31 // pred_fallthru
          _
        // Predicated region
        $region61: #{tpu_custom_call.1} parent=31 // pred_check
          %p712 = pneg %p298
        $region62: #{tpu_custom_call.1} parent=31 // pred_check_branch
          %714 = sbr.rel (%p712) target = $region64
        $region63: #{tpu_custom_call.1} parent=31 // pred_region
          %p715 = scmp.lt.s32.totalorder %s45, 1
          %s716 = scalar_select %p715, %s45, 1
          %s717 = scalar_lea.vmem %s9, %s716
        $region64: #{tpu_custom_call.1} parent=31 // pred_fallthru
          _
        // Predicated region
        $region65: #{tpu_custom_call.1} parent=31 // pred_check
          %p718 = pneg %p324
        $region66: #{tpu_custom_call.1} parent=31 // pred_check_branch
          %720 = sbr.rel (%p718) target = $region68
        $region67: #{tpu_custom_call.1} parent=31 // pred_region
          %s721 = sand.u32 %s37, 1
          %s722 = scalar_lea.sflag [#allocation10], %s721
          %s723 = sand.u32 %s314, 1
          %s724 = smul.addr %s723, 64
          %s725 = scalar_lea.vmem [#allocation11], %s724
          %s727 = ssub.s32 1024, 1024
          %728 = vsyncadd %s722, %s727
          %s729 = smul.addr %s45, 16
          %s730 = smul.addr %s729, 64
          %s731 = scalar_lea.hbm %s10, %s730
          %s732 = sshll.u32 %s725, 4
          %s733 = int_to_ptr.vmem [resolvable:$true] %s732
          %738 = dma.hbm_to_vmem [thread:$0]  %s731, 1024, %s733, %s722, 64, 64, 4
        $region68: #{tpu_custom_call.1} parent=31 // pred_fallthru
          _
        // Predicated region
        $region69: #{tpu_custom_call.1} parent=31 // pred_check
          %p739 = pneg %p350
        $region70: #{tpu_custom_call.1} parent=31 // pred_check_branch
          %741 = sbr.rel (%p739) target = $region72
        $region71: #{tpu_custom_call.1} parent=31 // pred_region
          %p742 = scmp.lt.s32.totalorder %s45, 1
          %s743 = scalar_select %p742, %s45, 1
          %s744 = scalar_lea.vmem %s11, %s743
        $region72: #{tpu_custom_call.1} parent=31 // pred_fallthru
          _
        // Predicated region
        $region73: #{tpu_custom_call.1} parent=31 // pred_check
          %p745 = pneg %p376
        $region74: #{tpu_custom_call.1} parent=31 // pred_check_branch
          %747 = sbr.rel (%p745) target = $region76
        $region75: #{tpu_custom_call.1} parent=31 // pred_region
          %p748 = scmp.lt.s32.totalorder %s45, 1
          %s749 = scalar_select %p748, %s45, 1
          %s750 = scalar_lea.vmem %s12, %s749
        $region76: #{tpu_custom_call.1} parent=31 // pred_fallthru
          _
        // Predicated region
        $region77: #{tpu_custom_call.1} parent=31 // pred_check
          %p751 = pneg %p402
        $region78: #{tpu_custom_call.1} parent=31 // pred_check_branch
          %753 = sbr.rel (%p751) target = $region80
        $region79: #{tpu_custom_call.1} parent=31 // pred_region
          %p754 = scmp.lt.s32.totalorder %s45, 1
          %s755 = scalar_select %p754, %s45, 1
          %s756 = scalar_lea.vmem %s13, %s755
        $region80: #{tpu_custom_call.1} parent=31 // pred_fallthru
          _
        // Predicated region
        $region81: #{tpu_custom_call.1} parent=31 // pred_check
          %p757 = pneg %p428
        $region82: #{tpu_custom_call.1} parent=31 // pred_check_branch
          %759 = sbr.rel (%p757) target = $region84
        $region83: #{tpu_custom_call.1} parent=31 // pred_region
          %s760 = sand.u32 %s37, 1
          %s761 = scalar_lea.sflag [#allocation13], %s760
          %s762 = sand.u32 %s418, 1
          %s763 = smul.addr %s762, 128
          %s764 = scalar_lea.vmem [#allocation12], %s763
          %s766 = ssub.s32 2048, 2048
          %767 = vsyncadd %s761, %s766
          %s768 = smul.addr %s45, 32
          %s769 = smul.addr %s768, 64
          %s770 = scalar_lea.hbm %s14, %s769
          %s771 = sshll.u32 %s764, 4
          %s772 = int_to_ptr.vmem [resolvable:$true] %s771
          %777 = dma.hbm_to_vmem [thread:$0]  %s770, 2048, %s772, %s761, 128, 128, 8
        $region84: #{tpu_custom_call.1} parent=31 // pred_fallthru
          _
        // Predicated region
        $region85: #{tpu_custom_call.1} parent=31 // pred_check
          %p778 = pneg %p454
        $region86: #{tpu_custom_call.1} parent=31 // pred_check_branch
          %780 = sbr.rel (%p778) target = $region88
        $region87: #{tpu_custom_call.1} parent=31 // pred_region
          %p781 = scmp.lt.s32.totalorder %s45, 1
          %s782 = scalar_select %p781, %s45, 1
          %s783 = smul.addr %s782, 2
          %s784 = scalar_lea.vmem %s15, %s783
        $region88: #{tpu_custom_call.1} parent=31 // pred_fallthru
          _
        // Predicated region
        $region89: #{tpu_custom_call.1} parent=31 // pred_check
          %p785 = pneg %p480
        $region90: #{tpu_custom_call.1} parent=31 // pred_check_branch
          %787 = sbr.rel (%p785) target = $region92
        $region91: #{tpu_custom_call.1} parent=31 // pred_region
          %s788 = sand.u32 %s37, 1
          %s789 = scalar_lea.sflag [#allocation13], %s788
          %s790 = sand.u32 %s470, 1
          %s791 = smul.addr %s790, 128
          %s792 = scalar_lea.vmem [#allocation14], %s791
          %s794 = ssub.s32 2048, 2048
          %795 = vsyncadd %s789, %s794
          %s796 = smul.addr %s45, 32
          %s797 = smul.addr %s796, 64
          %s798 = scalar_lea.hbm %s16, %s797
          %s799 = sshll.u32 %s792, 4
          %s800 = int_to_ptr.vmem [resolvable:$true] %s799
          %805 = dma.hbm_to_vmem [thread:$0]  %s798, 2048, %s800, %s789, 64, 64, 4
        $region92: #{tpu_custom_call.1} parent=31 // pred_fallthru
          _
        // Predicated region
        $region93: #{tpu_custom_call.1} parent=31 // pred_check
          %p806 = pneg %p506
        $region94: #{tpu_custom_call.1} parent=31 // pred_check_branch
          %808 = sbr.rel (%p806) target = $region96
        $region95: #{tpu_custom_call.1} parent=31 // pred_region
          %p809 = scmp.lt.s32.totalorder %s45, 1
          %s810 = scalar_select %p809, %s45, 1
          %s811 = scalar_lea.vmem %s17, %s810
        $region96: #{tpu_custom_call.1} parent=31 // pred_fallthru
          _
      $region32: #{tpu_custom_call.1} parent=5 // pred_fallthru
        _
      %p812 = scmp.le.s32.totalorder 1, %s37
      %p813 = scmp.lt.s32.totalorder %s37, 3
      %p814 = pnand %p812, %p813
      %p815 = pneg %p814
      // Predicated region
      $region97: #{tpu_custom_call.1} parent=5 // pred_check
        _
      $region98: #{tpu_custom_call.1} parent=5 // pred_check_branch
        %817 = sbr.rel (%p814) target = $region100
      $region99: #{tpu_custom_call.1} parent=5 // pred_region
        %s818 = ssub.s32 %s37, 1
        // Predicated region
        $region101: #{tpu_custom_call.1} parent=99 // pred_check
          %p819 = pneg %p75
        $region102: #{tpu_custom_call.1} parent=99 // pred_check_branch
          %821 = sbr.rel (%p819) target = $region104
        $region103: #{tpu_custom_call.1} parent=99 // pred_region
          %822 = dma.done [#allocation4], 512
        $region104: #{tpu_custom_call.1} parent=99 // pred_fallthru
          _
        %s823 = sand.u32 %s42, 1
        %s824 = scalar_lea.sflag [#allocation7], %s823
        %s825 = sand.u32 %s161, 1
        %s826 = smul.addr %s825, 64
        %s827 = scalar_lea.vmem [#allocation6], %s826
        // Predicated region
        $region105: #{tpu_custom_call.1} parent=99 // pred_check
          %p828 = pneg %p174
        $region106: #{tpu_custom_call.1} parent=99 // pred_check_branch
          %830 = sbr.rel (%p828) target = $region108
        $region107: #{tpu_custom_call.1} parent=99 // pred_region
          %831 = dma.done %s824, 1024
        $region108: #{tpu_custom_call.1} parent=99 // pred_fallthru
          _
        %s832 = sand.u32 %s42, 1
        %s833 = scalar_lea.sflag [#allocation7], %s832
        %s834 = sand.u32 %s213, 1
        %s835 = smul.addr %s834, 64
        %s836 = scalar_lea.vmem [#allocation8], %s835
        // Predicated region
        $region109: #{tpu_custom_call.1} parent=99 // pred_check
          %p837 = pneg %p226
        $region110: #{tpu_custom_call.1} parent=99 // pred_check_branch
          %839 = sbr.rel (%p837) target = $region112
        $region111: #{tpu_custom_call.1} parent=99 // pred_region
          %840 = dma.done %s833, 1024
        $region112: #{tpu_custom_call.1} parent=99 // pred_fallthru
          _
        %s841 = sand.u32 %s42, 1
        %s842 = scalar_lea.sflag [#allocation10], %s841
        %s843 = sand.u32 %s265, 1
        %s844 = smul.addr %s843, 64
        %s845 = scalar_lea.vmem [#allocation9], %s844
        // Predicated region
        $region113: #{tpu_custom_call.1} parent=99 // pred_check
          %p846 = pneg %p278
        $region114: #{tpu_custom_call.1} parent=99 // pred_check_branch
          %848 = sbr.rel (%p846) target = $region116
        $region115: #{tpu_custom_call.1} parent=99 // pred_region
          %849 = dma.done %s842, 1024
        $region116: #{tpu_custom_call.1} parent=99 // pred_fallthru
          _
        %s850 = sand.u32 %s42, 1
        %s851 = scalar_lea.sflag [#allocation10], %s850
        %s852 = sand.u32 %s317, 1
        %s853 = smul.addr %s852, 64
        %s854 = scalar_lea.vmem [#allocation11], %s853
        // Predicated region
        $region117: #{tpu_custom_call.1} parent=99 // pred_check
          %p855 = pneg %p330
        $region118: #{tpu_custom_call.1} parent=99 // pred_check_branch
          %857 = sbr.rel (%p855) target = $region120
        $region119: #{tpu_custom_call.1} parent=99 // pred_region
          %858 = dma.done %s851, 1024
        $region120: #{tpu_custom_call.1} parent=99 // pred_fallthru
          _
        %s859 = sand.u32 %s42, 1
        %s860 = scalar_lea.sflag [#allocation13], %s859
        %s861 = sand.u32 %s421, 1
        %s862 = smul.addr %s861, 128
        %s863 = scalar_lea.vmem [#allocation12], %s862
        // Predicated region
        $region121: #{tpu_custom_call.1} parent=99 // pred_check
          %p864 = pneg %p434
        $region122: #{tpu_custom_call.1} parent=99 // pred_check_branch
          %866 = sbr.rel (%p864) target = $region124
        $region123: #{tpu_custom_call.1} parent=99 // pred_region
          %867 = dma.done %s860, 2048
        $region124: #{tpu_custom_call.1} parent=99 // pred_fallthru
          _
        %s868 = sand.u32 %s42, 1
        %s869 = scalar_lea.sflag [#allocation13], %s868
        %s870 = sand.u32 %s473, 1
        %s871 = smul.addr %s870, 128
        %s872 = scalar_lea.vmem [#allocation14], %s871
        // Predicated region
        $region125: #{tpu_custom_call.1} parent=99 // pred_check
          %p873 = pneg %p486
        $region126: #{tpu_custom_call.1} parent=99 // pred_check_branch
          %875 = sbr.rel (%p873) target = $region128
        $region127: #{tpu_custom_call.1} parent=99 // pred_region
          %876 = dma.done %s869, 2048
        $region128: #{tpu_custom_call.1} parent=99 // pred_fallthru
          _
        %p877 = pneg %p75
        %p878 = pneg %p72
        %p879 = pneg %p96
        %p880 = pneg %p93
        %p881 = scmp.lt.s32.totalorder %s47, 1
        %s882 = scalar_select %p881, %s47, 1
        %s883 = scalar_lea.vmem %s2, %s882
        %p884 = pneg %p122
        %p885 = pneg %p119
        %p886 = scmp.lt.s32.totalorder %s47, 1
        %s887 = scalar_select %p886, %s47, 1
        %s888 = scalar_lea.vmem %s3, %s887
        %p889 = pneg %p148
        %p890 = pneg %p145
        %s891 = sand.u32 %s42, 1
        %s892 = scalar_lea.sflag [#allocation7], %s891
        %s893 = sand.u32 %s161, 1
        %s894 = smul.addr %s893, 64
        %s895 = scalar_lea.vmem [#allocation6], %s894
        %p896 = pneg %p174
        %p897 = pneg %p171
        %p898 = scmp.lt.s32.totalorder %s47, 1
        %s899 = scalar_select %p898, %s47, 1
        %s900 = scalar_lea.vmem %s5, %s899
        %p901 = pneg %p200
        %p902 = pneg %p197
        %s903 = sand.u32 %s42, 1
        %s904 = scalar_lea.sflag [#allocation7], %s903
        %s905 = sand.u32 %s213, 1
        %s906 = smul.addr %s905, 64
        %s907 = scalar_lea.vmem [#allocation8], %s906
        %p908 = pneg %p226
        %p909 = pneg %p223
        %p910 = scmp.lt.s32.totalorder %s47, 1
        %s911 = scalar_select %p910, %s47, 1
        %s912 = scalar_lea.vmem %s7, %s911
        %p913 = pneg %p252
        %p914 = pneg %p249
        %s915 = sand.u32 %s42, 1
        %s916 = scalar_lea.sflag [#allocation10], %s915
        %s917 = sand.u32 %s265, 1
        %s918 = smul.addr %s917, 64
        %s919 = scalar_lea.vmem [#allocation9], %s918
        %p920 = pneg %p278
        %p921 = pneg %p275
        %p922 = scmp.lt.s32.totalorder %s47, 1
        %s923 = scalar_select %p922, %s47, 1
        %s924 = scalar_lea.vmem %s9, %s923
        %p925 = pneg %p304
        %p926 = pneg %p301
        %s927 = sand.u32 %s42, 1
        %s928 = scalar_lea.sflag [#allocation10], %s927
        %s929 = sand.u32 %s317, 1
        %s930 = smul.addr %s929, 64
        %s931 = scalar_lea.vmem [#allocation11], %s930
        %p932 = pneg %p330
        %p933 = pneg %p327
        %p934 = scmp.lt.s32.totalorder %s47, 1
        %s935 = scalar_select %p934, %s47, 1
        %s936 = scalar_lea.vmem %s11, %s935
        %p937 = pneg %p356
        %p938 = pneg %p353
        %p939 = scmp.lt.s32.totalorder %s47, 1
        %s940 = scalar_select %p939, %s47, 1
        %s941 = scalar_lea.vmem %s12, %s940
        %p942 = pneg %p382
        %p943 = pneg %p379
        %p944 = scmp.lt.s32.totalorder %s47, 1
        %s945 = scalar_select %p944, %s47, 1
        %s946 = scalar_lea.vmem %s13, %s945
        %p947 = pneg %p408
        %p948 = pneg %p405
        %s949 = sand.u32 %s42, 1
        %s950 = scalar_lea.sflag [#allocation13], %s949
        %s951 = sand.u32 %s421, 1
        %s952 = smul.addr %s951, 128
        %s953 = scalar_lea.vmem [#allocation12], %s952
        %p954 = pneg %p434
        %p955 = pneg %p431
        %p956 = scmp.lt.s32.totalorder %s47, 1
        %s957 = scalar_select %p956, %s47, 1
        %s958 = smul.addr %s957, 2
        %s959 = scalar_lea.vmem %s15, %s958
        %p960 = pneg %p460
        %p961 = pneg %p457
        %s962 = sand.u32 %s42, 1
        %s963 = scalar_lea.sflag [#allocation13], %s962
        %s964 = sand.u32 %s473, 1
        %s965 = smul.addr %s964, 128
        %s966 = scalar_lea.vmem [#allocation14], %s965
        %p967 = pneg %p486
        %p968 = pneg %p483
        %p969 = scmp.lt.s32.totalorder %s47, 1
        %s970 = scalar_select %p969, %s47, 1
        %s971 = scalar_lea.vmem %s17, %s970
        %p972 = pneg %p512
        %p973 = pneg %p509
        %p974 = pneg %p533
        %p975 = pneg %p530
        %p976 = pneg %p554
        %p977 = pneg %p551
        %p978 = pneg %p580
        %p979 = pneg %p577
        %s980 = smul.u32 2, %s46
        %p981 = scmp.lt.s32.totalorder %s47, 1
        %s982 = scalar_select %p981, %s47, 1
        %s983 = scalar_lea.vmem %s2, %s982
        %p984 = scmp.lt.s32.totalorder %s47, 1
        %s985 = scalar_select %p984, %s47, 1
        %s986 = scalar_lea.vmem %s3, %s985
        %p987 = scmp.lt.s32.totalorder %s47, 1
        %s988 = scalar_select %p987, %s47, 1
        %s989 = scalar_lea.vmem %s5, %s988
        %p990 = scmp.lt.s32.totalorder %s47, 1
        %s991 = scalar_select %p990, %s47, 1
        %s992 = scalar_lea.vmem %s7, %s991
        %p993 = scmp.lt.s32.totalorder %s47, 1
        %s994 = scalar_select %p993, %s47, 1
        %s995 = scalar_lea.vmem %s9, %s994
        %p996 = scmp.lt.s32.totalorder %s47, 1
        %s997 = scalar_select %p996, %s47, 1
        %s998 = scalar_lea.vmem %s11, %s997
        %p999 = scmp.lt.s32.totalorder %s47, 1
        %s1000 = scalar_select %p999, %s47, 1
        %s1001 = scalar_lea.vmem %s12, %s1000
        %p1002 = scmp.lt.s32.totalorder %s47, 1
        %s1003 = scalar_select %p1002, %s47, 1
        %s1004 = scalar_lea.vmem %s13, %s1003
        %p1005 = scmp.lt.s32.totalorder %s47, 1
        %s1006 = scalar_select %p1005, %s47, 1
        %s1007 = smul.addr %s1006, 2
        %s1008 = scalar_lea.vmem %s15, %s1007
        %p1009 = scmp.lt.s32.totalorder %s47, 1
        %s1010 = scalar_select %p1009, %s47, 1
        %s1011 = scalar_lea.vmem %s17, %s1010
        %s1012 = smul.u32 2, %s46
        %p1014 = scmp.eq.s32.totalorder %s47, 0
        // Predicated region
        $region129: #{tpu_custom_call.1} parent=99 // pred_check
          %p1015 = pneg %p1014
        $region130: #{tpu_custom_call.1} parent=99 // pred_check_branch
          %1017 = sbr.rel (%p1015) target = $region132
        $region131: #{tpu_custom_call.1} parent=99 // pred_region
          %v1018 = vld [vmem:[#allocation3] sm:$0xff]
          %v1019 = vld [vmem:[#allocation3 + $0x8] sm:$0xff]
          %v1020 = vld [vmem:[#allocation3 + $0x10] sm:$0xff]
          %v1021 = vld [vmem:[#allocation3 + $0x18] sm:$0xff]
          %1022 = vst [vmem:[#allocation2] sm:$0xff] %v1018
          %1023 = vst [vmem:[#allocation2 + $0x8] sm:$0xff] %v1019
          %1024 = vst [vmem:[#allocation2 + $0x10] sm:$0xff] %v1020
          %1025 = vst [vmem:[#allocation2 + $0x18] sm:$0xff] %v1021
        $region132: #{tpu_custom_call.1} parent=99 // pred_fallthru
          _
        %v1026 = vld [vmem:[#allocation2] sm:$0xff]
        %v1027 = vld [vmem:[#allocation2 + $0x8] sm:$0xff]
        %v1028 = vld [vmem:[#allocation2 + $0x10] sm:$0xff]
        %v1029 = vld [vmem:[#allocation2 + $0x18] sm:$0xff]
        %v1030 = vld [vmem:[%s1] sm:$0xff]
        %v1031 = vld [vmem:[%s1 + $0x8] sm:$0xff]
        %v1032 = vld [vmem:[%s983] sm:$0x1]
        %v1033 = vld [vmem:[%s986] sm:$0x1]
        %1034 = vadd.xlane.f32.xlu0 %v1026
        %v1035 = vpop.xlane.xlu0 %1034
        %1036 = vadd.xlane.f32.xlu0 %v1027
        %v1037 = vpop.xlane.xlu0 %1036
        %1038 = vadd.xlane.f32.xlu0 %v1028
        %v1039 = vpop.xlane.xlu0 %1038
        %1040 = vadd.xlane.f32.xlu0 %v1029
        %v1041 = vpop.xlane.xlu0 %1040
        %v1042 = vrcp.pop 128.0
        %v1043 = vmul.f32 %v1035, %v1042
        %v1044 = vmul.f32 %v1037, %v1042
        %v1045 = vmul.f32 %v1039, %v1042
        %v1046 = vmul.f32 %v1041, %v1042
        %v1047 = vsub.f32 %v1026, %v1043
        %v1048 = vsub.f32 %v1027, %v1044
        %v1049 = vsub.f32 %v1028, %v1045
        %v1050 = vsub.f32 %v1029, %v1046
        %v1051 = vmul.f32 %v1047, %v1047
        %v1052 = vmul.f32 %v1048, %v1048
        %v1053 = vmul.f32 %v1049, %v1049
        %v1054 = vmul.f32 %v1050, %v1050
        %1055 = vadd.xlane.f32.xlu0 %v1051
        %v1056 = vpop.xlane.xlu0 %1055
        %1057 = vadd.xlane.f32.xlu0 %v1052
        %v1058 = vpop.xlane.xlu0 %1057
        %1059 = vadd.xlane.f32.xlu0 %v1053
        %v1060 = vpop.xlane.xlu0 %1059
        %1061 = vadd.xlane.f32.xlu0 %v1054
        %v1062 = vpop.xlane.xlu0 %1061
        %v1063 = vmul.f32 %v1056, 0.007874016
        %v1064 = vmul.f32 %v1058, 0.007874016
        %v1065 = vmul.f32 %v1060, 0.007874016
        %v1066 = vmul.f32 %v1062, 0.007874016
        %v1067 = vrsqrt.pop %v1063
        %v1068 = vmul.f32 %v1063, %v1067
        %vm1069 = vcmp.eq.f32.partialorder %v1063, inf
        %v1070 = vsel %vm1069, %v1063, %v1068
        %vm1071 = vcmp.eq.f32.partialorder %v1063, 0.0
        %v1072 = vand.u32 %v1063, 2147483648
        %v1073 = vsel %vm1071, %v1072, %v1070
        %v1074 = vrsqrt.pop %v1064
        %v1075 = vmul.f32 %v1064, %v1074
        %vm1076 = vcmp.eq.f32.partialorder %v1064, inf
        %v1077 = vsel %vm1076, %v1064, %v1075
        %vm1078 = vcmp.eq.f32.partialorder %v1064, 0.0
        %v1079 = vand.u32 %v1064, 2147483648
        %v1080 = vsel %vm1078, %v1079, %v1077
        %v1081 = vrsqrt.pop %v1065
        %v1082 = vmul.f32 %v1065, %v1081
        %vm1083 = vcmp.eq.f32.partialorder %v1065, inf
        %v1084 = vsel %vm1083, %v1065, %v1082
        %vm1085 = vcmp.eq.f32.partialorder %v1065, 0.0
        %v1086 = vand.u32 %v1065, 2147483648
        %v1087 = vsel %vm1085, %v1086, %v1084
        %v1088 = vrsqrt.pop %v1066
        %v1089 = vmul.f32 %v1066, %v1088
        %vm1090 = vcmp.eq.f32.partialorder %v1066, inf
        %v1091 = vsel %vm1090, %v1066, %v1089
        %vm1092 = vcmp.eq.f32.partialorder %v1066, 0.0
        %v1093 = vand.u32 %v1066, 2147483648
        %v1094 = vsel %vm1092, %v1093, %v1091
        %v1095 = vadd.f32 %v1073, 1e-06
        %v1096 = vadd.f32 %v1080, 1e-06
        %v1097 = vadd.f32 %v1087, 1e-06
        %v1098 = vadd.f32 %v1094, 1e-06
        %v1099 = vrcp.pop %v1095
        %v1100 = vmul.f32 1.0, %v1099
        %v1101 = vrcp.pop %v1096
        %v1102 = vmul.f32 1.0, %v1101
        %v1103 = vrcp.pop %v1097
        %v1104 = vmul.f32 1.0, %v1103
        %v1105 = vrcp.pop %v1098
        %v1106 = vmul.f32 1.0, %v1105
        %v1107 = vmul.f32 %v1047, %v1100
        %v1108 = vmul.f32 %v1048, %v1102
        %v1109 = vmul.f32 %v1049, %v1104
        %v1110 = vmul.f32 %v1050, %v1106
        %v1112 = vlaneseq
        %v1113 = vshrl.u32 %v1112, 7
        %v1114 = vsub.s32 0, %v1113
        %v1115 = vrot.slane %v1032, %v1114
        %v1117 = vmul.f32 %v1115, %v1107
        %v1118 = vmul.f32 %v1115, %v1108
        %v1119 = vmul.f32 %v1115, %v1109
        %v1120 = vmul.f32 %v1115, %v1110
        %v1122 = vlaneseq
        %v1123 = vshrl.u32 %v1122, 7
        %v1124 = vsub.s32 0, %v1123
        %v1125 = vrot.slane %v1033, %v1124
        %v1127 = vadd.f32 %v1117, %v1125
        %v1128 = vadd.f32 %v1118, %v1125
        %v1129 = vadd.f32 %v1119, %v1125
        %v1130 = vadd.f32 %v1120, %v1125
        %v1131 = vpack.c.bf16 %v1128, %v1127
        %v1132 = vpack.c.bf16 %v1130, %v1129
        %v1133 = vld [vmem:[%s827] sm:$0xf]
        %v1134 = vld [vmem:[%s827 + $0x4] sm:$0xf]
        %v1135 = vld [vmem:[%s827 + $0x8] sm:$0xf]
        %v1136 = vld [vmem:[%s827 + $0xc] sm:$0xf]
        %v1137 = vld [vmem:[%s827 + $0x10] sm:$0xf]
        %v1138 = vld [vmem:[%s827 + $0x14] sm:$0xf]
        %v1139 = vld [vmem:[%s827 + $0x18] sm:$0xf]
        %v1140 = vld [vmem:[%s827 + $0x1c] sm:$0xf]
        %v1141 = vld [vmem:[%s827 + $0x20] sm:$0xf]
        %v1142 = vld [vmem:[%s827 + $0x24] sm:$0xf]
        %v1143 = vld [vmem:[%s827 + $0x28] sm:$0xf]
        %v1144 = vld [vmem:[%s827 + $0x2c] sm:$0xf]
        %v1145 = vld [vmem:[%s827 + $0x30] sm:$0xf]
        %v1146 = vld [vmem:[%s827 + $0x34] sm:$0xf]
        %v1147 = vld [vmem:[%s827 + $0x38] sm:$0xf]
        %v1148 = vld [vmem:[%s827 + $0x3c] sm:$0xf]
        %v1149 = vld [vmem:[%s989] sm:$0x1]
        %v1151 = vlaneseq
        %v1152 = vshrl.u32 %v1151, 7
        %v1153 = vsub.s32 0, %v1152
        %v1154 = vrot.slane %v1149, %v1153
        %v1172 = vunpack.c.l.b16 %v1133
        %v1173 = vunpack.c.l.b16 %v1134
        %v1174 = vunpack.c.l.b16 %v1135
        %v1175 = vunpack.c.l.b16 %v1136
        %v1176 = vunpack.c.l.b16 %v1137
        %v1177 = vunpack.c.l.b16 %v1138
        %v1178 = vunpack.c.l.b16 %v1139
        %v1179 = vunpack.c.l.b16 %v1140
        %v1180 = vunpack.c.l.b16 %v1141
        %v1181 = vunpack.c.l.b16 %v1142
        %v1182 = vunpack.c.l.b16 %v1143
        %v1183 = vunpack.c.l.b16 %v1144
        %v1184 = vunpack.c.l.b16 %v1145
        %v1185 = vunpack.c.l.b16 %v1146
        %v1186 = vunpack.c.l.b16 %v1147
        %v1187 = vunpack.c.l.b16 %v1148
        %v1188 = vpack.c.b16 %v1173, %v1172
        %v1189 = vpack.c.b16 %v1175, %v1174
        %v1190 = vpack.c.b16 %v1177, %v1176
        %v1191 = vpack.c.b16 %v1179, %v1178
        %v1192 = vpack.c.b16 %v1181, %v1180
        %v1193 = vpack.c.b16 %v1183, %v1182
        %v1194 = vpack.c.b16 %v1185, %v1184
        %v1195 = vpack.c.b16 %v1187, %v1186
        %1204 = vmatprep.subr.bf16.mxu0 0
        %1205 = vmatpush1.bf16.msra.mxu0 %v1195
        %1206 = vmatprep.subr.bf16.mxu0 0
        %1207 = vmatpush1.bf16.msra.mxu0 %v1194
        %1208 = vmatprep.subr.bf16.mxu0 0
        %1209 = vmatpush1.bf16.msra.mxu0 %v1193
        %1210 = vmatprep.subr.bf16.mxu0 0
        %1211 = vmatpush1.bf16.msra.mxu0 %v1192
        %1212 = vmatprep.subr.bf16.mxu0 0
        %1213 = vmatpush1.bf16.msra.mxu0 %v1191
        %1214 = vmatprep.subr.bf16.mxu0 0
        %1215 = vmatpush1.bf16.msra.mxu0 %v1190
        %1216 = vmatprep.subr.bf16.mxu0 0
        %1217 = vmatpush1.bf16.msra.mxu0 %v1189
        %1218 = vmatprep.subr.bf16.mxu0 0
        %1219 = vmatpush1.bf16.msra.mxu0 %v1188
        %1220 = vmatprep.subr.bf16.mxu0 0
        %1221 = vmatpush2.bf16.msra.mxu0 0
        %1222 = vmatprep.subr.bf16.mxu0 0
        %1223 = vmatpush2.bf16.msra.mxu0 0
        %1224 = vmatprep.subr.bf16.mxu0 0
        %1225 = vmatpush2.bf16.msra.mxu0 0
        %1226 = vmatprep.subr.bf16.mxu0 0
        %1227 = vmatpush2.bf16.msra.mxu0 0
        %1228 = vmatprep.subr.bf16.mxu0 0
        %1229 = vmatpush2.bf16.msra.mxu0 0
        %1230 = vmatprep.subr.bf16.mxu0 0
        %1231 = vmatpush2.bf16.msra.mxu0 0
        %1232 = vmatprep.subr.bf16.mxu0 0
        %1233 = vmatpush2.bf16.msra.mxu0 0
        %1234 = vmatprep.subr.bf16.mxu0 0
        %1235 = vmatpush2.bf16.msra.mxu0 0
        %1236 = vmatprep.mubr.bf16.mxu0 0
        %1237 = vmatmul.mubr.bf16.gmra.mxu0 %v1131
        %v1238 = vpop.f32.mrf.mxu0
        %v1239 = vadd.f32 %v1154, %v1238
        %v1240 = vpop.f32.mrf.mxu0
        %v1241 = vpop.f32.mrf.mxu0
        %v1242 = vadd.f32 %v1154, %v1241
        %v1243 = vpop.f32.mrf.mxu0
        %1244 = vmatprep.mubr.bf16.mxu0 0
        %1245 = vmatmul.mubr.bf16.gmra.mxu0 %v1132
        %v1246 = vpop.f32.mrf.mxu0
        %v1247 = vadd.f32 %v1154, %v1246
        %v1248 = vpop.f32.mrf.mxu0
        %v1249 = vpop.f32.mrf.mxu0
        %v1250 = vadd.f32 %v1154, %v1249
        %v1251 = vpop.f32.mrf.mxu0
        %1252 = vdwg.mxu0
        %v1253 = vmul.f32 %v1239, 0.17677669
        %v1254 = vmul.f32 %v1242, 0.17677669
        %v1255 = vmul.f32 %v1247, 0.17677669
        %v1256 = vmul.f32 %v1250, 0.17677669
        %v1257 = vld [vmem:[%s836] sm:$0xf]
        %v1258 = vld [vmem:[%s836 + $0x4] sm:$0xf]
        %v1259 = vld [vmem:[%s836 + $0x8] sm:$0xf]
        %v1260 = vld [vmem:[%s836 + $0xc] sm:$0xf]
        %v1261 = vld [vmem:[%s836 + $0x10] sm:$0xf]
        %v1262 = vld [vmem:[%s836 + $0x14] sm:$0xf]
        %v1263 = vld [vmem:[%s836 + $0x18] sm:$0xf]
        %v1264 = vld [vmem:[%s836 + $0x1c] sm:$0xf]
        %v1265 = vld [vmem:[%s836 + $0x20] sm:$0xf]
        %v1266 = vld [vmem:[%s836 + $0x24] sm:$0xf]
        %v1267 = vld [vmem:[%s836 + $0x28] sm:$0xf]
        %v1268 = vld [vmem:[%s836 + $0x2c] sm:$0xf]
        %v1269 = vld [vmem:[%s836 + $0x30] sm:$0xf]
        %v1270 = vld [vmem:[%s836 + $0x34] sm:$0xf]
        %v1271 = vld [vmem:[%s836 + $0x38] sm:$0xf]
        %v1272 = vld [vmem:[%s836 + $0x3c] sm:$0xf]
        %v1273 = vld [vmem:[%s992] sm:$0x1]
        %v1275 = vlaneseq
        %v1276 = vshrl.u32 %v1275, 7
        %v1277 = vsub.s32 0, %v1276
        %v1278 = vrot.slane %v1273, %v1277
        %v1296 = vunpack.c.l.b16 %v1257
        %v1297 = vunpack.c.l.b16 %v1258
        %v1298 = vunpack.c.l.b16 %v1259
        %v1299 = vunpack.c.l.b16 %v1260
        %v1300 = vunpack.c.l.b16 %v1261
        %v1301 = vunpack.c.l.b16 %v1262
        %v1302 = vunpack.c.l.b16 %v1263
        %v1303 = vunpack.c.l.b16 %v1264
        %v1304 = vunpack.c.l.b16 %v1265
        %v1305 = vunpack.c.l.b16 %v1266
        %v1306 = vunpack.c.l.b16 %v1267
        %v1307 = vunpack.c.l.b16 %v1268
        %v1308 = vunpack.c.l.b16 %v1269
        %v1309 = vunpack.c.l.b16 %v1270
        %v1310 = vunpack.c.l.b16 %v1271
        %v1311 = vunpack.c.l.b16 %v1272
        %v1312 = vpack.c.b16 %v1297, %v1296
        %v1313 = vpack.c.b16 %v1299, %v1298
        %v1314 = vpack.c.b16 %v1301, %v1300
        %v1315 = vpack.c.b16 %v1303, %v1302
        %v1316 = vpack.c.b16 %v1305, %v1304
        %v1317 = vpack.c.b16 %v1307, %v1306
        %v1318 = vpack.c.b16 %v1309, %v1308
        %v1319 = vpack.c.b16 %v1311, %v1310
        %1328 = vmatprep.subr.bf16.mxu0 0
        %1329 = vmatpush1.bf16.msra.mxu0 %v1319
        %1330 = vmatprep.subr.bf16.mxu0 0
        %1331 = vmatpush1.bf16.msra.mxu0 %v1318
        %1332 = vmatprep.subr.bf16.mxu0 0
        %1333 = vmatpush1.bf16.msra.mxu0 %v1317
        %1334 = vmatprep.subr.bf16.mxu0 0
        %1335 = vmatpush1.bf16.msra.mxu0 %v1316
        %1336 = vmatprep.subr.bf16.mxu0 0
        %1337 = vmatpush1.bf16.msra.mxu0 %v1315
        %1338 = vmatprep.subr.bf16.mxu0 0
        %1339 = vmatpush1.bf16.msra.mxu0 %v1314
        %1340 = vmatprep.subr.bf16.mxu0 0
        %1341 = vmatpush1.bf16.msra.mxu0 %v1313
        %1342 = vmatprep.subr.bf16.mxu0 0
        %1343 = vmatpush1.bf16.msra.mxu0 %v1312
        %1344 = vmatprep.subr.bf16.mxu0 0
        %1345 = vmatpush2.bf16.msra.mxu0 0
        %1346 = vmatprep.subr.bf16.mxu0 0
        %1347 = vmatpush2.bf16.msra.mxu0 0
        %1348 = vmatprep.subr.bf16.mxu0 0
        %1349 = vmatpush2.bf16.msra.mxu0 0
        %1350 = vmatprep.subr.bf16.mxu0 0
        %1351 = vmatpush2.bf16.msra.mxu0 0
        %1352 = vmatprep.subr.bf16.mxu0 0
        %1353 = vmatpush2.bf16.msra.mxu0 0
        %1354 = vmatprep.subr.bf16.mxu0 0
        %1355 = vmatpush2.bf16.msra.mxu0 0
        %1356 = vmatprep.subr.bf16.mxu0 0
        %1357 = vmatpush2.bf16.msra.mxu0 0
        %1358 = vmatprep.subr.bf16.mxu0 0
        %1359 = vmatpush2.bf16.msra.mxu0 0
        %1360 = vmatprep.mubr.bf16.mxu0 0
        %1361 = vmatmul.mubr.bf16.gmra.mxu0 %v1131
        %v1362 = vpop.f32.mrf.mxu0
        %v1363 = vadd.f32 %v1278, %v1362
        %v1364 = vpop.f32.mrf.mxu0
        %v1365 = vpop.f32.mrf.mxu0
        %v1366 = vadd.f32 %v1278, %v1365
        %v1367 = vpop.f32.mrf.mxu0
        %1368 = vmatprep.mubr.bf16.mxu0 0
        %1369 = vmatmul.mubr.bf16.gmra.mxu0 %v1132
        %v1370 = vpop.f32.mrf.mxu0
        %v1371 = vadd.f32 %v1278, %v1370
        %v1372 = vpop.f32.mrf.mxu0
        %v1373 = vpop.f32.mrf.mxu0
        %v1374 = vadd.f32 %v1278, %v1373
        %v1375 = vpop.f32.mrf.mxu0
        %1376 = vdwg.mxu0
        %v1377 = vld [vmem:[%s845] sm:$0xf]
        %v1378 = vld [vmem:[%s845 + $0x4] sm:$0xf]
        %v1379 = vld [vmem:[%s845 + $0x8] sm:$0xf]
        %v1380 = vld [vmem:[%s845 + $0xc] sm:$0xf]
        %v1381 = vld [vmem:[%s845 + $0x10] sm:$0xf]
        %v1382 = vld [vmem:[%s845 + $0x14] sm:$0xf]
        %v1383 = vld [vmem:[%s845 + $0x18] sm:$0xf]
        %v1384 = vld [vmem:[%s845 + $0x1c] sm:$0xf]
        %v1385 = vld [vmem:[%s845 + $0x20] sm:$0xf]
        %v1386 = vld [vmem:[%s845 + $0x24] sm:$0xf]
        %v1387 = vld [vmem:[%s845 + $0x28] sm:$0xf]
        %v1388 = vld [vmem:[%s845 + $0x2c] sm:$0xf]
        %v1389 = vld [vmem:[%s845 + $0x30] sm:$0xf]
        %v1390 = vld [vmem:[%s845 + $0x34] sm:$0xf]
        %v1391 = vld [vmem:[%s845 + $0x38] sm:$0xf]
        %v1392 = vld [vmem:[%s845 + $0x3c] sm:$0xf]
        %v1393 = vld [vmem:[%s995] sm:$0x1]
        %v1395 = vlaneseq
        %v1396 = vshrl.u32 %v1395, 7
        %v1397 = vsub.s32 0, %v1396
        %v1398 = vrot.slane %v1393, %v1397
        %v1416 = vunpack.c.l.b16 %v1377
        %v1417 = vunpack.c.l.b16 %v1378
        %v1418 = vunpack.c.l.b16 %v1379
        %v1419 = vunpack.c.l.b16 %v1380
        %v1420 = vunpack.c.l.b16 %v1381
        %v1421 = vunpack.c.l.b16 %v1382
        %v1422 = vunpack.c.l.b16 %v1383
        %v1423 = vunpack.c.l.b16 %v1384
        %v1424 = vunpack.c.l.b16 %v1385
        %v1425 = vunpack.c.l.b16 %v1386
        %v1426 = vunpack.c.l.b16 %v1387
        %v1427 = vunpack.c.l.b16 %v1388
        %v1428 = vunpack.c.l.b16 %v1389
        %v1429 = vunpack.c.l.b16 %v1390
        %v1430 = vunpack.c.l.b16 %v1391
        %v1431 = vunpack.c.l.b16 %v1392
        %v1432 = vpack.c.b16 %v1417, %v1416
        %v1433 = vpack.c.b16 %v1419, %v1418
        %v1434 = vpack.c.b16 %v1421, %v1420
        %v1435 = vpack.c.b16 %v1423, %v1422
        %v1436 = vpack.c.b16 %v1425, %v1424
        %v1437 = vpack.c.b16 %v1427, %v1426
        %v1438 = vpack.c.b16 %v1429, %v1428
        %v1439 = vpack.c.b16 %v1431, %v1430
        %1448 = vmatprep.subr.bf16.mxu0 0
        %1449 = vmatpush1.bf16.msra.mxu0 %v1439
        %1450 = vmatprep.subr.bf16.mxu0 0
        %1451 = vmatpush1.bf16.msra.mxu0 %v1438
        %1452 = vmatprep.subr.bf16.mxu0 0
        %1453 = vmatpush1.bf16.msra.mxu0 %v1437
        %1454 = vmatprep.subr.bf16.mxu0 0
        %1455 = vmatpush1.bf16.msra.mxu0 %v1436
        %1456 = vmatprep.subr.bf16.mxu0 0
        %1457 = vmatpush1.bf16.msra.mxu0 %v1435
        %1458 = vmatprep.subr.bf16.mxu0 0
        %1459 = vmatpush1.bf16.msra.mxu0 %v1434
        %1460 = vmatprep.subr.bf16.mxu0 0
        %1461 = vmatpush1.bf16.msra.mxu0 %v1433
        %1462 = vmatprep.subr.bf16.mxu0 0
        %1463 = vmatpush1.bf16.msra.mxu0 %v1432
        %1464 = vmatprep.subr.bf16.mxu0 0
        %1465 = vmatpush2.bf16.msra.mxu0 0
        %1466 = vmatprep.subr.bf16.mxu0 0
        %1467 = vmatpush2.bf16.msra.mxu0 0
        %1468 = vmatprep.subr.bf16.mxu0 0
        %1469 = vmatpush2.bf16.msra.mxu0 0
        %1470 = vmatprep.subr.bf16.mxu0 0
        %1471 = vmatpush2.bf16.msra.mxu0 0
        %1472 = vmatprep.subr.bf16.mxu0 0
        %1473 = vmatpush2.bf16.msra.mxu0 0
        %1474 = vmatprep.subr.bf16.mxu0 0
        %1475 = vmatpush2.bf16.msra.mxu0 0
        %1476 = vmatprep.subr.bf16.mxu0 0
        %1477 = vmatpush2.bf16.msra.mxu0 0
        %1478 = vmatprep.subr.bf16.mxu0 0
        %1479 = vmatpush2.bf16.msra.mxu0 0
        %1480 = vmatprep.mubr.bf16.mxu0 0
        %1481 = vmatmul.mubr.bf16.gmra.mxu0 %v1131
        %v1482 = vpop.f32.mrf.mxu0
        %v1483 = vadd.f32 %v1398, %v1482
        %v1484 = vpop.f32.mrf.mxu0
        %v1485 = vpop.f32.mrf.mxu0
        %v1486 = vadd.f32 %v1398, %v1485
        %v1487 = vpop.f32.mrf.mxu0
        %1488 = vmatprep.mubr.bf16.mxu0 0
        %1489 = vmatmul.mubr.bf16.gmra.mxu0 %v1132
        %v1490 = vpop.f32.mrf.mxu0
        %v1491 = vadd.f32 %v1398, %v1490
        %v1492 = vpop.f32.mrf.mxu0
        %v1493 = vpop.f32.mrf.mxu0
        %v1494 = vadd.f32 %v1398, %v1493
        %v1495 = vpop.f32.mrf.mxu0
        %1496 = vdwg.mxu0
        %v1497 = vpack.c.bf16 %v1254, %v1253
        %v1498 = vpack.c.bf16 %v1256, %v1255
        %v1499 = vpack.c.bf16 %v1366, %v1363
        %v1500 = vpack.c.bf16 %v1374, %v1371
        %v1501 = vpack.c.bf16 %v1486, %v1483
        %v1502 = vpack.c.bf16 %v1494, %v1491
        %v1503 = vld [vmem:[%s854] sm:$0xf]
        %v1504 = vld [vmem:[%s854 + $0x4] sm:$0xf]
        %v1505 = vld [vmem:[%s854 + $0x8] sm:$0xf]
        %v1506 = vld [vmem:[%s854 + $0xc] sm:$0xf]
        %v1507 = vld [vmem:[%s854 + $0x10] sm:$0xf]
        %v1508 = vld [vmem:[%s854 + $0x14] sm:$0xf]
        %v1509 = vld [vmem:[%s854 + $0x18] sm:$0xf]
        %v1510 = vld [vmem:[%s854 + $0x1c] sm:$0xf]
        %v1511 = vld [vmem:[%s854 + $0x20] sm:$0xf]
        %v1512 = vld [vmem:[%s854 + $0x24] sm:$0xf]
        %v1513 = vld [vmem:[%s854 + $0x28] sm:$0xf]
        %v1514 = vld [vmem:[%s854 + $0x2c] sm:$0xf]
        %v1515 = vld [vmem:[%s854 + $0x30] sm:$0xf]
        %v1516 = vld [vmem:[%s854 + $0x34] sm:$0xf]
        %v1517 = vld [vmem:[%s854 + $0x38] sm:$0xf]
        %v1518 = vld [vmem:[%s854 + $0x3c] sm:$0xf]
        %vm1519 = vcmask 261120
        %v1521 = vsel %vm1519, %v1497, 0
        %v1524 = vsel %vm1519, %v1499, 0
        %1526 = vmatprep.subr.bf16.mxu0 0
        %1527 = vmatpush1.bf16.xpose.msra.mxu0 0
        %1528 = vmatprep.subr.bf16.mxu0 0
        %1529 = vmatpush1.bf16.xpose.msra.mxu0 0
        %1530 = vmatprep.subr.bf16.mxu0 0
        %1531 = vmatpush1.bf16.xpose.msra.mxu0 0
        %1532 = vmatprep.subr.bf16.mxu0 0
        %1533 = vmatpush1.bf16.xpose.msra.mxu0 0
        %1534 = vmatprep.subr.bf16.mxu0 0
        %1535 = vmatpush1.bf16.xpose.msra.mxu0 0
        %1536 = vmatprep.subr.bf16.mxu0 0
        %1537 = vmatpush1.bf16.xpose.msra.mxu0 0
        %1538 = vmatprep.subr.bf16.mxu0 0
        %1539 = vmatpush1.bf16.xpose.msra.mxu0 0
        %1540 = vmatprep.subr.bf16.mxu0 0
        %1541 = vmatpush1.bf16.xpose.msra.mxu0 %v1524
        %1542 = vmatprep.subr.bf16.mxu0 0
        %1543 = vmatpush2.bf16.xpose.msra.mxu0 0
        %1544 = vmatprep.subr.bf16.mxu0 0
        %1545 = vmatpush2.bf16.xpose.msra.mxu0 0
        %1546 = vmatprep.subr.bf16.mxu0 0
        %1547 = vmatpush2.bf16.xpose.msra.mxu0 0
        %1548 = vmatprep.subr.bf16.mxu0 0
        %1549 = vmatpush2.bf16.xpose.msra.mxu0 0
        %1550 = vmatprep.subr.bf16.mxu0 0
        %1551 = vmatpush2.bf16.xpose.msra.mxu0 0
        %1552 = vmatprep.subr.bf16.mxu0 0
        %1553 = vmatpush2.bf16.xpose.msra.mxu0 0
        %1554 = vmatprep.subr.bf16.mxu0 0
        %1555 = vmatpush2.bf16.xpose.msra.mxu0 0
        %1556 = vmatprep.subr.bf16.mxu0 0
        %1557 = vmatpush2.bf16.xpose.msra.mxu0 0
        %1558 = vmatprep.mubr.bf16.mxu0 0
        %1559 = vmatmul.mubr.bf16.gmra.mxu0 %v1521
        %v1560 = vpop.f32.mrf.mxu0
        %v1561 = vadd.f32 %v1030, %v1560
        %v1562 = vpop.f32.mrf.mxu0
        %v1563 = vpop.f32.mrf.mxu0
        %v1564 = vadd.f32 %v1031, %v1563
        %v1565 = vpop.f32.mrf.mxu0
        %1566 = vdwg.mxu0
        %v1568 = vsel %vm1519, %v1498, 0
        %v1571 = vsel %vm1519, %v1500, 0
        %1573 = vmatprep.subr.bf16.mxu0 0
        %1574 = vmatpush1.bf16.xpose.msra.mxu0 0
        %1575 = vmatprep.subr.bf16.mxu0 0
        %1576 = vmatpush1.bf16.xpose.msra.mxu0 0
        %1577 = vmatprep.subr.bf16.mxu0 0
        %1578 = vmatpush1.bf16.xpose.msra.mxu0 0
        %1579 = vmatprep.subr.bf16.mxu0 0
        %1580 = vmatpush1.bf16.xpose.msra.mxu0 0
        %1581 = vmatprep.subr.bf16.mxu0 0
        %1582 = vmatpush1.bf16.xpose.msra.mxu0 0
        %1583 = vmatprep.subr.bf16.mxu0 0
        %1584 = vmatpush1.bf16.xpose.msra.mxu0 0
        %1585 = vmatprep.subr.bf16.mxu0 0
        %1586 = vmatpush1.bf16.xpose.msra.mxu0 0
        %1587 = vmatprep.subr.bf16.mxu0 0
        %1588 = vmatpush1.bf16.xpose.msra.mxu0 %v1571
        %1589 = vmatprep.subr.bf16.mxu0 0
        %1590 = vmatpush2.bf16.xpose.msra.mxu0 0
        %1591 = vmatprep.subr.bf16.mxu0 0
        %1592 = vmatpush2.bf16.xpose.msra.mxu0 0
        %1593 = vmatprep.subr.bf16.mxu0 0
        %1594 = vmatpush2.bf16.xpose.msra.mxu0 0
        %1595 = vmatprep.subr.bf16.mxu0 0
        %1596 = vmatpush2.bf16.xpose.msra.mxu0 0
        %1597 = vmatprep.subr.bf16.mxu0 0
        %1598 = vmatpush2.bf16.xpose.msra.mxu0 0
        %1599 = vmatprep.subr.bf16.mxu0 0
        %1600 = vmatpush2.bf16.xpose.msra.mxu0 0
        %1601 = vmatprep.subr.bf16.mxu0 0
        %1602 = vmatpush2.bf16.xpose.msra.mxu0 0
        %1603 = vmatprep.subr.bf16.mxu0 0
        %1604 = vmatpush2.bf16.xpose.msra.mxu0 0
        %1605 = vmatprep.mubr.bf16.mxu0 0
        %1606 = vmatmul.mubr.bf16.gmra.mxu0 %v1568
        %v1607 = vpop.f32.mrf.mxu0
        %v1608 = vadd.f32 %v1030, %v1607
        %v1609 = vpop.f32.mrf.mxu0
        %v1610 = vpop.f32.mrf.mxu0
        %v1611 = vadd.f32 %v1031, %v1610
        %v1612 = vpop.f32.mrf.mxu0
        %1613 = vdwg.mxu0
        %vm1614 = vcmask 130048
        %v1615 = vsel %vm1614, %v1561, -inf
        %1616 = vmax.xlane.f32.xlu0 %v1615
        %v1617 = vpop.xlane.xlu0 %1616
        %v1618 = vsel %vm1614, %v1564, -inf
        %1619 = vmax.xlane.f32.xlu0 %v1618
        %v1620 = vpop.xlane.xlu0 %1619
        %v1621 = vsel %vm1614, %v1608, -inf
        %1622 = vmax.xlane.f32.xlu0 %v1621
        %v1623 = vpop.xlane.xlu0 %1622
        %v1624 = vsel %vm1614, %v1611, -inf
        %1625 = vmax.xlane.f32.xlu0 %v1624
        %v1626 = vpop.xlane.xlu0 %1625
        %v1627 = vsub.f32 %v1561, %v1617
        %v1628 = vsub.f32 %v1564, %v1620
        %v1629 = vsub.f32 %v1608, %v1623
        %v1630 = vsub.f32 %v1611, %v1626
        %v1631 = vmul.f32 %v1627, 1.442695
        %v1632 = vpow.pop %v1631
        %v1633 = vmul.f32 %v1628, 1.442695
        %v1634 = vpow.pop %v1633
        %v1635 = vmul.f32 %v1629, 1.442695
        %v1636 = vpow.pop %v1635
        %v1637 = vmul.f32 %v1630, 1.442695
        %v1638 = vpow.pop %v1637
        %v1639 = vsel %vm1614, %v1632, 0.0
        %1640 = vadd.xlane.f32.xlu0 %v1639
        %v1641 = vpop.xlane.xlu0 %1640
        %v1642 = vsel %vm1614, %v1634, 0.0
        %1643 = vadd.xlane.f32.xlu0 %v1642
        %v1644 = vpop.xlane.xlu0 %1643
        %v1645 = vsel %vm1614, %v1636, 0.0
        %1646 = vadd.xlane.f32.xlu0 %v1645
        %v1647 = vpop.xlane.xlu0 %1646
        %v1648 = vsel %vm1614, %v1638, 0.0
        %1649 = vadd.xlane.f32.xlu0 %v1648
        %v1650 = vpop.xlane.xlu0 %1649
        %v1651 = vrcp.pop %v1641
        %v1652 = vrcp.pop %v1644
        %v1653 = vrcp.pop %v1647
        %v1654 = vrcp.pop %v1650
        %v1655 = vmul.f32 %v1632, %v1651
        %v1656 = vmul.f32 %v1634, %v1652
        %v1657 = vmul.f32 %v1636, %v1653
        %v1658 = vmul.f32 %v1638, %v1654
        %v1659 = vpack.c.bf16 %v1656, %v1655
        %v1660 = vpack.c.bf16 %v1658, %v1657
        %v1662 = vsel %vm1614, %v1659, 0
        %1664 = vmatprep.subr.bf16.mxu0 0
        %1665 = vmatpush1.bf16.msra.mxu0 0
        %1666 = vmatprep.subr.bf16.mxu0 0
        %1667 = vmatpush1.bf16.msra.mxu0 0
        %1668 = vmatprep.subr.bf16.mxu0 0
        %1669 = vmatpush1.bf16.msra.mxu0 0
        %1670 = vmatprep.subr.bf16.mxu0 0
        %1671 = vmatpush1.bf16.msra.mxu0 0
        %1672 = vmatprep.subr.bf16.mxu0 0
        %1673 = vmatpush1.bf16.msra.mxu0 0
        %1674 = vmatprep.subr.bf16.mxu0 0
        %1675 = vmatpush1.bf16.msra.mxu0 0
        %1676 = vmatprep.subr.bf16.mxu0 0
        %1677 = vmatpush1.bf16.msra.mxu0 0
        %1678 = vmatprep.subr.bf16.mxu0 0
        %1679 = vmatpush1.bf16.msra.mxu0 %v1501
        %1680 = vmatprep.subr.bf16.mxu0 0
        %1681 = vmatpush2.bf16.msra.mxu0 0
        %1682 = vmatprep.subr.bf16.mxu0 0
        %1683 = vmatpush2.bf16.msra.mxu0 0
        %1684 = vmatprep.subr.bf16.mxu0 0
        %1685 = vmatpush2.bf16.msra.mxu0 0
        %1686 = vmatprep.subr.bf16.mxu0 0
        %1687 = vmatpush2.bf16.msra.mxu0 0
        %1688 = vmatprep.subr.bf16.mxu0 0
        %1689 = vmatpush2.bf16.msra.mxu0 0
        %1690 = vmatprep.subr.bf16.mxu0 0
        %1691 = vmatpush2.bf16.msra.mxu0 0
        %1692 = vmatprep.subr.bf16.mxu0 0
        %1693 = vmatpush2.bf16.msra.mxu0 0
        %1694 = vmatprep.subr.bf16.mxu0 0
        %1695 = vmatpush2.bf16.msra.mxu0 0
        %1696 = vmatprep.mubr.bf16.mxu0 0
        %1697 = vmatmul.mubr.bf16.gmra.mxu0 %v1662
        %v1698 = vpop.f32.mrf.mxu0
        %v1699 = vadd.f32 0.0, %v1698
        %v1700 = vpop.f32.mrf.mxu0
        %v1701 = vpop.f32.mrf.mxu0
        %v1702 = vadd.f32 0.0, %v1701
        %v1703 = vpop.f32.mrf.mxu0
        %1704 = vdwg.mxu0
        %v1706 = vsel %vm1614, %v1660, 0
        %1708 = vmatprep.subr.bf16.mxu0 0
        %1709 = vmatpush1.bf16.msra.mxu0 0
        %1710 = vmatprep.subr.bf16.mxu0 0
        %1711 = vmatpush1.bf16.msra.mxu0 0
        %1712 = vmatprep.subr.bf16.mxu0 0
        %1713 = vmatpush1.bf16.msra.mxu0 0
        %1714 = vmatprep.subr.bf16.mxu0 0
        %1715 = vmatpush1.bf16.msra.mxu0 0
        %1716 = vmatprep.subr.bf16.mxu0 0
        %1717 = vmatpush1.bf16.msra.mxu0 0
        %1718 = vmatprep.subr.bf16.mxu0 0
        %1719 = vmatpush1.bf16.msra.mxu0 0
        %1720 = vmatprep.subr.bf16.mxu0 0
        %1721 = vmatpush1.bf16.msra.mxu0 0
        %1722 = vmatprep.subr.bf16.mxu0 0
        %1723 = vmatpush1.bf16.msra.mxu0 %v1502
        %1724 = vmatprep.subr.bf16.mxu0 0
        %1725 = vmatpush2.bf16.msra.mxu0 0
        %1726 = vmatprep.subr.bf16.mxu0 0
        %1727 = vmatpush2.bf16.msra.mxu0 0
        %1728 = vmatprep.subr.bf16.mxu0 0
        %1729 = vmatpush2.bf16.msra.mxu0 0
        %1730 = vmatprep.subr.bf16.mxu0 0
        %1731 = vmatpush2.bf16.msra.mxu0 0
        %1732 = vmatprep.subr.bf16.mxu0 0
        %1733 = vmatpush2.bf16.msra.mxu0 0
        %1734 = vmatprep.subr.bf16.mxu0 0
        %1735 = vmatpush2.bf16.msra.mxu0 0
        %1736 = vmatprep.subr.bf16.mxu0 0
        %1737 = vmatpush2.bf16.msra.mxu0 0
        %1738 = vmatprep.subr.bf16.mxu0 0
        %1739 = vmatpush2.bf16.msra.mxu0 0
        %1740 = vmatprep.mubr.bf16.mxu0 0
        %1741 = vmatmul.mubr.bf16.gmra.mxu0 %v1706
        %v1742 = vpop.f32.mrf.mxu0
        %v1743 = vadd.f32 0.0, %v1742
        %v1744 = vpop.f32.mrf.mxu0
        %v1745 = vpop.f32.mrf.mxu0
        %v1746 = vadd.f32 0.0, %v1745
        %v1747 = vpop.f32.mrf.mxu0
        %1748 = vdwg.mxu0
        %v1749 = vpack.c.bf16 %v1702, %v1699
        %v1750 = vpack.c.bf16 %v1746, %v1743
        %1752 = vrot.lane.b32.xlu0 %v1497, 96
        %v1753 = vpop.permute.xlu0 %1752
        %1755 = vrot.lane.b32.xlu0 %v1499, 96
        %v1756 = vpop.permute.xlu0 %1755
        %v1758 = vsel %vm1519, %v1753, 0
        %v1761 = vsel %vm1519, %v1756, 0
        %1763 = vmatprep.subr.bf16.mxu0 0
        %1764 = vmatpush1.bf16.xpose.msra.mxu0 0
        %1765 = vmatprep.subr.bf16.mxu0 0
        %1766 = vmatpush1.bf16.xpose.msra.mxu0 0
        %1767 = vmatprep.subr.bf16.mxu0 0
        %1768 = vmatpush1.bf16.xpose.msra.mxu0 0
        %1769 = vmatprep.subr.bf16.mxu0 0
        %1770 = vmatpush1.bf16.xpose.msra.mxu0 0
        %1771 = vmatprep.subr.bf16.mxu0 0
        %1772 = vmatpush1.bf16.xpose.msra.mxu0 0
        %1773 = vmatprep.subr.bf16.mxu0 0
        %1774 = vmatpush1.bf16.xpose.msra.mxu0 0
        %1775 = vmatprep.subr.bf16.mxu0 0
        %1776 = vmatpush1.bf16.xpose.msra.mxu0 0
        %1777 = vmatprep.subr.bf16.mxu0 0
        %1778 = vmatpush1.bf16.xpose.msra.mxu0 %v1761
        %1779 = vmatprep.subr.bf16.mxu0 0
        %1780 = vmatpush2.bf16.xpose.msra.mxu0 0
        %1781 = vmatprep.subr.bf16.mxu0 0
        %1782 = vmatpush2.bf16.xpose.msra.mxu0 0
        %1783 = vmatprep.subr.bf16.mxu0 0
        %1784 = vmatpush2.bf16.xpose.msra.mxu0 0
        %1785 = vmatprep.subr.bf16.mxu0 0
        %1786 = vmatpush2.bf16.xpose.msra.mxu0 0
        %1787 = vmatprep.subr.bf16.mxu0 0
        %1788 = vmatpush2.bf16.xpose.msra.mxu0 0
        %1789 = vmatprep.subr.bf16.mxu0 0
        %1790 = vmatpush2.bf16.xpose.msra.mxu0 0
        %1791 = vmatprep.subr.bf16.mxu0 0
        %1792 = vmatpush2.bf16.xpose.msra.mxu0 0
        %1793 = vmatprep.subr.bf16.mxu0 0
        %1794 = vmatpush2.bf16.xpose.msra.mxu0 0
        %1795 = vmatprep.mubr.bf16.mxu0 0
        %1796 = vmatmul.mubr.bf16.gmra.mxu0 %v1758
        %v1797 = vpop.f32.mrf.mxu0
        %v1798 = vadd.f32 %v1030, %v1797
        %v1799 = vpop.f32.mrf.mxu0
        %v1800 = vpop.f32.mrf.mxu0
        %v1801 = vadd.f32 %v1031, %v1800
        %v1802 = vpop.f32.mrf.mxu0
        %1803 = vdwg.mxu0
        %1805 = vrot.lane.b32.xlu0 %v1498, 96
        %v1806 = vpop.permute.xlu0 %1805
        %1808 = vrot.lane.b32.xlu0 %v1500, 96
        %v1809 = vpop.permute.xlu0 %1808
        %v1811 = vsel %vm1519, %v1806, 0
        %v1814 = vsel %vm1519, %v1809, 0
        %1816 = vmatprep.subr.bf16.mxu0 0
        %1817 = vmatpush1.bf16.xpose.msra.mxu0 0
        %1818 = vmatprep.subr.bf16.mxu0 0
        %1819 = vmatpush1.bf16.xpose.msra.mxu0 0
        %1820 = vmatprep.subr.bf16.mxu0 0
        %1821 = vmatpush1.bf16.xpose.msra.mxu0 0
        %1822 = vmatprep.subr.bf16.mxu0 0
        %1823 = vmatpush1.bf16.xpose.msra.mxu0 0
        %1824 = vmatprep.subr.bf16.mxu0 0
        %1825 = vmatpush1.bf16.xpose.msra.mxu0 0
        %1826 = vmatprep.subr.bf16.mxu0 0
        %1827 = vmatpush1.bf16.xpose.msra.mxu0 0
        %1828 = vmatprep.subr.bf16.mxu0 0
        %1829 = vmatpush1.bf16.xpose.msra.mxu0 0
        %1830 = vmatprep.subr.bf16.mxu0 0
        %1831 = vmatpush1.bf16.xpose.msra.mxu0 %v1814
        %1832 = vmatprep.subr.bf16.mxu0 0
        %1833 = vmatpush2.bf16.xpose.msra.mxu0 0
        %1834 = vmatprep.subr.bf16.mxu0 0
        %1835 = vmatpush2.bf16.xpose.msra.mxu0 0
        %1836 = vmatprep.subr.bf16.mxu0 0
        %1837 = vmatpush2.bf16.xpose.msra.mxu0 0
        %1838 = vmatprep.subr.bf16.mxu0 0
        %1839 = vmatpush2.bf16.xpose.msra.mxu0 0
        %1840 = vmatprep.subr.bf16.mxu0 0
        %1841 = vmatpush2.bf16.xpose.msra.mxu0 0
        %1842 = vmatprep.subr.bf16.mxu0 0
        %1843 = vmatpush2.bf16.xpose.msra.mxu0 0
        %1844 = vmatprep.subr.bf16.mxu0 0
        %1845 = vmatpush2.bf16.xpose.msra.mxu0 0
        %1846 = vmatprep.subr.bf16.mxu0 0
        %1847 = vmatpush2.bf16.xpose.msra.mxu0 0
        %1848 = vmatprep.mubr.bf16.mxu0 0
        %1849 = vmatmul.mubr.bf16.gmra.mxu0 %v1811
        %v1850 = vpop.f32.mrf.mxu0
        %v1851 = vadd.f32 %v1030, %v1850
        %v1852 = vpop.f32.mrf.mxu0
        %v1853 = vpop.f32.mrf.mxu0
        %v1854 = vadd.f32 %v1031, %v1853
        %v1855 = vpop.f32.mrf.mxu0
        %1856 = vdwg.mxu0
        %v1857 = vsel %vm1614, %v1798, -inf
        %1858 = vmax.xlane.f32.xlu0 %v1857
        %v1859 = vpop.xlane.xlu0 %1858
        %v1860 = vsel %vm1614, %v1801, -inf
        %1861 = vmax.xlane.f32.xlu0 %v1860
        %v1862 = vpop.xlane.xlu0 %1861
        %v1863 = vsel %vm1614, %v1851, -inf
        %1864 = vmax.xlane.f32.xlu0 %v1863
        %v1865 = vpop.xlane.xlu0 %1864
        %v1866 = vsel %vm1614, %v1854, -inf
        %1867 = vmax.xlane.f32.xlu0 %v1866
        %v1868 = vpop.xlane.xlu0 %1867
        %v1869 = vsub.f32 %v1798, %v1859
        %v1870 = vsub.f32 %v1801, %v1862
        %v1871 = vsub.f32 %v1851, %v1865
        %v1872 = vsub.f32 %v1854, %v1868
        %v1873 = vmul.f32 %v1869, 1.442695
        %v1874 = vpow.pop %v1873
        %v1875 = vmul.f32 %v1870, 1.442695
        %v1876 = vpow.pop %v1875
        %v1877 = vmul.f32 %v1871, 1.442695
        %v1878 = vpow.pop %v1877
        %v1879 = vmul.f32 %v1872, 1.442695
        %v1880 = vpow.pop %v1879
        %v1881 = vsel %vm1614, %v1874, 0.0
        %1882 = vadd.xlane.f32.xlu0 %v1881
        %v1883 = vpop.xlane.xlu0 %1882
        %v1884 = vsel %vm1614, %v1876, 0.0
        %1885 = vadd.xlane.f32.xlu0 %v1884
        %v1886 = vpop.xlane.xlu0 %1885
        %v1887 = vsel %vm1614, %v1878, 0.0
        %1888 = vadd.xlane.f32.xlu0 %v1887
        %v1889 = vpop.xlane.xlu0 %1888
        %v1890 = vsel %vm1614, %v1880, 0.0
        %1891 = vadd.xlane.f32.xlu0 %v1890
        %v1892 = vpop.xlane.xlu0 %1891
        %v1893 = vrcp.pop %v1883
        %v1894 = vrcp.pop %v1886
        %v1895 = vrcp.pop %v1889
        %v1896 = vrcp.pop %v1892
        %v1897 = vmul.f32 %v1874, %v1893
        %v1898 = vmul.f32 %v1876, %v1894
        %v1899 = vmul.f32 %v1878, %v1895
        %v1900 = vmul.f32 %v1880, %v1896
        %v1901 = vpack.c.bf16 %v1898, %v1897
        %v1902 = vpack.c.bf16 %v1900, %v1899
        %1904 = vrot.lane.b32.xlu0 %v1501, 96
        %v1905 = vpop.permute.xlu0 %1904
        %v1908 = vsel %vm1614, %v1901, 0
        %1910 = vmatprep.subr.bf16.mxu0 0
        %1911 = vmatpush1.bf16.msra.mxu0 0
        %1912 = vmatprep.subr.bf16.mxu0 0
        %1913 = vmatpush1.bf16.msra.mxu0 0
        %1914 = vmatprep.subr.bf16.mxu0 0
        %1915 = vmatpush1.bf16.msra.mxu0 0
        %1916 = vmatprep.subr.bf16.mxu0 0
        %1917 = vmatpush1.bf16.msra.mxu0 0
        %1918 = vmatprep.subr.bf16.mxu0 0
        %1919 = vmatpush1.bf16.msra.mxu0 0
        %1920 = vmatprep.subr.bf16.mxu0 0
        %1921 = vmatpush1.bf16.msra.mxu0 0
        %1922 = vmatprep.subr.bf16.mxu0 0
        %1923 = vmatpush1.bf16.msra.mxu0 0
        %1924 = vmatprep.subr.bf16.mxu0 0
        %1925 = vmatpush1.bf16.msra.mxu0 %v1905
        %1926 = vmatprep.subr.bf16.mxu0 0
        %1927 = vmatpush2.bf16.msra.mxu0 0
        %1928 = vmatprep.subr.bf16.mxu0 0
        %1929 = vmatpush2.bf16.msra.mxu0 0
        %1930 = vmatprep.subr.bf16.mxu0 0
        %1931 = vmatpush2.bf16.msra.mxu0 0
        %1932 = vmatprep.subr.bf16.mxu0 0
        %1933 = vmatpush2.bf16.msra.mxu0 0
        %1934 = vmatprep.subr.bf16.mxu0 0
        %1935 = vmatpush2.bf16.msra.mxu0 0
        %1936 = vmatprep.subr.bf16.mxu0 0
        %1937 = vmatpush2.bf16.msra.mxu0 0
        %1938 = vmatprep.subr.bf16.mxu0 0
        %1939 = vmatpush2.bf16.msra.mxu0 0
        %1940 = vmatprep.subr.bf16.mxu0 0
        %1941 = vmatpush2.bf16.msra.mxu0 0
        %1942 = vmatprep.mubr.bf16.mxu0 0
        %1943 = vmatmul.mubr.bf16.gmra.mxu0 %v1908
        %v1944 = vpop.f32.mrf.mxu0
        %v1945 = vadd.f32 0.0, %v1944
        %v1946 = vpop.f32.mrf.mxu0
        %v1947 = vpop.f32.mrf.mxu0
        %v1948 = vadd.f32 0.0, %v1947
        %v1949 = vpop.f32.mrf.mxu0
        %1950 = vdwg.mxu0
        %1952 = vrot.lane.b32.xlu0 %v1502, 96
        %v1953 = vpop.permute.xlu0 %1952
        %v1956 = vsel %vm1614, %v1902, 0
        %1958 = vmatprep.subr.bf16.mxu0 0
        %1959 = vmatpush1.bf16.msra.mxu0 0
        %1960 = vmatprep.subr.bf16.mxu0 0
        %1961 = vmatpush1.bf16.msra.mxu0 0
        %1962 = vmatprep.subr.bf16.mxu0 0
        %1963 = vmatpush1.bf16.msra.mxu0 0
        %1964 = vmatprep.subr.bf16.mxu0 0
        %1965 = vmatpush1.bf16.msra.mxu0 0
        %1966 = vmatprep.subr.bf16.mxu0 0
        %1967 = vmatpush1.bf16.msra.mxu0 0
        %1968 = vmatprep.subr.bf16.mxu0 0
        %1969 = vmatpush1.bf16.msra.mxu0 0
        %1970 = vmatprep.subr.bf16.mxu0 0
        %1971 = vmatpush1.bf16.msra.mxu0 0
        %1972 = vmatprep.subr.bf16.mxu0 0
        %1973 = vmatpush1.bf16.msra.mxu0 %v1953
        %1974 = vmatprep.subr.bf16.mxu0 0
        %1975 = vmatpush2.bf16.msra.mxu0 0
        %1976 = vmatprep.subr.bf16.mxu0 0
        %1977 = vmatpush2.bf16.msra.mxu0 0
        %1978 = vmatprep.subr.bf16.mxu0 0
        %1979 = vmatpush2.bf16.msra.mxu0 0
        %1980 = vmatprep.subr.bf16.mxu0 0
        %1981 = vmatpush2.bf16.msra.mxu0 0
        %1982 = vmatprep.subr.bf16.mxu0 0
        %1983 = vmatpush2.bf16.msra.mxu0 0
        %1984 = vmatprep.subr.bf16.mxu0 0
        %1985 = vmatpush2.bf16.msra.mxu0 0
        %1986 = vmatprep.subr.bf16.mxu0 0
        %1987 = vmatpush2.bf16.msra.mxu0 0
        %1988 = vmatprep.subr.bf16.mxu0 0
        %1989 = vmatpush2.bf16.msra.mxu0 0
        %1990 = vmatprep.mubr.bf16.mxu0 0
        %1991 = vmatmul.mubr.bf16.gmra.mxu0 %v1956
        %v1992 = vpop.f32.mrf.mxu0
        %v1993 = vadd.f32 0.0, %v1992
        %v1994 = vpop.f32.mrf.mxu0
        %v1995 = vpop.f32.mrf.mxu0
        %v1996 = vadd.f32 0.0, %v1995
        %v1997 = vpop.f32.mrf.mxu0
        %1998 = vdwg.mxu0
        %v1999 = vpack.c.bf16 %v1948, %v1945
        %v2000 = vpack.c.bf16 %v1996, %v1993
        %v2005 = vunpack.c.l.b16 %v1507
        %v2006 = vunpack.c.l.b16 %v1508
        %v2007 = vunpack.c.l.b16 %v1509
        %v2008 = vunpack.c.l.b16 %v1510
        %v2009 = vpack.c.b16 %v2006, %v2005
        %v2010 = vpack.c.b16 %v2008, %v2007
        %v2014 = vsel %vm1519, %v1999, 0
        %v2017 = vsel %vm1519, %v2000, 0
        %2019 = vmatprep.subr.bf16.mxu0 0
        %2020 = vmatpush1.bf16.msra.mxu0 0
        %2021 = vmatprep.subr.bf16.mxu0 0
        %2022 = vmatpush1.bf16.msra.mxu0 0
        %2023 = vmatprep.subr.bf16.mxu0 0
        %2024 = vmatpush1.bf16.msra.mxu0 0
        %2025 = vmatprep.subr.bf16.mxu0 0
        %2026 = vmatpush1.bf16.msra.mxu0 0
        %2027 = vmatprep.subr.bf16.mxu0 0
        %2028 = vmatpush1.bf16.msra.mxu0 0
        %2029 = vmatprep.subr.bf16.mxu0 0
        %2030 = vmatpush1.bf16.msra.mxu0 0
        %2031 = vmatprep.subr.bf16.mxu0 0
        %2032 = vmatpush1.bf16.msra.mxu0 %v2010
        %2033 = vmatprep.subr.bf16.mxu0 0
        %2034 = vmatpush1.bf16.msra.mxu0 %v2009
        %2035 = vmatprep.subr.bf16.mxu0 0
        %2036 = vmatpush2.bf16.msra.mxu0 0
        %2037 = vmatprep.subr.bf16.mxu0 0
        %2038 = vmatpush2.bf16.msra.mxu0 0
        %2039 = vmatprep.subr.bf16.mxu0 0
        %2040 = vmatpush2.bf16.msra.mxu0 0
        %2041 = vmatprep.subr.bf16.mxu0 0
        %2042 = vmatpush2.bf16.msra.mxu0 0
        %2043 = vmatprep.subr.bf16.mxu0 0
        %2044 = vmatpush2.bf16.msra.mxu0 0
        %2045 = vmatprep.subr.bf16.mxu0 0
        %2046 = vmatpush2.bf16.msra.mxu0 0
        %2047 = vmatprep.subr.bf16.mxu0 0
        %2048 = vmatpush2.bf16.msra.mxu0 0
        %2049 = vmatprep.subr.bf16.mxu0 0
        %2050 = vmatpush2.bf16.msra.mxu0 0
        %2051 = vmatprep.mubr.bf16.mxu0 0
        %2052 = vmatmul.mubr.bf16.gmra.mxu0 %v2014
        %v2053 = vpop.f32.mrf.mxu0
        %v2054 = vadd.f32 0.0, %v2053
        %v2055 = vpop.f32.mrf.mxu0
        %v2056 = vpop.f32.mrf.mxu0
        %v2057 = vadd.f32 0.0, %v2056
        %v2058 = vpop.f32.mrf.mxu0
        %2059 = vmatprep.mubr.bf16.mxu0 0
        %2060 = vmatmul.mubr.bf16.gmra.mxu0 %v2017
        %v2061 = vpop.f32.mrf.mxu0
        %v2062 = vadd.f32 0.0, %v2061
        %v2063 = vpop.f32.mrf.mxu0
        %v2064 = vpop.f32.mrf.mxu0
        %v2065 = vadd.f32 0.0, %v2064
        %v2066 = vpop.f32.mrf.mxu0
        %2067 = vdwg.mxu0
        %v2072 = vunpack.c.l.b16 %v1503
        %v2073 = vunpack.c.l.b16 %v1504
        %v2074 = vunpack.c.l.b16 %v1505
        %v2075 = vunpack.c.l.b16 %v1506
        %v2076 = vpack.c.b16 %v2073, %v2072
        %v2077 = vpack.c.b16 %v2075, %v2074
        %v2081 = vsel %vm1519, %v1749, 0
        %v2084 = vsel %vm1519, %v1750, 0
        %2086 = vmatprep.subr.bf16.mxu0 0
        %2087 = vmatpush1.bf16.msra.mxu0 0
        %2088 = vmatprep.subr.bf16.mxu0 0
        %2089 = vmatpush1.bf16.msra.mxu0 0
        %2090 = vmatprep.subr.bf16.mxu0 0
        %2091 = vmatpush1.bf16.msra.mxu0 0
        %2092 = vmatprep.subr.bf16.mxu0 0
        %2093 = vmatpush1.bf16.msra.mxu0 0
        %2094 = vmatprep.subr.bf16.mxu0 0
        %2095 = vmatpush1.bf16.msra.mxu0 0
        %2096 = vmatprep.subr.bf16.mxu0 0
        %2097 = vmatpush1.bf16.msra.mxu0 0
        %2098 = vmatprep.subr.bf16.mxu0 0
        %2099 = vmatpush1.bf16.msra.mxu0 %v2077
        %2100 = vmatprep.subr.bf16.mxu0 0
        %2101 = vmatpush1.bf16.msra.mxu0 %v2076
        %2102 = vmatprep.subr.bf16.mxu0 0
        %2103 = vmatpush2.bf16.msra.mxu0 0
        %2104 = vmatprep.subr.bf16.mxu0 0
        %2105 = vmatpush2.bf16.msra.mxu0 0
        %2106 = vmatprep.subr.bf16.mxu0 0
        %2107 = vmatpush2.bf16.msra.mxu0 0
        %2108 = vmatprep.subr.bf16.mxu0 0
        %2109 = vmatpush2.bf16.msra.mxu0 0
        %2110 = vmatprep.subr.bf16.mxu0 0
        %2111 = vmatpush2.bf16.msra.mxu0 0
        %2112 = vmatprep.subr.bf16.mxu0 0
        %2113 = vmatpush2.bf16.msra.mxu0 0
        %2114 = vmatprep.subr.bf16.mxu0 0
        %2115 = vmatpush2.bf16.msra.mxu0 0
        %2116 = vmatprep.subr.bf16.mxu0 0
        %2117 = vmatpush2.bf16.msra.mxu0 0
        %2118 = vmatprep.mubr.bf16.mxu0 0
        %2119 = vmatmul.mubr.bf16.gmra.mxu0 %v2081
        %v2120 = vpop.f32.mrf.mxu0
        %v2121 = vadd.f32 %v2054, %v2120
        %v2122 = vpop.f32.mrf.mxu0
        %v2123 = vpop.f32.mrf.mxu0
        %v2124 = vadd.f32 %v2057, %v2123
        %v2125 = vpop.f32.mrf.mxu0
        %2126 = vmatprep.mubr.bf16.mxu0 0
        %2127 = vmatmul.mubr.bf16.gmra.mxu0 %v2084
        %v2128 = vpop.f32.mrf.mxu0
        %v2129 = vadd.f32 %v2062, %v2128
        %v2130 = vpop.f32.mrf.mxu0
        %v2131 = vpop.f32.mrf.mxu0
        %v2132 = vadd.f32 %v2065, %v2131
        %v2133 = vpop.f32.mrf.mxu0
        %2134 = vdwg.mxu0
        %2135 = vrot.lane.b32.xlu0 %v1497, 64
        %v2136 = vpop.permute.xlu0 %2135
        %2137 = vrot.lane.b32.xlu0 %v1499, 64
        %v2138 = vpop.permute.xlu0 %2137
        %v2140 = vsel %vm1519, %v2136, 0
        %v2143 = vsel %vm1519, %v2138, 0
        %2145 = vmatprep.subr.bf16.mxu0 0
        %2146 = vmatpush1.bf16.xpose.msra.mxu0 0
        %2147 = vmatprep.subr.bf16.mxu0 0
        %2148 = vmatpush1.bf16.xpose.msra.mxu0 0
        %2149 = vmatprep.subr.bf16.mxu0 0
        %2150 = vmatpush1.bf16.xpose.msra.mxu0 0
        %2151 = vmatprep.subr.bf16.mxu0 0
        %2152 = vmatpush1.bf16.xpose.msra.mxu0 0
        %2153 = vmatprep.subr.bf16.mxu0 0
        %2154 = vmatpush1.bf16.xpose.msra.mxu0 0
        %2155 = vmatprep.subr.bf16.mxu0 0
        %2156 = vmatpush1.bf16.xpose.msra.mxu0 0
        %2157 = vmatprep.subr.bf16.mxu0 0
        %2158 = vmatpush1.bf16.xpose.msra.mxu0 0
        %2159 = vmatprep.subr.bf16.mxu0 0
        %2160 = vmatpush1.bf16.xpose.msra.mxu0 %v2143
        %2161 = vmatprep.subr.bf16.mxu0 0
        %2162 = vmatpush2.bf16.xpose.msra.mxu0 0
        %2163 = vmatprep.subr.bf16.mxu0 0
        %2164 = vmatpush2.bf16.xpose.msra.mxu0 0
        %2165 = vmatprep.subr.bf16.mxu0 0
        %2166 = vmatpush2.bf16.xpose.msra.mxu0 0
        %2167 = vmatprep.subr.bf16.mxu0 0
        %2168 = vmatpush2.bf16.xpose.msra.mxu0 0
        %2169 = vmatprep.subr.bf16.mxu0 0
        %2170 = vmatpush2.bf16.xpose.msra.mxu0 0
        %2171 = vmatprep.subr.bf16.mxu0 0
        %2172 = vmatpush2.bf16.xpose.msra.mxu0 0
        %2173 = vmatprep.subr.bf16.mxu0 0
        %2174 = vmatpush2.bf16.xpose.msra.mxu0 0
        %2175 = vmatprep.subr.bf16.mxu0 0
        %2176 = vmatpush2.bf16.xpose.msra.mxu0 0
        %2177 = vmatprep.mubr.bf16.mxu0 0
        %2178 = vmatmul.mubr.bf16.gmra.mxu0 %v2140
        %v2179 = vpop.f32.mrf.mxu0
        %v2180 = vadd.f32 %v1030, %v2179
        %v2181 = vpop.f32.mrf.mxu0
        %v2182 = vpop.f32.mrf.mxu0
        %v2183 = vadd.f32 %v1031, %v2182
        %v2184 = vpop.f32.mrf.mxu0
        %2185 = vdwg.mxu0
        %2186 = vrot.lane.b32.xlu0 %v1498, 64
        %v2187 = vpop.permute.xlu0 %2186
        %2188 = vrot.lane.b32.xlu0 %v1500, 64
        %v2189 = vpop.permute.xlu0 %2188
        %v2191 = vsel %vm1519, %v2187, 0
        %v2194 = vsel %vm1519, %v2189, 0
        %2196 = vmatprep.subr.bf16.mxu0 0
        %2197 = vmatpush1.bf16.xpose.msra.mxu0 0
        %2198 = vmatprep.subr.bf16.mxu0 0
        %2199 = vmatpush1.bf16.xpose.msra.mxu0 0
        %2200 = vmatprep.subr.bf16.mxu0 0
        %2201 = vmatpush1.bf16.xpose.msra.mxu0 0
        %2202 = vmatprep.subr.bf16.mxu0 0
        %2203 = vmatpush1.bf16.xpose.msra.mxu0 0
        %2204 = vmatprep.subr.bf16.mxu0 0
        %2205 = vmatpush1.bf16.xpose.msra.mxu0 0
        %2206 = vmatprep.subr.bf16.mxu0 0
        %2207 = vmatpush1.bf16.xpose.msra.mxu0 0
        %2208 = vmatprep.subr.bf16.mxu0 0
        %2209 = vmatpush1.bf16.xpose.msra.mxu0 0
        %2210 = vmatprep.subr.bf16.mxu0 0
        %2211 = vmatpush1.bf16.xpose.msra.mxu0 %v2194
        %2212 = vmatprep.subr.bf16.mxu0 0
        %2213 = vmatpush2.bf16.xpose.msra.mxu0 0
        %2214 = vmatprep.subr.bf16.mxu0 0
        %2215 = vmatpush2.bf16.xpose.msra.mxu0 0
        %2216 = vmatprep.subr.bf16.mxu0 0
        %2217 = vmatpush2.bf16.xpose.msra.mxu0 0
        %2218 = vmatprep.subr.bf16.mxu0 0
        %2219 = vmatpush2.bf16.xpose.msra.mxu0 0
        %2220 = vmatprep.subr.bf16.mxu0 0
        %2221 = vmatpush2.bf16.xpose.msra.mxu0 0
        %2222 = vmatprep.subr.bf16.mxu0 0
        %2223 = vmatpush2.bf16.xpose.msra.mxu0 0
        %2224 = vmatprep.subr.bf16.mxu0 0
        %2225 = vmatpush2.bf16.xpose.msra.mxu0 0
        %2226 = vmatprep.subr.bf16.mxu0 0
        %2227 = vmatpush2.bf16.xpose.msra.mxu0 0
        %2228 = vmatprep.mubr.bf16.mxu0 0
        %2229 = vmatmul.mubr.bf16.gmra.mxu0 %v2191
        %v2230 = vpop.f32.mrf.mxu0
        %v2231 = vadd.f32 %v1030, %v2230
        %v2232 = vpop.f32.mrf.mxu0
        %v2233 = vpop.f32.mrf.mxu0
        %v2234 = vadd.f32 %v1031, %v2233
        %v2235 = vpop.f32.mrf.mxu0
        %2236 = vdwg.mxu0
        %v2237 = vsel %vm1614, %v2180, -inf
        %2238 = vmax.xlane.f32.xlu0 %v2237
        %v2239 = vpop.xlane.xlu0 %2238
        %v2240 = vsel %vm1614, %v2183, -inf
        %2241 = vmax.xlane.f32.xlu0 %v2240
        %v2242 = vpop.xlane.xlu0 %2241
        %v2243 = vsel %vm1614, %v2231, -inf
        %2244 = vmax.xlane.f32.xlu0 %v2243
        %v2245 = vpop.xlane.xlu0 %2244
        %v2246 = vsel %vm1614, %v2234, -inf
        %2247 = vmax.xlane.f32.xlu0 %v2246
        %v2248 = vpop.xlane.xlu0 %2247
        %v2249 = vsub.f32 %v2180, %v2239
        %v2250 = vsub.f32 %v2183, %v2242
        %v2251 = vsub.f32 %v2231, %v2245
        %v2252 = vsub.f32 %v2234, %v2248
        %v2253 = vmul.f32 %v2249, 1.442695
        %v2254 = vpow.pop %v2253
        %v2255 = vmul.f32 %v2250, 1.442695
        %v2256 = vpow.pop %v2255
        %v2257 = vmul.f32 %v2251, 1.442695
        %v2258 = vpow.pop %v2257
        %v2259 = vmul.f32 %v2252, 1.442695
        %v2260 = vpow.pop %v2259
        %v2261 = vsel %vm1614, %v2254, 0.0
        %2262 = vadd.xlane.f32.xlu0 %v2261
        %v2263 = vpop.xlane.xlu0 %2262
        %v2264 = vsel %vm1614, %v2256, 0.0
        %2265 = vadd.xlane.f32.xlu0 %v2264
        %v2266 = vpop.xlane.xlu0 %2265
        %v2267 = vsel %vm1614, %v2258, 0.0
        %2268 = vadd.xlane.f32.xlu0 %v2267
        %v2269 = vpop.xlane.xlu0 %2268
        %v2270 = vsel %vm1614, %v2260, 0.0
        %2271 = vadd.xlane.f32.xlu0 %v2270
        %v2272 = vpop.xlane.xlu0 %2271
        %v2273 = vrcp.pop %v2263
        %v2274 = vrcp.pop %v2266
        %v2275 = vrcp.pop %v2269
        %v2276 = vrcp.pop %v2272
        %v2277 = vmul.f32 %v2254, %v2273
        %v2278 = vmul.f32 %v2256, %v2274
        %v2279 = vmul.f32 %v2258, %v2275
        %v2280 = vmul.f32 %v2260, %v2276
        %v2281 = vpack.c.bf16 %v2278, %v2277
        %v2282 = vpack.c.bf16 %v2280, %v2279
        %2283 = vrot.lane.b32.xlu0 %v1501, 64
        %v2284 = vpop.permute.xlu0 %2283
        %v2287 = vsel %vm1614, %v2281, 0
        %2289 = vmatprep.subr.bf16.mxu0 0
        %2290 = vmatpush1.bf16.msra.mxu0 0
        %2291 = vmatprep.subr.bf16.mxu0 0
        %2292 = vmatpush1.bf16.msra.mxu0 0
        %2293 = vmatprep.subr.bf16.mxu0 0
        %2294 = vmatpush1.bf16.msra.mxu0 0
        %2295 = vmatprep.subr.bf16.mxu0 0
        %2296 = vmatpush1.bf16.msra.mxu0 0
        %2297 = vmatprep.subr.bf16.mxu0 0
        %2298 = vmatpush1.bf16.msra.mxu0 0
        %2299 = vmatprep.subr.bf16.mxu0 0
        %2300 = vmatpush1.bf16.msra.mxu0 0
        %2301 = vmatprep.subr.bf16.mxu0 0
        %2302 = vmatpush1.bf16.msra.mxu0 0
        %2303 = vmatprep.subr.bf16.mxu0 0
        %2304 = vmatpush1.bf16.msra.mxu0 %v2284
        %2305 = vmatprep.subr.bf16.mxu0 0
        %2306 = vmatpush2.bf16.msra.mxu0 0
        %2307 = vmatprep.subr.bf16.mxu0 0
        %2308 = vmatpush2.bf16.msra.mxu0 0
        %2309 = vmatprep.subr.bf16.mxu0 0
        %2310 = vmatpush2.bf16.msra.mxu0 0
        %2311 = vmatprep.subr.bf16.mxu0 0
        %2312 = vmatpush2.bf16.msra.mxu0 0
        %2313 = vmatprep.subr.bf16.mxu0 0
        %2314 = vmatpush2.bf16.msra.mxu0 0
        %2315 = vmatprep.subr.bf16.mxu0 0
        %2316 = vmatpush2.bf16.msra.mxu0 0
        %2317 = vmatprep.subr.bf16.mxu0 0
        %2318 = vmatpush2.bf16.msra.mxu0 0
        %2319 = vmatprep.subr.bf16.mxu0 0
        %2320 = vmatpush2.bf16.msra.mxu0 0
        %2321 = vmatprep.mubr.bf16.mxu0 0
        %2322 = vmatmul.mubr.bf16.gmra.mxu0 %v2287
        %v2323 = vpop.f32.mrf.mxu0
        %v2324 = vadd.f32 0.0, %v2323
        %v2325 = vpop.f32.mrf.mxu0
        %v2326 = vpop.f32.mrf.mxu0
        %v2327 = vadd.f32 0.0, %v2326
        %v2328 = vpop.f32.mrf.mxu0
        %2329 = vdwg.mxu0
        %2330 = vrot.lane.b32.xlu0 %v1502, 64
        %v2331 = vpop.permute.xlu0 %2330
        %v2334 = vsel %vm1614, %v2282, 0
        %2336 = vmatprep.subr.bf16.mxu0 0
        %2337 = vmatpush1.bf16.msra.mxu0 0
        %2338 = vmatprep.subr.bf16.mxu0 0
        %2339 = vmatpush1.bf16.msra.mxu0 0
        %2340 = vmatprep.subr.bf16.mxu0 0
        %2341 = vmatpush1.bf16.msra.mxu0 0
        %2342 = vmatprep.subr.bf16.mxu0 0
        %2343 = vmatpush1.bf16.msra.mxu0 0
        %2344 = vmatprep.subr.bf16.mxu0 0
        %2345 = vmatpush1.bf16.msra.mxu0 0
        %2346 = vmatprep.subr.bf16.mxu0 0
        %2347 = vmatpush1.bf16.msra.mxu0 0
        %2348 = vmatprep.subr.bf16.mxu0 0
        %2349 = vmatpush1.bf16.msra.mxu0 0
        %2350 = vmatprep.subr.bf16.mxu0 0
        %2351 = vmatpush1.bf16.msra.mxu0 %v2331
        %2352 = vmatprep.subr.bf16.mxu0 0
        %2353 = vmatpush2.bf16.msra.mxu0 0
        %2354 = vmatprep.subr.bf16.mxu0 0
        %2355 = vmatpush2.bf16.msra.mxu0 0
        %2356 = vmatprep.subr.bf16.mxu0 0
        %2357 = vmatpush2.bf16.msra.mxu0 0
        %2358 = vmatprep.subr.bf16.mxu0 0
        %2359 = vmatpush2.bf16.msra.mxu0 0
        %2360 = vmatprep.subr.bf16.mxu0 0
        %2361 = vmatpush2.bf16.msra.mxu0 0
        %2362 = vmatprep.subr.bf16.mxu0 0
        %2363 = vmatpush2.bf16.msra.mxu0 0
        %2364 = vmatprep.subr.bf16.mxu0 0
        %2365 = vmatpush2.bf16.msra.mxu0 0
        %2366 = vmatprep.subr.bf16.mxu0 0
        %2367 = vmatpush2.bf16.msra.mxu0 0
        %2368 = vmatprep.mubr.bf16.mxu0 0
        %2369 = vmatmul.mubr.bf16.gmra.mxu0 %v2334
        %v2370 = vpop.f32.mrf.mxu0
        %v2371 = vadd.f32 0.0, %v2370
        %v2372 = vpop.f32.mrf.mxu0
        %v2373 = vpop.f32.mrf.mxu0
        %v2374 = vadd.f32 0.0, %v2373
        %v2375 = vpop.f32.mrf.mxu0
        %2376 = vdwg.mxu0
        %v2377 = vpack.c.bf16 %v2327, %v2324
        %v2378 = vpack.c.bf16 %v2374, %v2371
        %v2383 = vunpack.c.l.b16 %v1511
        %v2384 = vunpack.c.l.b16 %v1512
        %v2385 = vunpack.c.l.b16 %v1513
        %v2386 = vunpack.c.l.b16 %v1514
        %v2387 = vpack.c.b16 %v2384, %v2383
        %v2388 = vpack.c.b16 %v2386, %v2385
        %v2392 = vsel %vm1519, %v2377, 0
        %v2395 = vsel %vm1519, %v2378, 0
        %2397 = vmatprep.subr.bf16.mxu0 0
        %2398 = vmatpush1.bf16.msra.mxu0 0
        %2399 = vmatprep.subr.bf16.mxu0 0
        %2400 = vmatpush1.bf16.msra.mxu0 0
        %2401 = vmatprep.subr.bf16.mxu0 0
        %2402 = vmatpush1.bf16.msra.mxu0 0
        %2403 = vmatprep.subr.bf16.mxu0 0
        %2404 = vmatpush1.bf16.msra.mxu0 0
        %2405 = vmatprep.subr.bf16.mxu0 0
        %2406 = vmatpush1.bf16.msra.mxu0 0
        %2407 = vmatprep.subr.bf16.mxu0 0
        %2408 = vmatpush1.bf16.msra.mxu0 0
        %2409 = vmatprep.subr.bf16.mxu0 0
        %2410 = vmatpush1.bf16.msra.mxu0 %v2388
        %2411 = vmatprep.subr.bf16.mxu0 0
        %2412 = vmatpush1.bf16.msra.mxu0 %v2387
        %2413 = vmatprep.subr.bf16.mxu0 0
        %2414 = vmatpush2.bf16.msra.mxu0 0
        %2415 = vmatprep.subr.bf16.mxu0 0
        %2416 = vmatpush2.bf16.msra.mxu0 0
        %2417 = vmatprep.subr.bf16.mxu0 0
        %2418 = vmatpush2.bf16.msra.mxu0 0
        %2419 = vmatprep.subr.bf16.mxu0 0
        %2420 = vmatpush2.bf16.msra.mxu0 0
        %2421 = vmatprep.subr.bf16.mxu0 0
        %2422 = vmatpush2.bf16.msra.mxu0 0
        %2423 = vmatprep.subr.bf16.mxu0 0
        %2424 = vmatpush2.bf16.msra.mxu0 0
        %2425 = vmatprep.subr.bf16.mxu0 0
        %2426 = vmatpush2.bf16.msra.mxu0 0
        %2427 = vmatprep.subr.bf16.mxu0 0
        %2428 = vmatpush2.bf16.msra.mxu0 0
        %2429 = vmatprep.mubr.bf16.mxu0 0
        %2430 = vmatmul.mubr.bf16.gmra.mxu0 %v2392
        %v2431 = vpop.f32.mrf.mxu0
        %v2432 = vadd.f32 0.0, %v2431
        %v2433 = vpop.f32.mrf.mxu0
        %v2434 = vpop.f32.mrf.mxu0
        %v2435 = vadd.f32 0.0, %v2434
        %v2436 = vpop.f32.mrf.mxu0
        %2437 = vmatprep.mubr.bf16.mxu0 0
        %2438 = vmatmul.mubr.bf16.gmra.mxu0 %v2395
        %v2439 = vpop.f32.mrf.mxu0
        %v2440 = vadd.f32 0.0, %v2439
        %v2441 = vpop.f32.mrf.mxu0
        %v2442 = vpop.f32.mrf.mxu0
        %v2443 = vadd.f32 0.0, %v2442
        %v2444 = vpop.f32.mrf.mxu0
        %2445 = vdwg.mxu0
        %v2446 = vadd.f32 %v2121, %v2432
        %v2447 = vadd.f32 %v2124, %v2435
        %v2448 = vadd.f32 %v2129, %v2440
        %v2449 = vadd.f32 %v2132, %v2443
        %2450 = vrot.lane.b32.xlu0 %v1497, 32
        %v2451 = vpop.permute.xlu0 %2450
        %2452 = vrot.lane.b32.xlu0 %v1499, 32
        %v2453 = vpop.permute.xlu0 %2452
        %v2455 = vsel %vm1519, %v2451, 0
        %v2458 = vsel %vm1519, %v2453, 0
        %2460 = vmatprep.subr.bf16.mxu0 0
        %2461 = vmatpush1.bf16.xpose.msra.mxu0 0
        %2462 = vmatprep.subr.bf16.mxu0 0
        %2463 = vmatpush1.bf16.xpose.msra.mxu0 0
        %2464 = vmatprep.subr.bf16.mxu0 0
        %2465 = vmatpush1.bf16.xpose.msra.mxu0 0
        %2466 = vmatprep.subr.bf16.mxu0 0
        %2467 = vmatpush1.bf16.xpose.msra.mxu0 0
        %2468 = vmatprep.subr.bf16.mxu0 0
        %2469 = vmatpush1.bf16.xpose.msra.mxu0 0
        %2470 = vmatprep.subr.bf16.mxu0 0
        %2471 = vmatpush1.bf16.xpose.msra.mxu0 0
        %2472 = vmatprep.subr.bf16.mxu0 0
        %2473 = vmatpush1.bf16.xpose.msra.mxu0 0
        %2474 = vmatprep.subr.bf16.mxu0 0
        %2475 = vmatpush1.bf16.xpose.msra.mxu0 %v2458
        %2476 = vmatprep.subr.bf16.mxu0 0
        %2477 = vmatpush2.bf16.xpose.msra.mxu0 0
        %2478 = vmatprep.subr.bf16.mxu0 0
        %2479 = vmatpush2.bf16.xpose.msra.mxu0 0
        %2480 = vmatprep.subr.bf16.mxu0 0
        %2481 = vmatpush2.bf16.xpose.msra.mxu0 0
        %2482 = vmatprep.subr.bf16.mxu0 0
        %2483 = vmatpush2.bf16.xpose.msra.mxu0 0
        %2484 = vmatprep.subr.bf16.mxu0 0
        %2485 = vmatpush2.bf16.xpose.msra.mxu0 0
        %2486 = vmatprep.subr.bf16.mxu0 0
        %2487 = vmatpush2.bf16.xpose.msra.mxu0 0
        %2488 = vmatprep.subr.bf16.mxu0 0
        %2489 = vmatpush2.bf16.xpose.msra.mxu0 0
        %2490 = vmatprep.subr.bf16.mxu0 0
        %2491 = vmatpush2.bf16.xpose.msra.mxu0 0
        %2492 = vmatprep.mubr.bf16.mxu0 0
        %2493 = vmatmul.mubr.bf16.gmra.mxu0 %v2455
        %v2494 = vpop.f32.mrf.mxu0
        %v2495 = vadd.f32 %v1030, %v2494
        %v2496 = vpop.f32.mrf.mxu0
        %v2497 = vpop.f32.mrf.mxu0
        %v2498 = vadd.f32 %v1031, %v2497
        %v2499 = vpop.f32.mrf.mxu0
        %2500 = vdwg.mxu0
        %2501 = vrot.lane.b32.xlu0 %v1498, 32
        %v2502 = vpop.permute.xlu0 %2501
        %2503 = vrot.lane.b32.xlu0 %v1500, 32
        %v2504 = vpop.permute.xlu0 %2503
        %v2506 = vsel %vm1519, %v2502, 0
        %v2509 = vsel %vm1519, %v2504, 0
        %2511 = vmatprep.subr.bf16.mxu0 0
        %2512 = vmatpush1.bf16.xpose.msra.mxu0 0
        %2513 = vmatprep.subr.bf16.mxu0 0
        %2514 = vmatpush1.bf16.xpose.msra.mxu0 0
        %2515 = vmatprep.subr.bf16.mxu0 0
        %2516 = vmatpush1.bf16.xpose.msra.mxu0 0
        %2517 = vmatprep.subr.bf16.mxu0 0
        %2518 = vmatpush1.bf16.xpose.msra.mxu0 0
        %2519 = vmatprep.subr.bf16.mxu0 0
        %2520 = vmatpush1.bf16.xpose.msra.mxu0 0
        %2521 = vmatprep.subr.bf16.mxu0 0
        %2522 = vmatpush1.bf16.xpose.msra.mxu0 0
        %2523 = vmatprep.subr.bf16.mxu0 0
        %2524 = vmatpush1.bf16.xpose.msra.mxu0 0
        %2525 = vmatprep.subr.bf16.mxu0 0
        %2526 = vmatpush1.bf16.xpose.msra.mxu0 %v2509
        %2527 = vmatprep.subr.bf16.mxu0 0
        %2528 = vmatpush2.bf16.xpose.msra.mxu0 0
        %2529 = vmatprep.subr.bf16.mxu0 0
        %2530 = vmatpush2.bf16.xpose.msra.mxu0 0
        %2531 = vmatprep.subr.bf16.mxu0 0
        %2532 = vmatpush2.bf16.xpose.msra.mxu0 0
        %2533 = vmatprep.subr.bf16.mxu0 0
        %2534 = vmatpush2.bf16.xpose.msra.mxu0 0
        %2535 = vmatprep.subr.bf16.mxu0 0
        %2536 = vmatpush2.bf16.xpose.msra.mxu0 0
        %2537 = vmatprep.subr.bf16.mxu0 0
        %2538 = vmatpush2.bf16.xpose.msra.mxu0 0
        %2539 = vmatprep.subr.bf16.mxu0 0
        %2540 = vmatpush2.bf16.xpose.msra.mxu0 0
        %2541 = vmatprep.subr.bf16.mxu0 0
        %2542 = vmatpush2.bf16.xpose.msra.mxu0 0
        %2543 = vmatprep.mubr.bf16.mxu0 0
        %2544 = vmatmul.mubr.bf16.gmra.mxu0 %v2506
        %v2545 = vpop.f32.mrf.mxu0
        %v2546 = vadd.f32 %v1030, %v2545
        %v2547 = vpop.f32.mrf.mxu0
        %v2548 = vpop.f32.mrf.mxu0
        %v2549 = vadd.f32 %v1031, %v2548
        %v2550 = vpop.f32.mrf.mxu0
        %2551 = vdwg.mxu0
        %v2552 = vsel %vm1614, %v2495, -inf
        %2553 = vmax.xlane.f32.xlu0 %v2552
        %v2554 = vpop.xlane.xlu0 %2553
        %v2555 = vsel %vm1614, %v2498, -inf
        %2556 = vmax.xlane.f32.xlu0 %v2555
        %v2557 = vpop.xlane.xlu0 %2556
        %v2558 = vsel %vm1614, %v2546, -inf
        %2559 = vmax.xlane.f32.xlu0 %v2558
        %v2560 = vpop.xlane.xlu0 %2559
        %v2561 = vsel %vm1614, %v2549, -inf
        %2562 = vmax.xlane.f32.xlu0 %v2561
        %v2563 = vpop.xlane.xlu0 %2562
        %v2564 = vsub.f32 %v2495, %v2554
        %v2565 = vsub.f32 %v2498, %v2557
        %v2566 = vsub.f32 %v2546, %v2560
        %v2567 = vsub.f32 %v2549, %v2563
        %v2568 = vmul.f32 %v2564, 1.442695
        %v2569 = vpow.pop %v2568
        %v2570 = vmul.f32 %v2565, 1.442695
        %v2571 = vpow.pop %v2570
        %v2572 = vmul.f32 %v2566, 1.442695
        %v2573 = vpow.pop %v2572
        %v2574 = vmul.f32 %v2567, 1.442695
        %v2575 = vpow.pop %v2574
        %v2576 = vsel %vm1614, %v2569, 0.0
        %2577 = vadd.xlane.f32.xlu0 %v2576
        %v2578 = vpop.xlane.xlu0 %2577
        %v2579 = vsel %vm1614, %v2571, 0.0
        %2580 = vadd.xlane.f32.xlu0 %v2579
        %v2581 = vpop.xlane.xlu0 %2580
        %v2582 = vsel %vm1614, %v2573, 0.0
        %2583 = vadd.xlane.f32.xlu0 %v2582
        %v2584 = vpop.xlane.xlu0 %2583
        %v2585 = vsel %vm1614, %v2575, 0.0
        %2586 = vadd.xlane.f32.xlu0 %v2585
        %v2587 = vpop.xlane.xlu0 %2586
        %v2588 = vrcp.pop %v2578
        %v2589 = vrcp.pop %v2581
        %v2590 = vrcp.pop %v2584
        %v2591 = vrcp.pop %v2587
        %v2592 = vmul.f32 %v2569, %v2588
        %v2593 = vmul.f32 %v2571, %v2589
        %v2594 = vmul.f32 %v2573, %v2590
        %v2595 = vmul.f32 %v2575, %v2591
        %v2596 = vpack.c.bf16 %v2593, %v2592
        %v2597 = vpack.c.bf16 %v2595, %v2594
        %2598 = vrot.lane.b32.xlu0 %v1501, 32
        %v2599 = vpop.permute.xlu0 %2598
        %v2602 = vsel %vm1614, %v2596, 0
        %2604 = vmatprep.subr.bf16.mxu0 0
        %2605 = vmatpush1.bf16.msra.mxu0 0
        %2606 = vmatprep.subr.bf16.mxu0 0
        %2607 = vmatpush1.bf16.msra.mxu0 0
        %2608 = vmatprep.subr.bf16.mxu0 0
        %2609 = vmatpush1.bf16.msra.mxu0 0
        %2610 = vmatprep.subr.bf16.mxu0 0
        %2611 = vmatpush1.bf16.msra.mxu0 0
        %2612 = vmatprep.subr.bf16.mxu0 0
        %2613 = vmatpush1.bf16.msra.mxu0 0
        %2614 = vmatprep.subr.bf16.mxu0 0
        %2615 = vmatpush1.bf16.msra.mxu0 0
        %2616 = vmatprep.subr.bf16.mxu0 0
        %2617 = vmatpush1.bf16.msra.mxu0 0
        %2618 = vmatprep.subr.bf16.mxu0 0
        %2619 = vmatpush1.bf16.msra.mxu0 %v2599
        %2620 = vmatprep.subr.bf16.mxu0 0
        %2621 = vmatpush2.bf16.msra.mxu0 0
        %2622 = vmatprep.subr.bf16.mxu0 0
        %2623 = vmatpush2.bf16.msra.mxu0 0
        %2624 = vmatprep.subr.bf16.mxu0 0
        %2625 = vmatpush2.bf16.msra.mxu0 0
        %2626 = vmatprep.subr.bf16.mxu0 0
        %2627 = vmatpush2.bf16.msra.mxu0 0
        %2628 = vmatprep.subr.bf16.mxu0 0
        %2629 = vmatpush2.bf16.msra.mxu0 0
        %2630 = vmatprep.subr.bf16.mxu0 0
        %2631 = vmatpush2.bf16.msra.mxu0 0
        %2632 = vmatprep.subr.bf16.mxu0 0
        %2633 = vmatpush2.bf16.msra.mxu0 0
        %2634 = vmatprep.subr.bf16.mxu0 0
        %2635 = vmatpush2.bf16.msra.mxu0 0
        %2636 = vmatprep.mubr.bf16.mxu0 0
        %2637 = vmatmul.mubr.bf16.gmra.mxu0 %v2602
        %v2638 = vpop.f32.mrf.mxu0
        %v2639 = vadd.f32 0.0, %v2638
        %v2640 = vpop.f32.mrf.mxu0
        %v2641 = vpop.f32.mrf.mxu0
        %v2642 = vadd.f32 0.0, %v2641
        %v2643 = vpop.f32.mrf.mxu0
        %2644 = vdwg.mxu0
        %2645 = vrot.lane.b32.xlu0 %v1502, 32
        %v2646 = vpop.permute.xlu0 %2645
        %v2649 = vsel %vm1614, %v2597, 0
        %2651 = vmatprep.subr.bf16.mxu0 0
        %2652 = vmatpush1.bf16.msra.mxu0 0
        %2653 = vmatprep.subr.bf16.mxu0 0
        %2654 = vmatpush1.bf16.msra.mxu0 0
        %2655 = vmatprep.subr.bf16.mxu0 0
        %2656 = vmatpush1.bf16.msra.mxu0 0
        %2657 = vmatprep.subr.bf16.mxu0 0
        %2658 = vmatpush1.bf16.msra.mxu0 0
        %2659 = vmatprep.subr.bf16.mxu0 0
        %2660 = vmatpush1.bf16.msra.mxu0 0
        %2661 = vmatprep.subr.bf16.mxu0 0
        %2662 = vmatpush1.bf16.msra.mxu0 0
        %2663 = vmatprep.subr.bf16.mxu0 0
        %2664 = vmatpush1.bf16.msra.mxu0 0
        %2665 = vmatprep.subr.bf16.mxu0 0
        %2666 = vmatpush1.bf16.msra.mxu0 %v2646
        %2667 = vmatprep.subr.bf16.mxu0 0
        %2668 = vmatpush2.bf16.msra.mxu0 0
        %2669 = vmatprep.subr.bf16.mxu0 0
        %2670 = vmatpush2.bf16.msra.mxu0 0
        %2671 = vmatprep.subr.bf16.mxu0 0
        %2672 = vmatpush2.bf16.msra.mxu0 0
        %2673 = vmatprep.subr.bf16.mxu0 0
        %2674 = vmatpush2.bf16.msra.mxu0 0
        %2675 = vmatprep.subr.bf16.mxu0 0
        %2676 = vmatpush2.bf16.msra.mxu0 0
        %2677 = vmatprep.subr.bf16.mxu0 0
        %2678 = vmatpush2.bf16.msra.mxu0 0
        %2679 = vmatprep.subr.bf16.mxu0 0
        %2680 = vmatpush2.bf16.msra.mxu0 0
        %2681 = vmatprep.subr.bf16.mxu0 0
        %2682 = vmatpush2.bf16.msra.mxu0 0
        %2683 = vmatprep.mubr.bf16.mxu0 0
        %2684 = vmatmul.mubr.bf16.gmra.mxu0 %v2649
        %v2685 = vpop.f32.mrf.mxu0
        %v2686 = vadd.f32 0.0, %v2685
        %v2687 = vpop.f32.mrf.mxu0
        %v2688 = vpop.f32.mrf.mxu0
        %v2689 = vadd.f32 0.0, %v2688
        %v2690 = vpop.f32.mrf.mxu0
        %2691 = vdwg.mxu0
        %v2692 = vpack.c.bf16 %v2642, %v2639
        %v2693 = vpack.c.bf16 %v2689, %v2686
        %v2698 = vunpack.c.l.b16 %v1515
        %v2699 = vunpack.c.l.b16 %v1516
        %v2700 = vunpack.c.l.b16 %v1517
        %v2701 = vunpack.c.l.b16 %v1518
        %v2702 = vpack.c.b16 %v2699, %v2698
        %v2703 = vpack.c.b16 %v2701, %v2700
        %v2707 = vsel %vm1519, %v2692, 0
        %v2710 = vsel %vm1519, %v2693, 0
        %2712 = vmatprep.subr.bf16.mxu0 0
        %2713 = vmatpush1.bf16.msra.mxu0 0
        %2714 = vmatprep.subr.bf16.mxu0 0
        %2715 = vmatpush1.bf16.msra.mxu0 0
        %2716 = vmatprep.subr.bf16.mxu0 0
        %2717 = vmatpush1.bf16.msra.mxu0 0
        %2718 = vmatprep.subr.bf16.mxu0 0
        %2719 = vmatpush1.bf16.msra.mxu0 0
        %2720 = vmatprep.subr.bf16.mxu0 0
        %2721 = vmatpush1.bf16.msra.mxu0 0
        %2722 = vmatprep.subr.bf16.mxu0 0
        %2723 = vmatpush1.bf16.msra.mxu0 0
        %2724 = vmatprep.subr.bf16.mxu0 0
        %2725 = vmatpush1.bf16.msra.mxu0 %v2703
        %2726 = vmatprep.subr.bf16.mxu0 0
        %2727 = vmatpush1.bf16.msra.mxu0 %v2702
        %2728 = vmatprep.subr.bf16.mxu0 0
        %2729 = vmatpush2.bf16.msra.mxu0 0
        %2730 = vmatprep.subr.bf16.mxu0 0
        %2731 = vmatpush2.bf16.msra.mxu0 0
        %2732 = vmatprep.subr.bf16.mxu0 0
        %2733 = vmatpush2.bf16.msra.mxu0 0
        %2734 = vmatprep.subr.bf16.mxu0 0
        %2735 = vmatpush2.bf16.msra.mxu0 0
        %2736 = vmatprep.subr.bf16.mxu0 0
        %2737 = vmatpush2.bf16.msra.mxu0 0
        %2738 = vmatprep.subr.bf16.mxu0 0
        %2739 = vmatpush2.bf16.msra.mxu0 0
        %2740 = vmatprep.subr.bf16.mxu0 0
        %2741 = vmatpush2.bf16.msra.mxu0 0
        %2742 = vmatprep.subr.bf16.mxu0 0
        %2743 = vmatpush2.bf16.msra.mxu0 0
        %2744 = vmatprep.mubr.bf16.mxu0 0
        %2745 = vmatmul.mubr.bf16.gmra.mxu0 %v2707
        %v2746 = vpop.f32.mrf.mxu0
        %v2747 = vadd.f32 0.0, %v2746
        %v2748 = vpop.f32.mrf.mxu0
        %v2749 = vpop.f32.mrf.mxu0
        %v2750 = vadd.f32 0.0, %v2749
        %v2751 = vpop.f32.mrf.mxu0
        %2752 = vmatprep.mubr.bf16.mxu0 0
        %2753 = vmatmul.mubr.bf16.gmra.mxu0 %v2710
        %v2754 = vpop.f32.mrf.mxu0
        %v2755 = vadd.f32 0.0, %v2754
        %v2756 = vpop.f32.mrf.mxu0
        %v2757 = vpop.f32.mrf.mxu0
        %v2758 = vadd.f32 0.0, %v2757
        %v2759 = vpop.f32.mrf.mxu0
        %2760 = vdwg.mxu0
        %v2761 = vadd.f32 %v2446, %v2747
        %v2762 = vadd.f32 %v2447, %v2750
        %v2763 = vadd.f32 %v2448, %v2755
        %v2764 = vadd.f32 %v2449, %v2758
        %v2765 = vld [vmem:[%s998] sm:$0x1]
        %v2767 = vlaneseq
        %v2768 = vshrl.u32 %v2767, 7
        %v2769 = vsub.s32 0, %v2768
        %v2770 = vrot.slane %v2765, %v2769
        %v2772 = vadd.f32 %v2761, %v2770
        %v2773 = vadd.f32 %v2762, %v2770
        %v2774 = vadd.f32 %v2763, %v2770
        %v2775 = vadd.f32 %v2764, %v2770
        %v2776 = vadd.f32 %v1026, %v2772
        %v2777 = vadd.f32 %v1027, %v2773
        %v2778 = vadd.f32 %v1028, %v2774
        %v2779 = vadd.f32 %v1029, %v2775
        %v2780 = vld [vmem:[%s1001] sm:$0x1]
        %v2781 = vld [vmem:[%s1004] sm:$0x1]
        %2782 = vadd.xlane.f32.xlu0 %v2776
        %v2783 = vpop.xlane.xlu0 %2782
        %2784 = vadd.xlane.f32.xlu0 %v2777
        %v2785 = vpop.xlane.xlu0 %2784
        %2786 = vadd.xlane.f32.xlu0 %v2778
        %v2787 = vpop.xlane.xlu0 %2786
        %2788 = vadd.xlane.f32.xlu0 %v2779
        %v2789 = vpop.xlane.xlu0 %2788
        %v2790 = vmul.f32 %v2783, %v1042
        %v2791 = vmul.f32 %v2785, %v1042
        %v2792 = vmul.f32 %v2787, %v1042
        %v2793 = vmul.f32 %v2789, %v1042
        %v2794 = vsub.f32 %v2776, %v2790
        %v2795 = vsub.f32 %v2777, %v2791
        %v2796 = vsub.f32 %v2778, %v2792
        %v2797 = vsub.f32 %v2779, %v2793
        %v2798 = vmul.f32 %v2794, %v2794
        %v2799 = vmul.f32 %v2795, %v2795
        %v2800 = vmul.f32 %v2796, %v2796
        %v2801 = vmul.f32 %v2797, %v2797
        %2802 = vadd.xlane.f32.xlu0 %v2798
        %v2803 = vpop.xlane.xlu0 %2802
        %2804 = vadd.xlane.f32.xlu0 %v2799
        %v2805 = vpop.xlane.xlu0 %2804
        %2806 = vadd.xlane.f32.xlu0 %v2800
        %v2807 = vpop.xlane.xlu0 %2806
        %2808 = vadd.xlane.f32.xlu0 %v2801
        %v2809 = vpop.xlane.xlu0 %2808
        %v2810 = vmul.f32 %v2803, 0.007874016
        %v2811 = vmul.f32 %v2805, 0.007874016
        %v2812 = vmul.f32 %v2807, 0.007874016
        %v2813 = vmul.f32 %v2809, 0.007874016
        %v2814 = vrsqrt.pop %v2810
        %v2815 = vmul.f32 %v2810, %v2814
        %vm2816 = vcmp.eq.f32.partialorder %v2810, inf
        %v2817 = vsel %vm2816, %v2810, %v2815
        %vm2818 = vcmp.eq.f32.partialorder %v2810, 0.0
        %v2819 = vand.u32 %v2810, 2147483648
        %v2820 = vsel %vm2818, %v2819, %v2817
        %v2821 = vrsqrt.pop %v2811
        %v2822 = vmul.f32 %v2811, %v2821
        %vm2823 = vcmp.eq.f32.partialorder %v2811, inf
        %v2824 = vsel %vm2823, %v2811, %v2822
        %vm2825 = vcmp.eq.f32.partialorder %v2811, 0.0
        %v2826 = vand.u32 %v2811, 2147483648
        %v2827 = vsel %vm2825, %v2826, %v2824
        %v2828 = vrsqrt.pop %v2812
        %v2829 = vmul.f32 %v2812, %v2828
        %vm2830 = vcmp.eq.f32.partialorder %v2812, inf
        %v2831 = vsel %vm2830, %v2812, %v2829
        %vm2832 = vcmp.eq.f32.partialorder %v2812, 0.0
        %v2833 = vand.u32 %v2812, 2147483648
        %v2834 = vsel %vm2832, %v2833, %v2831
        %v2835 = vrsqrt.pop %v2813
        %v2836 = vmul.f32 %v2813, %v2835
        %vm2837 = vcmp.eq.f32.partialorder %v2813, inf
        %v2838 = vsel %vm2837, %v2813, %v2836
        %vm2839 = vcmp.eq.f32.partialorder %v2813, 0.0
        %v2840 = vand.u32 %v2813, 2147483648
        %v2841 = vsel %vm2839, %v2840, %v2838
        %v2842 = vadd.f32 %v2820, 1e-06
        %v2843 = vadd.f32 %v2827, 1e-06
        %v2844 = vadd.f32 %v2834, 1e-06
        %v2845 = vadd.f32 %v2841, 1e-06
        %v2846 = vrcp.pop %v2842
        %v2847 = vmul.f32 1.0, %v2846
        %v2848 = vrcp.pop %v2843
        %v2849 = vmul.f32 1.0, %v2848
        %v2850 = vrcp.pop %v2844
        %v2851 = vmul.f32 1.0, %v2850
        %v2852 = vrcp.pop %v2845
        %v2853 = vmul.f32 1.0, %v2852
        %v2854 = vmul.f32 %v2794, %v2847
        %v2855 = vmul.f32 %v2795, %v2849
        %v2856 = vmul.f32 %v2796, %v2851
        %v2857 = vmul.f32 %v2797, %v2853
        %v2859 = vlaneseq
        %v2860 = vshrl.u32 %v2859, 7
        %v2861 = vsub.s32 0, %v2860
        %v2862 = vrot.slane %v2780, %v2861
        %v2864 = vmul.f32 %v2862, %v2854
        %v2865 = vmul.f32 %v2862, %v2855
        %v2866 = vmul.f32 %v2862, %v2856
        %v2867 = vmul.f32 %v2862, %v2857
        %v2869 = vlaneseq
        %v2870 = vshrl.u32 %v2869, 7
        %v2871 = vsub.s32 0, %v2870
        %v2872 = vrot.slane %v2781, %v2871
        %v2874 = vadd.f32 %v2864, %v2872
        %v2875 = vadd.f32 %v2865, %v2872
        %v2876 = vadd.f32 %v2866, %v2872
        %v2877 = vadd.f32 %v2867, %v2872
        %v2878 = vpack.c.bf16 %v2875, %v2874
        %v2879 = vpack.c.bf16 %v2877, %v2876
        %v2880 = vld [vmem:[%s863] sm:$0xff]
        %v2881 = vld [vmem:[%s863 + $0x8] sm:$0xff]
        %v2882 = vld [vmem:[%s863 + $0x10] sm:$0xff]
        %v2883 = vld [vmem:[%s863 + $0x18] sm:$0xff]
        %v2884 = vld [vmem:[%s863 + $0x20] sm:$0xff]
        %v2885 = vld [vmem:[%s863 + $0x28] sm:$0xff]
        %v2886 = vld [vmem:[%s863 + $0x30] sm:$0xff]
        %v2887 = vld [vmem:[%s863 + $0x38] sm:$0xff]
        %v2888 = vld [vmem:[%s863 + $0x40] sm:$0xff]
        %v2889 = vld [vmem:[%s863 + $0x48] sm:$0xff]
        %v2890 = vld [vmem:[%s863 + $0x50] sm:$0xff]
        %v2891 = vld [vmem:[%s863 + $0x58] sm:$0xff]
        %v2892 = vld [vmem:[%s863 + $0x60] sm:$0xff]
        %v2893 = vld [vmem:[%s863 + $0x68] sm:$0xff]
        %v2894 = vld [vmem:[%s863 + $0x70] sm:$0xff]
        %v2895 = vld [vmem:[%s863 + $0x78] sm:$0xff]
        %v2896 = vld [vmem:[%s1008] sm:$0x3]
        %v2898 = vlaneseq
        %v2899 = vshrl.u32 %v2898, 7
        %v2900 = vsub.s32 0, %v2899
        %v2901 = vrot.slane %v2896, %v2900
        %v2902 = vlaneseq
        %v2903 = vshrl.u32 %v2902, 7
        %v2904 = vsub.s32 1, %v2903
        %v2905 = vrot.slane %v2896, %v2904
        %v2924 = vunpack.c.l.b16 %v2880
        %v2925 = vunpack.c.h.b16 %v2880
        %v2926 = vunpack.c.l.b16 %v2881
        %v2927 = vunpack.c.h.b16 %v2881
        %v2928 = vunpack.c.l.b16 %v2882
        %v2929 = vunpack.c.h.b16 %v2882
        %v2930 = vunpack.c.l.b16 %v2883
        %v2931 = vunpack.c.h.b16 %v2883
        %v2932 = vunpack.c.l.b16 %v2884
        %v2933 = vunpack.c.h.b16 %v2884
        %v2934 = vunpack.c.l.b16 %v2885
        %v2935 = vunpack.c.h.b16 %v2885
        %v2936 = vunpack.c.l.b16 %v2886
        %v2937 = vunpack.c.h.b16 %v2886
        %v2938 = vunpack.c.l.b16 %v2887
        %v2939 = vunpack.c.h.b16 %v2887
        %v2940 = vunpack.c.l.b16 %v2888
        %v2941 = vunpack.c.h.b16 %v2888
        %v2942 = vunpack.c.l.b16 %v2889
        %v2943 = vunpack.c.h.b16 %v2889
        %v2944 = vunpack.c.l.b16 %v2890
        %v2945 = vunpack.c.h.b16 %v2890
        %v2946 = vunpack.c.l.b16 %v2891
        %v2947 = vunpack.c.h.b16 %v2891
        %v2948 = vunpack.c.l.b16 %v2892
        %v2949 = vunpack.c.h.b16 %v2892
        %v2950 = vunpack.c.l.b16 %v2893
        %v2951 = vunpack.c.h.b16 %v2893
        %v2952 = vunpack.c.l.b16 %v2894
        %v2953 = vunpack.c.h.b16 %v2894
        %v2954 = vunpack.c.l.b16 %v2895
        %v2955 = vunpack.c.h.b16 %v2895
        %v2956 = vpack.c.b16 %v2926, %v2924
        %v2957 = vpack.c.b16 %v2927, %v2925
        %v2958 = vpack.c.b16 %v2930, %v2928
        %v2959 = vpack.c.b16 %v2931, %v2929
        %v2960 = vpack.c.b16 %v2934, %v2932
        %v2961 = vpack.c.b16 %v2935, %v2933
        %v2962 = vpack.c.b16 %v2938, %v2936
        %v2963 = vpack.c.b16 %v2939, %v2937
        %v2964 = vpack.c.b16 %v2942, %v2940
        %v2965 = vpack.c.b16 %v2943, %v2941
        %v2966 = vpack.c.b16 %v2946, %v2944
        %v2967 = vpack.c.b16 %v2947, %v2945
        %v2968 = vpack.c.b16 %v2950, %v2948
        %v2969 = vpack.c.b16 %v2951, %v2949
        %v2970 = vpack.c.b16 %v2954, %v2952
        %v2971 = vpack.c.b16 %v2955, %v2953
        %2988 = vmatprep.subr.bf16.mxu0 %v2971
        %2989 = vmatpush1.bf16.msra.mxu0 %v2970
        %2990 = vmatprep.subr.bf16.mxu0 %v2969
        %2991 = vmatpush1.bf16.msra.mxu0 %v2968
        %2992 = vmatprep.subr.bf16.mxu0 %v2967
        %2993 = vmatpush1.bf16.msra.mxu0 %v2966
        %2994 = vmatprep.subr.bf16.mxu0 %v2965
        %2995 = vmatpush1.bf16.msra.mxu0 %v2964
        %2996 = vmatprep.subr.bf16.mxu0 %v2963
        %2997 = vmatpush1.bf16.msra.mxu0 %v2962
        %2998 = vmatprep.subr.bf16.mxu0 %v2961
        %2999 = vmatpush1.bf16.msra.mxu0 %v2960
        %3000 = vmatprep.subr.bf16.mxu0 %v2959
        %3001 = vmatpush1.bf16.msra.mxu0 %v2958
        %3002 = vmatprep.subr.bf16.mxu0 %v2957
        %3003 = vmatpush1.bf16.msra.mxu0 %v2956
        %3004 = vmatprep.subr.bf16.mxu0 0
        %3005 = vmatpush2.bf16.msra.mxu0 0
        %3006 = vmatprep.subr.bf16.mxu0 0
        %3007 = vmatpush2.bf16.msra.mxu0 0
        %3008 = vmatprep.subr.bf16.mxu0 0
        %3009 = vmatpush2.bf16.msra.mxu0 0
        %3010 = vmatprep.subr.bf16.mxu0 0
        %3011 = vmatpush2.bf16.msra.mxu0 0
        %3012 = vmatprep.subr.bf16.mxu0 0
        %3013 = vmatpush2.bf16.msra.mxu0 0
        %3014 = vmatprep.subr.bf16.mxu0 0
        %3015 = vmatpush2.bf16.msra.mxu0 0
        %3016 = vmatprep.subr.bf16.mxu0 0
        %3017 = vmatpush2.bf16.msra.mxu0 0
        %3018 = vmatprep.subr.bf16.mxu0 0
        %3019 = vmatpush2.bf16.msra.mxu0 0
        %3020 = vmatprep.mubr.bf16.mxu0 0
        %3021 = vmatmul.mubr.bf16.gmra.mxu0 %v2878
        %v3022 = vpop.f32.mrf.mxu0
        %v3023 = vadd.f32 %v2901, %v3022
        %v3024 = vpop.f32.mrf.mxu0
        %v3025 = vadd.f32 %v2905, %v3024
        %v3026 = vpop.f32.mrf.mxu0
        %v3027 = vadd.f32 %v2901, %v3026
        %v3028 = vpop.f32.mrf.mxu0
        %v3029 = vadd.f32 %v2905, %v3028
        %3030 = vmatprep.mubr.bf16.mxu0 0
        %3031 = vmatmul.mubr.bf16.gmra.mxu0 %v2879
        %v3032 = vpop.f32.mrf.mxu0
        %v3033 = vadd.f32 %v2901, %v3032
        %v3034 = vpop.f32.mrf.mxu0
        %v3035 = vadd.f32 %v2905, %v3034
        %v3036 = vpop.f32.mrf.mxu0
        %v3037 = vadd.f32 %v2901, %v3036
        %v3038 = vpop.f32.mrf.mxu0
        %v3039 = vadd.f32 %v2905, %v3038
        %3040 = vdwg.mxu0
        %v3041 = vmax.f32 %v3023, 0.0
        %v3042 = vmax.f32 %v3025, 0.0
        %v3043 = vmax.f32 %v3027, 0.0
        %v3044 = vmax.f32 %v3029, 0.0
        %v3045 = vmax.f32 %v3033, 0.0
        %v3046 = vmax.f32 %v3035, 0.0
        %v3047 = vmax.f32 %v3037, 0.0
        %v3048 = vmax.f32 %v3039, 0.0
        %v3049 = vpack.c.bf16 %v3043, %v3041
        %v3050 = vpack.c.bf16 %v3044, %v3042
        %v3051 = vpack.c.bf16 %v3047, %v3045
        %v3052 = vpack.c.bf16 %v3048, %v3046
        %v3053 = vld [vmem:[%s872] sm:$0xf]
        %v3054 = vld [vmem:[%s872 + $0x4] sm:$0xf]
        %v3055 = vld [vmem:[%s872 + $0x8] sm:$0xf]
        %v3056 = vld [vmem:[%s872 + $0xc] sm:$0xf]
        %v3057 = vld [vmem:[%s872 + $0x10] sm:$0xf]
        %v3058 = vld [vmem:[%s872 + $0x14] sm:$0xf]
        %v3059 = vld [vmem:[%s872 + $0x18] sm:$0xf]
        %v3060 = vld [vmem:[%s872 + $0x1c] sm:$0xf]
        %v3061 = vld [vmem:[%s872 + $0x20] sm:$0xf]
        %v3062 = vld [vmem:[%s872 + $0x24] sm:$0xf]
        %v3063 = vld [vmem:[%s872 + $0x28] sm:$0xf]
        %v3064 = vld [vmem:[%s872 + $0x2c] sm:$0xf]
        %v3065 = vld [vmem:[%s872 + $0x30] sm:$0xf]
        %v3066 = vld [vmem:[%s872 + $0x34] sm:$0xf]
        %v3067 = vld [vmem:[%s872 + $0x38] sm:$0xf]
        %v3068 = vld [vmem:[%s872 + $0x3c] sm:$0xf]
        %v3069 = vld [vmem:[%s872 + $0x40] sm:$0xf]
        %v3070 = vld [vmem:[%s872 + $0x44] sm:$0xf]
        %v3071 = vld [vmem:[%s872 + $0x48] sm:$0xf]
        %v3072 = vld [vmem:[%s872 + $0x4c] sm:$0xf]
        %v3073 = vld [vmem:[%s872 + $0x50] sm:$0xf]
        %v3074 = vld [vmem:[%s872 + $0x54] sm:$0xf]
        %v3075 = vld [vmem:[%s872 + $0x58] sm:$0xf]
        %v3076 = vld [vmem:[%s872 + $0x5c] sm:$0xf]
        %v3077 = vld [vmem:[%s872 + $0x60] sm:$0xf]
        %v3078 = vld [vmem:[%s872 + $0x64] sm:$0xf]
        %v3079 = vld [vmem:[%s872 + $0x68] sm:$0xf]
        %v3080 = vld [vmem:[%s872 + $0x6c] sm:$0xf]
        %v3081 = vld [vmem:[%s872 + $0x70] sm:$0xf]
        %v3082 = vld [vmem:[%s872 + $0x74] sm:$0xf]
        %v3083 = vld [vmem:[%s872 + $0x78] sm:$0xf]
        %v3084 = vld [vmem:[%s872 + $0x7c] sm:$0xf]
        %v3085 = vld [vmem:[%s1011] sm:$0x1]
        %v3087 = vlaneseq
        %v3088 = vshrl.u32 %v3087, 7
        %v3089 = vsub.s32 0, %v3088
        %v3090 = vrot.slane %v3085, %v3089
        %v3124 = vunpack.c.l.b16 %v3053
        %v3125 = vunpack.c.l.b16 %v3054
        %v3126 = vunpack.c.l.b16 %v3055
        %v3127 = vunpack.c.l.b16 %v3056
        %v3128 = vunpack.c.l.b16 %v3057
        %v3129 = vunpack.c.l.b16 %v3058
        %v3130 = vunpack.c.l.b16 %v3059
        %v3131 = vunpack.c.l.b16 %v3060
        %v3132 = vunpack.c.l.b16 %v3061
        %v3133 = vunpack.c.l.b16 %v3062
        %v3134 = vunpack.c.l.b16 %v3063
        %v3135 = vunpack.c.l.b16 %v3064
        %v3136 = vunpack.c.l.b16 %v3065
        %v3137 = vunpack.c.l.b16 %v3066
        %v3138 = vunpack.c.l.b16 %v3067
        %v3139 = vunpack.c.l.b16 %v3068
        %v3140 = vunpack.c.l.b16 %v3069
        %v3141 = vunpack.c.l.b16 %v3070
        %v3142 = vunpack.c.l.b16 %v3071
        %v3143 = vunpack.c.l.b16 %v3072
        %v3144 = vunpack.c.l.b16 %v3073
        %v3145 = vunpack.c.l.b16 %v3074
        %v3146 = vunpack.c.l.b16 %v3075
        %v3147 = vunpack.c.l.b16 %v3076
        %v3148 = vunpack.c.l.b16 %v3077
        %v3149 = vunpack.c.l.b16 %v3078
        %v3150 = vunpack.c.l.b16 %v3079
        %v3151 = vunpack.c.l.b16 %v3080
        %v3152 = vunpack.c.l.b16 %v3081
        %v3153 = vunpack.c.l.b16 %v3082
        %v3154 = vunpack.c.l.b16 %v3083
        %v3155 = vunpack.c.l.b16 %v3084
        %v3156 = vpack.c.b16 %v3125, %v3124
        %v3157 = vpack.c.b16 %v3127, %v3126
        %v3158 = vpack.c.b16 %v3129, %v3128
        %v3159 = vpack.c.b16 %v3131, %v3130
        %v3160 = vpack.c.b16 %v3133, %v3132
        %v3161 = vpack.c.b16 %v3135, %v3134
        %v3162 = vpack.c.b16 %v3137, %v3136
        %v3163 = vpack.c.b16 %v3139, %v3138
        %v3164 = vpack.c.b16 %v3141, %v3140
        %v3165 = vpack.c.b16 %v3143, %v3142
        %v3166 = vpack.c.b16 %v3145, %v3144
        %v3167 = vpack.c.b16 %v3147, %v3146
        %v3168 = vpack.c.b16 %v3149, %v3148
        %v3169 = vpack.c.b16 %v3151, %v3150
        %v3170 = vpack.c.b16 %v3153, %v3152
        %v3171 = vpack.c.b16 %v3155, %v3154
        %3188 = vmatprep.subr.bf16.mxu0 0
        %3189 = vmatpush1.bf16.msra.mxu0 %v3163
        %3190 = vmatprep.subr.bf16.mxu0 0
        %3191 = vmatpush1.bf16.msra.mxu0 %v3162
        %3192 = vmatprep.subr.bf16.mxu0 0
        %3193 = vmatpush1.bf16.msra.mxu0 %v3161
        %3194 = vmatprep.subr.bf16.mxu0 0
        %3195 = vmatpush1.bf16.msra.mxu0 %v3160
        %3196 = vmatprep.subr.bf16.mxu0 0
        %3197 = vmatpush1.bf16.msra.mxu0 %v3159
        %3198 = vmatprep.subr.bf16.mxu0 0
        %3199 = vmatpush1.bf16.msra.mxu0 %v3158
        %3200 = vmatprep.subr.bf16.mxu0 0
        %3201 = vmatpush1.bf16.msra.mxu0 %v3157
        %3202 = vmatprep.subr.bf16.mxu0 0
        %3203 = vmatpush1.bf16.msra.mxu0 %v3156
        %3204 = vmatprep.subr.bf16.mxu0 0
        %3205 = vmatpush2.bf16.msra.mxu0 %v3171
        %3206 = vmatprep.subr.bf16.mxu0 0
        %3207 = vmatpush2.bf16.msra.mxu0 %v3170
        %3208 = vmatprep.subr.bf16.mxu0 0
        %3209 = vmatpush2.bf16.msra.mxu0 %v3169
        %3210 = vmatprep.subr.bf16.mxu0 0
        %3211 = vmatpush2.bf16.msra.mxu0 %v3168
        %3212 = vmatprep.subr.bf16.mxu0 0
        %3213 = vmatpush2.bf16.msra.mxu0 %v3167
        %3214 = vmatprep.subr.bf16.mxu0 0
        %3215 = vmatpush2.bf16.msra.mxu0 %v3166
        %3216 = vmatprep.subr.bf16.mxu0 0
        %3217 = vmatpush2.bf16.msra.mxu0 %v3165
        %3218 = vmatprep.subr.bf16.mxu0 0
        %3219 = vmatpush2.bf16.msra.mxu0 %v3164
        %3220 = vmatprep.mubr.bf16.mxu0 %v3050
        %3221 = vmatmul.mubr.bf16.gmra.mxu0 %v3049
        %v3222 = vpop.f32.mrf.mxu0
        %v3223 = vadd.f32 %v3090, %v3222
        %v3224 = vpop.f32.mrf.mxu0
        %v3225 = vpop.f32.mrf.mxu0
        %v3226 = vadd.f32 %v3090, %v3225
        %v3227 = vpop.f32.mrf.mxu0
        %3228 = vmatprep.mubr.bf16.mxu0 %v3052
        %3229 = vmatmul.mubr.bf16.gmra.mxu0 %v3051
        %v3230 = vpop.f32.mrf.mxu0
        %v3231 = vadd.f32 %v3090, %v3230
        %v3232 = vpop.f32.mrf.mxu0
        %v3233 = vpop.f32.mrf.mxu0
        %v3234 = vadd.f32 %v3090, %v3233
        %v3235 = vpop.f32.mrf.mxu0
        %3236 = vdwg.mxu0
        %v3237 = vadd.f32 %v2776, %v3223
        %v3238 = vadd.f32 %v2777, %v3226
        %v3239 = vadd.f32 %v2778, %v3231
        %v3240 = vadd.f32 %v2779, %v3234
        %3241 = vst [vmem:[#allocation2] sm:$0xff] %v3237
        %3242 = vst [vmem:[#allocation2 + $0x8] sm:$0xff] %v3238
        %3243 = vst [vmem:[#allocation2 + $0x10] sm:$0xff] %v3239
        %3244 = vst [vmem:[#allocation2 + $0x18] sm:$0xff] %v3240
        %p3245 = scmp.eq.s32.totalorder %s47, 1
        // Predicated region
        $region133: #{tpu_custom_call.1} parent=99 // pred_check
          %p3246 = pneg %p3245
        $region134: #{tpu_custom_call.1} parent=99 // pred_check_branch
          %3248 = sbr.rel (%p3246) target = $region136
        $region135: #{tpu_custom_call.1} parent=99 // pred_region
          %v3249 = vld [vmem:[%s18] sm:$0x1]
          %v3250 = vld [vmem:[%s19] sm:$0x1]
          %3251 = vadd.xlane.f32.xlu0 %v3237
          %v3252 = vpop.xlane.xlu0 %3251
          %3253 = vadd.xlane.f32.xlu0 %v3238
          %v3254 = vpop.xlane.xlu0 %3253
          %3255 = vadd.xlane.f32.xlu0 %v3239
          %v3256 = vpop.xlane.xlu0 %3255
          %3257 = vadd.xlane.f32.xlu0 %v3240
          %v3258 = vpop.xlane.xlu0 %3257
          %v3259 = vmul.f32 %v3252, %v1042
          %v3260 = vmul.f32 %v3254, %v1042
          %v3261 = vmul.f32 %v3256, %v1042
          %v3262 = vmul.f32 %v3258, %v1042
          %v3263 = vsub.f32 %v3237, %v3259
          %v3264 = vsub.f32 %v3238, %v3260
          %v3265 = vsub.f32 %v3239, %v3261
          %v3266 = vsub.f32 %v3240, %v3262
          %v3267 = vmul.f32 %v3263, %v3263
          %v3268 = vmul.f32 %v3264, %v3264
          %v3269 = vmul.f32 %v3265, %v3265
          %v3270 = vmul.f32 %v3266, %v3266
          %3271 = vadd.xlane.f32.xlu0 %v3267
          %v3272 = vpop.xlane.xlu0 %3271
          %3273 = vadd.xlane.f32.xlu0 %v3268
          %v3274 = vpop.xlane.xlu0 %3273
          %3275 = vadd.xlane.f32.xlu0 %v3269
          %v3276 = vpop.xlane.xlu0 %3275
          %3277 = vadd.xlane.f32.xlu0 %v3270
          %v3278 = vpop.xlane.xlu0 %3277
          %v3279 = vmul.f32 %v3272, 0.007874016
          %v3280 = vmul.f32 %v3274, 0.007874016
          %v3281 = vmul.f32 %v3276, 0.007874016
          %v3282 = vmul.f32 %v3278, 0.007874016
          %v3283 = vrsqrt.pop %v3279
          %v3284 = vmul.f32 %v3279, %v3283
          %vm3285 = vcmp.eq.f32.partialorder %v3279, inf
          %v3286 = vsel %vm3285, %v3279, %v3284
          %vm3287 = vcmp.eq.f32.partialorder %v3279, 0.0
          %v3288 = vand.u32 %v3279, 2147483648
          %v3289 = vsel %vm3287, %v3288, %v3286
          %v3290 = vrsqrt.pop %v3280
          %v3291 = vmul.f32 %v3280, %v3290
          %vm3292 = vcmp.eq.f32.partialorder %v3280, inf
          %v3293 = vsel %vm3292, %v3280, %v3291
          %vm3294 = vcmp.eq.f32.partialorder %v3280, 0.0
          %v3295 = vand.u32 %v3280, 2147483648
          %v3296 = vsel %vm3294, %v3295, %v3293
          %v3297 = vrsqrt.pop %v3281
          %v3298 = vmul.f32 %v3281, %v3297
          %vm3299 = vcmp.eq.f32.partialorder %v3281, inf
          %v3300 = vsel %vm3299, %v3281, %v3298
          %vm3301 = vcmp.eq.f32.partialorder %v3281, 0.0
          %v3302 = vand.u32 %v3281, 2147483648
          %v3303 = vsel %vm3301, %v3302, %v3300
          %v3304 = vrsqrt.pop %v3282
          %v3305 = vmul.f32 %v3282, %v3304
          %vm3306 = vcmp.eq.f32.partialorder %v3282, inf
          %v3307 = vsel %vm3306, %v3282, %v3305
          %vm3308 = vcmp.eq.f32.partialorder %v3282, 0.0
          %v3309 = vand.u32 %v3282, 2147483648
          %v3310 = vsel %vm3308, %v3309, %v3307
          %v3311 = vadd.f32 %v3289, 1e-06
          %v3312 = vadd.f32 %v3296, 1e-06
          %v3313 = vadd.f32 %v3303, 1e-06
          %v3314 = vadd.f32 %v3310, 1e-06
          %v3315 = vrcp.pop %v3311
          %v3316 = vmul.f32 1.0, %v3315
          %v3317 = vrcp.pop %v3312
          %v3318 = vmul.f32 1.0, %v3317
          %v3319 = vrcp.pop %v3313
          %v3320 = vmul.f32 1.0, %v3319
          %v3321 = vrcp.pop %v3314
          %v3322 = vmul.f32 1.0, %v3321
          %v3323 = vmul.f32 %v3263, %v3316
          %v3324 = vmul.f32 %v3264, %v3318
          %v3325 = vmul.f32 %v3265, %v3320
          %v3326 = vmul.f32 %v3266, %v3322
          %v3328 = vlaneseq
          %v3329 = vshrl.u32 %v3328, 7
          %v3330 = vsub.s32 0, %v3329
          %v3331 = vrot.slane %v3249, %v3330
          %v3333 = vmul.f32 %v3331, %v3323
          %v3334 = vmul.f32 %v3331, %v3324
          %v3335 = vmul.f32 %v3331, %v3325
          %v3336 = vmul.f32 %v3331, %v3326
          %v3338 = vlaneseq
          %v3339 = vshrl.u32 %v3338, 7
          %v3340 = vsub.s32 0, %v3339
          %v3341 = vrot.slane %v3250, %v3340
          %v3343 = vadd.f32 %v3333, %v3341
          %v3344 = vadd.f32 %v3334, %v3341
          %v3345 = vadd.f32 %v3335, %v3341
          %v3346 = vadd.f32 %v3336, %v3341
          %3347 = vst [vmem:[#allocation15] sm:$0xff] %v3343
          %3348 = vst [vmem:[#allocation15 + $0x8] sm:$0xff] %v3344
          %3349 = vst [vmem:[#allocation15 + $0x10] sm:$0xff] %v3345
          %3350 = vst [vmem:[#allocation15 + $0x18] sm:$0xff] %v3346
        $region136: #{tpu_custom_call.1} parent=99 // pred_fallthru
          _
        // Predicated region
        $region137: #{tpu_custom_call.1} parent=99 // pred_check
          %p3351 = pneg %p577
        $region138: #{tpu_custom_call.1} parent=99 // pred_check_branch
          %3353 = sbr.rel (%p3351) target = $region140
        $region139: #{tpu_custom_call.1} parent=99 // pred_region
          %s3354 = smul.u32 2, %s46
          %s3356 = ssub.s32 512, 512
          %3357 = vsyncadd [#allocation5], %s3356
          %s3358 = smul.addr %s3354, 2
          %s3359 = smul.addr %s3358, 128
          %s3360 = scalar_lea.hbm %s20, %s3359
          %s3361 = sshll.u32 [#allocation15], 4
          %s3362 = int_to_ptr.vmem [resolvable:$true] %s3361
          %3367 = dma.vmem_to_hbm [thread:$0]  %s3362, 512, %s3360, [#allocation5], 128, 128, 8
        $region140: #{tpu_custom_call.1} parent=99 // pred_fallthru
          _
        // Predicated region
        $region141: #{tpu_custom_call.1} parent=99 // pred_check
          %p3368 = pneg %p577
        $region142: #{tpu_custom_call.1} parent=99 // pred_check_branch
          %3370 = sbr.rel (%p3368) target = $region144
        $region143: #{tpu_custom_call.1} parent=99 // pred_region
          %3371 = dma.done [#allocation5], 512
        $region144: #{tpu_custom_call.1} parent=99 // pred_fallthru
          _
      $region100: #{tpu_custom_call.1} parent=5 // pred_fallthru
        _
      %p3372 = scmp.le.s32.totalorder 2, %s37
      // Predicated region
      $region145: #{tpu_custom_call.1} parent=5 // pred_check
        %p3373 = pneg %p3372
      $region146: #{tpu_custom_call.1} parent=5 // pred_check_branch
        %3375 = sbr.rel (%p3373) target = $region148
      $region147: #{tpu_custom_call.1} parent=5 // pred_region
        %s3376 = ssub.s32 %s37, 2
      $region148: #{tpu_custom_call.1} parent=5 // pred_fallthru
        _
    $region6: #{tpu_custom_call.1} parent=1 // loop_footer
      %s41 = sadd.s32 1, %s37
    $region7: #{tpu_custom_call.1} parent=1 // loop_footer_branch
      %36 = sbr.rel target = $region3
    $region8: #{tpu_custom_call.1} parent=1 // loop_exit
      _
    %3377 = vsyncpa [#allocation4], 1
    %s3378 = scalar_lea.sflag [#allocation4], 1
    %3379 = vsyncpa %s3378, 1
    %3380 = vsyncpa [#allocation7], 1
    %s3381 = scalar_lea.sflag [#allocation7], 1
    %3382 = vsyncpa %s3381, 1
    %3383 = vsyncpa [#allocation10], 1
    %s3384 = scalar_lea.sflag [#allocation10], 1
    %3385 = vsyncpa %s3384, 1
    %3386 = vsyncpa [#allocation13], 1
    %s3387 = scalar_lea.sflag [#allocation13], 1
    %3388 = vsyncpa %s3387, 1
    %3389 = vsyncpa [#allocation5], 1
    %s3390 = scalar_lea.sflag [#allocation5], 1
    %3391 = vsyncpa %s3390, 1

</llo_original>
